<compile_context>
chip_gen: v6e
topology: v6e:2x2x1
jax: 0.10.0
libtpu: 0.0.40
codegen_flags: <defaults>
</compile_context>

<pallas_src>
import numpy as np

import jax
import jax.numpy as jnp
from jax.experimental import pallas as pl
from jax.experimental.pallas import tpu as pltpu

VMEM_LIMIT = 32 * 1024 * 1024


# --------------------------------------------------------------------------
# Fused forward kernel (one image per grid step)
# --------------------------------------------------------------------------
def _net_fused_kernel(x_ref,
                      wb1e_ref, wb1o_ref, b1_ref,
                      wb2e_ref, wb2o_ref, b2_ref,
                      wf1_ref, bf1_ref, wf2_ref, bf2_ref, wf3_ref, bf3_ref,
                      o_ref):
    f32 = jnp.float32
    bf16 = jnp.bfloat16

    # Input image, rows pre-split by parity: x[parity, p, 4*col + ic]
    xe = x_ref[0, 0]                                   # even rows  [16, 128] bf16
    xo = x_ref[0, 1]                                   # odd  rows  [16, 128] bf16

    # ---- conv1 (5x5, 3->6) as banded matmuls -------------------------------
    # Four accumulators = (even/odd output row) x (even/odd output column),
    # so the 2x2 max-pool is a plain elementwise max afterwards.
    acc_ee = acc_eo = acc_oe = acc_oo = None
    for kh in range(5):
        lhs_e = (xe, xo)[kh % 2][kh // 2: kh // 2 + 14]            # [14, 128]
        lhs_o = (xe, xo)[(kh + 1) % 2][(kh + 1) // 2: (kh + 1) // 2 + 14]
        we = wb1e_ref[kh]                                          # [128, 112]
        wo = wb1o_ref[kh]
        dee = jnp.dot(lhs_e, we, preferred_element_type=f32)
        deo = jnp.dot(lhs_e, wo, preferred_element_type=f32)
        doe = jnp.dot(lhs_o, we, preferred_element_type=f32)
        doo = jnp.dot(lhs_o, wo, preferred_element_type=f32)
        if acc_ee is None:
            acc_ee, acc_eo, acc_oe, acc_oo = dee, deo, doe, doo
        else:
            acc_ee += dee
            acc_eo += deo
            acc_oe += doe
            acc_oo += doo
    # 2x2 max-pool + bias + ReLU (bias is identical across the pool window,
    # and ReLU is monotone, so max -> bias -> ReLU is exact).
    c1 = jnp.maximum(jnp.maximum(acc_ee, acc_eo), jnp.maximum(acc_oe, acc_oo))
    a1 = jnp.maximum(c1 + b1_ref[...], 0.0).astype(bf16)           # [14, 112]

    # ---- conv2 (5x5, 6->16) as banded matmuls ------------------------------
    # Even/odd output-column accumulators (column-pair pooling = elementwise
    # max); the row-pair pooling is done with static row slices below.
    acc_e = acc_o = None
    for kh in range(5):
        lhs = a1[kh: kh + 10]                                       # [10, 112]
        de = jnp.dot(lhs, wb2e_ref[kh], preferred_element_type=f32)  # [10, 80]
        do = jnp.dot(lhs, wb2o_ref[kh], preferred_element_type=f32)
        if acc_e is None:
            acc_e, acc_o = de, do
        else:
            acc_e += de
            acc_o += do
    c2 = jnp.maximum(jnp.maximum(acc_e, acc_o) + b2_ref[...], 0.0)  # [10, 80] f32

    # ---- pool2 row pairs fused into fc1 ------------------------------------
    # fc1 contracts the 5 pooled rows x 80 lanes; each pooled row feeds its
    # own [80, 128] weight slab (rows remapped to PyTorch's (c, h, w) flatten).
    h = None
    for r in range(5):
        row = jnp.maximum(c2[2 * r: 2 * r + 1], c2[2 * r + 1: 2 * r + 2])
        row = row.astype(bf16)                                      # [1, 80]
        d = jnp.dot(row, wf1_ref[r], preferred_element_type=f32)    # [1, 128]
        h = d if h is None else h + d
    h = jnp.maximum(h + bf1_ref[...], 0.0).astype(bf16)             # fc1 + ReLU

    # ---- fc2 -> ReLU -> fc3 -------------------------------------------------
    h = jnp.dot(h, wf2_ref[...], preferred_element_type=f32)
    h = jnp.maximum(h + bf2_ref[...], 0.0).astype(bf16)
    out = jnp.dot(h, wf3_ref[...], preferred_element_type=f32) + bf3_ref[...]
    o_ref[0] = out                                                  # [1, 128] f32


# --------------------------------------------------------------------------
# Parameters: PyTorch-layout init + one-time packing into banded GEMM weights
# --------------------------------------------------------------------------
def _uniform(key, shape, fan_in):
    bound = 1.0 / jnp.sqrt(jnp.float32(fan_in))
    return jax.random.uniform(key, shape, jnp.float32, -bound, bound)


def init_params(key):
    """PyTorch-layout params (conv: [OC, IC, KH, KW]; fc: [in, out])."""
    ks = jax.random.split(key, 10)
    p = {}
    p["conv1_w"] = _uniform(ks[0], (6, 3, 5, 5), 3 * 5 * 5)
    p["conv1_b"] = _uniform(ks[1], (6,), 3 * 5 * 5)
    p["conv2_w"] = _uniform(ks[2], (16, 6, 5, 5), 6 * 5 * 5)
    p["conv2_b"] = _uniform(ks[3], (16,), 6 * 5 * 5)
    p["fc1_w"] = _uniform(ks[4], (400, 120), 400)   # rows ordered (c, h, w)
    p["fc1_b"] = _uniform(ks[5], (120,), 400)
    p["fc2_w"] = _uniform(ks[6], (120, 84), 120)
    p["fc2_b"] = _uniform(ks[7], (84,), 120)
    p["fc3_w"] = _uniform(ks[8], (84, 10), 84)
    p["fc3_b"] = _uniform(ks[9], (10,), 84)
    return p


def pack_params(p):
    """One-time (numpy) packing into banded, lane-dense, bf16 GEMM weights."""
    f32 = np.float32
    w1 = np.asarray(p["conv1_w"], f32)
    b1 = np.asarray(p["conv1_b"], f32)
    w2 = np.asarray(p["conv2_w"], f32)
    b2 = np.asarray(p["conv2_b"], f32)
    f1 = np.asarray(p["fc1_w"], f32)
    fb1 = np.asarray(p["fc1_b"], f32)
    f2 = np.asarray(p["fc2_w"], f32)
    fb2 = np.asarray(p["fc2_b"], f32)
    f3 = np.asarray(p["fc3_w"], f32)
    fb3 = np.asarray(p["fc3_b"], f32)

    # conv1 banded weights.  Input row layout: lane = 4*col + ic (ic padded
    # 3->4).  Output layout: lane = 8*j + oc (oc padded 6->8), j = pooled-col
    # index; parity selects even (ow = 2j) / odd (ow = 2j+1) output columns.
    wb1 = np.zeros((2, 5, 32, 4, 14, 8), f32)
    for par in range(2):
        for kh in range(5):
            for kw in range(5):
                for j in range(14):
                    col = 2 * j + par + kw
                    wb1[par, kh, col, :3, j, :6] = w1[:, :, kh, kw].T
    wb1 = wb1.reshape(2, 5, 128, 112)
    bb1 = np.tile(np.pad(b1, (0, 2)), 14).reshape(1, 112)

    # conv2 banded weights.  Input (a1) lane layout: 8*j + c (c: 6 real conv1
    # channels; pad rows are zero).  Output lane layout: 16*q + oc, q = pooled
    # column index; parity = even/odd conv2 output column.
    wb2 = np.zeros((2, 5, 14, 8, 5, 16), f32)
    for par in range(2):
        for kh in range(5):
            for kw in range(5):
                for q in range(5):
                    j = 2 * q + par + kw
                    wb2[par, kh, j, :6, q, :] = w2[:, :, kh, kw].T
    wb2 = wb2.reshape(2, 5, 112, 80)
    bb2 = np.tile(b2, 5).reshape(1, 80)

    # fc1: one [80, 128] slab per pooled row h; row lane = 16*w + c, remapped
    # to PyTorch's flatten order c*25 + h*5 + w.
    wf1 = np.zeros((5, 5, 16, 128), f32)
    for h in range(5):
        for w in range(5):
            for c in range(16):
                wf1[h, w, c, :120] = f1[c * 25 + h * 5 + w]
    wf1 = wf1.reshape(5, 80, 128)
    bf1 = np.zeros((1, 128), f32)
    bf1[0, :120] = fb1

    wf2 = np.zeros((128, 128), f32)
    wf2[:120, :84] = f2
    bf2 = np.zeros((1, 128), f32)
    bf2[0, :84] = fb2
    wf3 = np.zeros((128, 128), f32)
    wf3[:84, :10] = f3
    bf3 = np.zeros((1, 128), f32)
    bf3[0, :10] = fb3

    bf = jnp.bfloat16
    return {
        "wb1e": jnp.asarray(wb1[0], dtype=bf), "wb1o": jnp.asarray(wb1[1], dtype=bf),
        "b1": jnp.asarray(bb1),
        "wb2e": jnp.asarray(wb2[0], dtype=bf), "wb2o": jnp.asarray(wb2[1], dtype=bf),
        "b2": jnp.asarray(bb2),
        "wf1": jnp.asarray(wf1, dtype=bf), "bf1": jnp.asarray(bf1),
        "wf2": jnp.asarray(wf2, dtype=bf), "bf2": jnp.asarray(bf2),
        "wf3": jnp.asarray(wf3, dtype=bf), "bf3": jnp.asarray(bf3),
    }


# --------------------------------------------------------------------------
# Forward pass (mirrors Net.forward) — one fused Pallas kernel
# --------------------------------------------------------------------------
@jax.jit
def net_forward(q, x):
    # x: [B, 3, 32, 32] NCHW f32 (PyTorch convention)
    B = x.shape[0]
    # Input packing (tiny, one XLA fusion): NCHW -> NHWC, pad C 3->4, fold
    # (W, C) into 128 lanes, split rows by parity for the in-kernel pooling.
    xh = jnp.transpose(x, (0, 2, 3, 1))                      # [B, 32, 32, 3]
    xh = jnp.pad(xh, ((0, 0), (0, 0), (0, 0), (0, 1)))       # [B, 32, 32, 4]
    xh = xh.reshape(B, 16, 2, 128)                           # rows -> (p, parity)
    xh = jnp.transpose(xh, (0, 2, 1, 3)).astype(jnp.bfloat16)  # [B, 2, 16, 128]

    const2 = lambda i: (0, 0)
    const3 = lambda i: (0, 0, 0)
    out = pl.pallas_call(
        _net_fused_kernel,
        out_shape=jax.ShapeDtypeStruct((B, 1, 128), jnp.float32),
        grid=(B,),
        in_specs=[
            pl.BlockSpec((1, 2, 16, 128), lambda i: (i, 0, 0, 0)),
            pl.BlockSpec(q["wb1e"].shape, const3),   # resident weights:
            pl.BlockSpec(q["wb1o"].shape, const3),   # constant index_map ->
            pl.BlockSpec(q["b1"].shape, const2),     # DMA'd once, stay in VMEM
            pl.BlockSpec(q["wb2e"].shape, const3),
            pl.BlockSpec(q["wb2o"].shape, const3),
            pl.BlockSpec(q["b2"].shape, const2),
            pl.BlockSpec(q["wf1"].shape, const3),
            pl.BlockSpec(q["bf1"].shape, const2),
            pl.BlockSpec(q["wf2"].shape, const2),
            pl.BlockSpec(q["bf2"].shape, const2),
            pl.BlockSpec(q["wf3"].shape, const2),
            pl.BlockSpec(q["bf3"].shape, const2),
        ],
        out_specs=pl.BlockSpec((1, 1, 128), lambda i: (i, 0, 0)),
        compiler_params=pltpu.CompilerParams(
            dimension_semantics=("parallel",),       # >=2 parallel steps (B=2)
            vmem_limit_bytes=VMEM_LIMIT),
    )(xh, q["wb1e"], q["wb1o"], q["b1"], q["wb2e"], q["wb2o"], q["b2"],
      q["wf1"], q["bf1"], q["wf2"], q["bf2"], q["wf3"], q["bf3"])
    return out.reshape(B, 128)[:, :10]


if __name__ == "__main__":
    key = jax.random.PRNGKey(0)
    pkey, xkey = jax.random.split(key)
    params = init_params(pkey)
    packed = pack_params(params)          # one-time weight packing (hoisted)
    # Net requires 32x32 spatial input (16*5*5 flatten). Batch = 2.
    x = jax.random.normal(xkey, (2, 3, 32, 32), jnp.float32)
    out = net_forward(packed, x)
    out = jax.block_until_ready(out)
    assert out.shape == (2, 10)
    assert out.dtype == jnp.float32
    print("KERNEL_OK")
</pallas_src>

<mosaic_0001>
module attributes {stable_mosaic.version = 11 : i64} {
  func.func @_net_fused_kernel(%arg0: i32, %arg1: memref<1x2x16x128xbf16, #tpu.memory_space<vmem>>, %arg2: memref<5x128x112xbf16, #tpu.memory_space<vmem>>, %arg3: memref<5x128x112xbf16, #tpu.memory_space<vmem>>, %arg4: memref<1x112xf32, #tpu.memory_space<vmem>>, %arg5: memref<5x112x80xbf16, #tpu.memory_space<vmem>>, %arg6: memref<5x112x80xbf16, #tpu.memory_space<vmem>>, %arg7: memref<1x80xf32, #tpu.memory_space<vmem>>, %arg8: memref<5x80x128xbf16, #tpu.memory_space<vmem>>, %arg9: memref<1x128xf32, #tpu.memory_space<vmem>>, %arg10: memref<128x128xbf16, #tpu.memory_space<vmem>>, %arg11: memref<1x128xf32, #tpu.memory_space<vmem>>, %arg12: memref<128x128xbf16, #tpu.memory_space<vmem>>, %arg13: memref<1x128xf32, #tpu.memory_space<vmem>>, %arg14: memref<1x1x128xf32, #tpu.memory_space<vmem>>) attributes {dimension_semantics = [#tpu.dimension_semantics<parallel>], iteration_bounds = array<i64: 2>, scalar_prefetch = 0 : i64, scratch_operands = 0 : i64, tpu.core_type = #tpu.core_type<tc>, window_params = [{transform_indices = @transform_0, window_bounds = array<i64: 1, 2, 16, 128>}, {pipeline_mode = #tpu.pipeline_mode<synchronous>, transform_indices = @transform_1, window_bounds = array<i64: 5, 128, 112>}, {pipeline_mode = #tpu.pipeline_mode<synchronous>, transform_indices = @transform_2, window_bounds = array<i64: 5, 128, 112>}, {pipeline_mode = #tpu.pipeline_mode<synchronous>, transform_indices = @transform_3, window_bounds = array<i64: 1, 112>}, {pipeline_mode = #tpu.pipeline_mode<synchronous>, transform_indices = @transform_4, window_bounds = array<i64: 5, 112, 80>}, {pipeline_mode = #tpu.pipeline_mode<synchronous>, transform_indices = @transform_5, window_bounds = array<i64: 5, 112, 80>}, {pipeline_mode = #tpu.pipeline_mode<synchronous>, transform_indices = @transform_6, window_bounds = array<i64: 1, 80>}, {pipeline_mode = #tpu.pipeline_mode<synchronous>, transform_indices = @transform_7, window_bounds = array<i64: 5, 80, 128>}, {pipeline_mode = #tpu.pipeline_mode<synchronous>, transform_indices = @transform_8, window_bounds = array<i64: 1, 128>}, {pipeline_mode = #tpu.pipeline_mode<synchronous>, transform_indices = @transform_9, window_bounds = array<i64: 128, 128>}, {pipeline_mode = #tpu.pipeline_mode<synchronous>, transform_indices = @transform_10, window_bounds = array<i64: 1, 128>}, {pipeline_mode = #tpu.pipeline_mode<synchronous>, transform_indices = @transform_11, window_bounds = array<i64: 128, 128>}, {pipeline_mode = #tpu.pipeline_mode<synchronous>, transform_indices = @transform_12, window_bounds = array<i64: 1, 128>}, {transform_indices = @transform_13, window_bounds = array<i64: 1, 1, 128>}]} {
    %c0 = arith.constant 0 : index
    %c0_0 = arith.constant 0 : index
    %c0_1 = arith.constant 0 : index
    %c0_2 = arith.constant 0 : index
    %0 = vector.load %arg1[%c0, %c0_0, %c0_1, %c0_2] : memref<1x2x16x128xbf16, #tpu.memory_space<vmem>>, vector<1x1x16x128xbf16>
    %1 = vector.shape_cast %0 : vector<1x1x16x128xbf16> to vector<16x128xbf16>
    %c0_3 = arith.constant 0 : index
    %c1 = arith.constant 1 : index
    %c0_4 = arith.constant 0 : index
    %c0_5 = arith.constant 0 : index
    %2 = vector.load %arg1[%c0_3, %c1, %c0_4, %c0_5] : memref<1x2x16x128xbf16, #tpu.memory_space<vmem>>, vector<1x1x16x128xbf16>
    %3 = vector.shape_cast %2 : vector<1x1x16x128xbf16> to vector<16x128xbf16>
    %4 = vector.extract_strided_slice %1 {offsets = [0, 0], sizes = [14, 128], strides = [1, 1]} : vector<16x128xbf16> to vector<14x128xbf16>
    %5 = vector.extract_strided_slice %3 {offsets = [0, 0], sizes = [14, 128], strides = [1, 1]} : vector<16x128xbf16> to vector<14x128xbf16>
    %c0_6 = arith.constant 0 : index
    %c0_7 = arith.constant 0 : index
    %c0_8 = arith.constant 0 : index
    %6 = vector.load %arg2[%c0_6, %c0_7, %c0_8] : memref<5x128x112xbf16, #tpu.memory_space<vmem>>, vector<1x128x112xbf16>
    %7 = vector.shape_cast %6 : vector<1x128x112xbf16> to vector<128x112xbf16>
    %c0_9 = arith.constant 0 : index
    %c0_10 = arith.constant 0 : index
    %c0_11 = arith.constant 0 : index
    %8 = vector.load %arg3[%c0_9, %c0_10, %c0_11] : memref<5x128x112xbf16, #tpu.memory_space<vmem>>, vector<1x128x112xbf16>
    %9 = vector.shape_cast %8 : vector<1x128x112xbf16> to vector<128x112xbf16>
    %cst = arith.constant dense<0.000000e+00> : vector<14x112xf32>
    %10 = tpu.matmul %4, %7, %cst {dimension_numbers = #tpu.dot_dimension_numbers<[1], [0], [0], [1], [0, 0, 1, 1], [], []>} : vector<14x128xbf16>, vector<128x112xbf16>, vector<14x112xf32> -> vector<14x112xf32>
    %cst_12 = arith.constant dense<0.000000e+00> : vector<14x112xf32>
    %11 = tpu.matmul %4, %9, %cst_12 {dimension_numbers = #tpu.dot_dimension_numbers<[1], [0], [0], [1], [0, 0, 1, 1], [], []>} : vector<14x128xbf16>, vector<128x112xbf16>, vector<14x112xf32> -> vector<14x112xf32>
    %cst_13 = arith.constant dense<0.000000e+00> : vector<14x112xf32>
    %12 = tpu.matmul %5, %7, %cst_13 {dimension_numbers = #tpu.dot_dimension_numbers<[1], [0], [0], [1], [0, 0, 1, 1], [], []>} : vector<14x128xbf16>, vector<128x112xbf16>, vector<14x112xf32> -> vector<14x112xf32>
    %cst_14 = arith.constant dense<0.000000e+00> : vector<14x112xf32>
    %13 = tpu.matmul %5, %9, %cst_14 {dimension_numbers = #tpu.dot_dimension_numbers<[1], [0], [0], [1], [0, 0, 1, 1], [], []>} : vector<14x128xbf16>, vector<128x112xbf16>, vector<14x112xf32> -> vector<14x112xf32>
    %14 = vector.extract_strided_slice %3 {offsets = [0, 0], sizes = [14, 128], strides = [1, 1]} : vector<16x128xbf16> to vector<14x128xbf16>
    %15 = vector.extract_strided_slice %1 {offsets = [1, 0], sizes = [14, 128], strides = [1, 1]} : vector<16x128xbf16> to vector<14x128xbf16>
    %c1_15 = arith.constant 1 : index
    %c0_16 = arith.constant 0 : index
    %c0_17 = arith.constant 0 : index
    %16 = vector.load %arg2[%c1_15, %c0_16, %c0_17] : memref<5x128x112xbf16, #tpu.memory_space<vmem>>, vector<1x128x112xbf16>
    %17 = vector.shape_cast %16 : vector<1x128x112xbf16> to vector<128x112xbf16>
    %c1_18 = arith.constant 1 : index
    %c0_19 = arith.constant 0 : index
    %c0_20 = arith.constant 0 : index
    %18 = vector.load %arg3[%c1_18, %c0_19, %c0_20] : memref<5x128x112xbf16, #tpu.memory_space<vmem>>, vector<1x128x112xbf16>
    %19 = vector.shape_cast %18 : vector<1x128x112xbf16> to vector<128x112xbf16>
    %cst_21 = arith.constant dense<0.000000e+00> : vector<14x112xf32>
    %20 = tpu.matmul %14, %17, %cst_21 {dimension_numbers = #tpu.dot_dimension_numbers<[1], [0], [0], [1], [0, 0, 1, 1], [], []>} : vector<14x128xbf16>, vector<128x112xbf16>, vector<14x112xf32> -> vector<14x112xf32>
    %cst_22 = arith.constant dense<0.000000e+00> : vector<14x112xf32>
    %21 = tpu.matmul %14, %19, %cst_22 {dimension_numbers = #tpu.dot_dimension_numbers<[1], [0], [0], [1], [0, 0, 1, 1], [], []>} : vector<14x128xbf16>, vector<128x112xbf16>, vector<14x112xf32> -> vector<14x112xf32>
    %cst_23 = arith.constant dense<0.000000e+00> : vector<14x112xf32>
    %22 = tpu.matmul %15, %17, %cst_23 {dimension_numbers = #tpu.dot_dimension_numbers<[1], [0], [0], [1], [0, 0, 1, 1], [], []>} : vector<14x128xbf16>, vector<128x112xbf16>, vector<14x112xf32> -> vector<14x112xf32>
    %cst_24 = arith.constant dense<0.000000e+00> : vector<14x112xf32>
    %23 = tpu.matmul %15, %19, %cst_24 {dimension_numbers = #tpu.dot_dimension_numbers<[1], [0], [0], [1], [0, 0, 1, 1], [], []>} : vector<14x128xbf16>, vector<128x112xbf16>, vector<14x112xf32> -> vector<14x112xf32>
    %24 = arith.addf %10, %20 : vector<14x112xf32>
    %25 = arith.addf %11, %21 : vector<14x112xf32>
    %26 = arith.addf %12, %22 : vector<14x112xf32>
    %27 = arith.addf %13, %23 : vector<14x112xf32>
    %28 = vector.extract_strided_slice %1 {offsets = [1, 0], sizes = [14, 128], strides = [1, 1]} : vector<16x128xbf16> to vector<14x128xbf16>
    %29 = vector.extract_strided_slice %3 {offsets = [1, 0], sizes = [14, 128], strides = [1, 1]} : vector<16x128xbf16> to vector<14x128xbf16>
    %c2 = arith.constant 2 : index
    %c0_25 = arith.constant 0 : index
    %c0_26 = arith.constant 0 : index
    %30 = vector.load %arg2[%c2, %c0_25, %c0_26] : memref<5x128x112xbf16, #tpu.memory_space<vmem>>, vector<1x128x112xbf16>
    %31 = vector.shape_cast %30 : vector<1x128x112xbf16> to vector<128x112xbf16>
    %c2_27 = arith.constant 2 : index
    %c0_28 = arith.constant 0 : index
    %c0_29 = arith.constant 0 : index
    %32 = vector.load %arg3[%c2_27, %c0_28, %c0_29] : memref<5x128x112xbf16, #tpu.memory_space<vmem>>, vector<1x128x112xbf16>
    %33 = vector.shape_cast %32 : vector<1x128x112xbf16> to vector<128x112xbf16>
    %cst_30 = arith.constant dense<0.000000e+00> : vector<14x112xf32>
    %34 = tpu.matmul %28, %31, %cst_30 {dimension_numbers = #tpu.dot_dimension_numbers<[1], [0], [0], [1], [0, 0, 1, 1], [], []>} : vector<14x128xbf16>, vector<128x112xbf16>, vector<14x112xf32> -> vector<14x112xf32>
    %cst_31 = arith.constant dense<0.000000e+00> : vector<14x112xf32>
    %35 = tpu.matmul %28, %33, %cst_31 {dimension_numbers = #tpu.dot_dimension_numbers<[1], [0], [0], [1], [0, 0, 1, 1], [], []>} : vector<14x128xbf16>, vector<128x112xbf16>, vector<14x112xf32> -> vector<14x112xf32>
    %cst_32 = arith.constant dense<0.000000e+00> : vector<14x112xf32>
    %36 = tpu.matmul %29, %31, %cst_32 {dimension_numbers = #tpu.dot_dimension_numbers<[1], [0], [0], [1], [0, 0, 1, 1], [], []>} : vector<14x128xbf16>, vector<128x112xbf16>, vector<14x112xf32> -> vector<14x112xf32>
    %cst_33 = arith.constant dense<0.000000e+00> : vector<14x112xf32>
    %37 = tpu.matmul %29, %33, %cst_33 {dimension_numbers = #tpu.dot_dimension_numbers<[1], [0], [0], [1], [0, 0, 1, 1], [], []>} : vector<14x128xbf16>, vector<128x112xbf16>, vector<14x112xf32> -> vector<14x112xf32>
    %38 = arith.addf %24, %34 : vector<14x112xf32>
    %39 = arith.addf %25, %35 : vector<14x112xf32>
    %40 = arith.addf %26, %36 : vector<14x112xf32>
    %41 = arith.addf %27, %37 : vector<14x112xf32>
    %42 = vector.extract_strided_slice %3 {offsets = [1, 0], sizes = [14, 128], strides = [1, 1]} : vector<16x128xbf16> to vector<14x128xbf16>
    %43 = vector.extract_strided_slice %1 {offsets = [2, 0], sizes = [14, 128], strides = [1, 1]} : vector<16x128xbf16> to vector<14x128xbf16>
    %c3 = arith.constant 3 : index
    %c0_34 = arith.constant 0 : index
    %c0_35 = arith.constant 0 : index
    %44 = vector.load %arg2[%c3, %c0_34, %c0_35] : memref<5x128x112xbf16, #tpu.memory_space<vmem>>, vector<1x128x112xbf16>
    %45 = vector.shape_cast %44 : vector<1x128x112xbf16> to vector<128x112xbf16>
    %c3_36 = arith.constant 3 : index
    %c0_37 = arith.constant 0 : index
    %c0_38 = arith.constant 0 : index
    %46 = vector.load %arg3[%c3_36, %c0_37, %c0_38] : memref<5x128x112xbf16, #tpu.memory_space<vmem>>, vector<1x128x112xbf16>
    %47 = vector.shape_cast %46 : vector<1x128x112xbf16> to vector<128x112xbf16>
    %cst_39 = arith.constant dense<0.000000e+00> : vector<14x112xf32>
    %48 = tpu.matmul %42, %45, %cst_39 {dimension_numbers = #tpu.dot_dimension_numbers<[1], [0], [0], [1], [0, 0, 1, 1], [], []>} : vector<14x128xbf16>, vector<128x112xbf16>, vector<14x112xf32> -> vector<14x112xf32>
    %cst_40 = arith.constant dense<0.000000e+00> : vector<14x112xf32>
    %49 = tpu.matmul %42, %47, %cst_40 {dimension_numbers = #tpu.dot_dimension_numbers<[1], [0], [0], [1], [0, 0, 1, 1], [], []>} : vector<14x128xbf16>, vector<128x112xbf16>, vector<14x112xf32> -> vector<14x112xf32>
    %cst_41 = arith.constant dense<0.000000e+00> : vector<14x112xf32>
    %50 = tpu.matmul %43, %45, %cst_41 {dimension_numbers = #tpu.dot_dimension_numbers<[1], [0], [0], [1], [0, 0, 1, 1], [], []>} : vector<14x128xbf16>, vector<128x112xbf16>, vector<14x112xf32> -> vector<14x112xf32>
    %cst_42 = arith.constant dense<0.000000e+00> : vector<14x112xf32>
    %51 = tpu.matmul %43, %47, %cst_42 {dimension_numbers = #tpu.dot_dimension_numbers<[1], [0], [0], [1], [0, 0, 1, 1], [], []>} : vector<14x128xbf16>, vector<128x112xbf16>, vector<14x112xf32> -> vector<14x112xf32>
    %52 = arith.addf %38, %48 : vector<14x112xf32>
    %53 = arith.addf %39, %49 : vector<14x112xf32>
    %54 = arith.addf %40, %50 : vector<14x112xf32>
    %55 = arith.addf %41, %51 : vector<14x112xf32>
    %56 = vector.extract_strided_slice %1 {offsets = [2, 0], sizes = [14, 128], strides = [1, 1]} : vector<16x128xbf16> to vector<14x128xbf16>
    %57 = vector.extract_strided_slice %3 {offsets = [2, 0], sizes = [14, 128], strides = [1, 1]} : vector<16x128xbf16> to vector<14x128xbf16>
    %c4 = arith.constant 4 : index
    %c0_43 = arith.constant 0 : index
    %c0_44 = arith.constant 0 : index
    %58 = vector.load %arg2[%c4, %c0_43, %c0_44] : memref<5x128x112xbf16, #tpu.memory_space<vmem>>, vector<1x128x112xbf16>
    %59 = vector.shape_cast %58 : vector<1x128x112xbf16> to vector<128x112xbf16>
    %c4_45 = arith.constant 4 : index
    %c0_46 = arith.constant 0 : index
    %c0_47 = arith.constant 0 : index
    %60 = vector.load %arg3[%c4_45, %c0_46, %c0_47] : memref<5x128x112xbf16, #tpu.memory_space<vmem>>, vector<1x128x112xbf16>
    %61 = vector.shape_cast %60 : vector<1x128x112xbf16> to vector<128x112xbf16>
    %cst_48 = arith.constant dense<0.000000e+00> : vector<14x112xf32>
    %62 = tpu.matmul %56, %59, %cst_48 {dimension_numbers = #tpu.dot_dimension_numbers<[1], [0], [0], [1], [0, 0, 1, 1], [], []>} : vector<14x128xbf16>, vector<128x112xbf16>, vector<14x112xf32> -> vector<14x112xf32>
    %cst_49 = arith.constant dense<0.000000e+00> : vector<14x112xf32>
    %63 = tpu.matmul %56, %61, %cst_49 {dimension_numbers = #tpu.dot_dimension_numbers<[1], [0], [0], [1], [0, 0, 1, 1], [], []>} : vector<14x128xbf16>, vector<128x112xbf16>, vector<14x112xf32> -> vector<14x112xf32>
    %cst_50 = arith.constant dense<0.000000e+00> : vector<14x112xf32>
    %64 = tpu.matmul %57, %59, %cst_50 {dimension_numbers = #tpu.dot_dimension_numbers<[1], [0], [0], [1], [0, 0, 1, 1], [], []>} : vector<14x128xbf16>, vector<128x112xbf16>, vector<14x112xf32> -> vector<14x112xf32>
    %cst_51 = arith.constant dense<0.000000e+00> : vector<14x112xf32>
    %65 = tpu.matmul %57, %61, %cst_51 {dimension_numbers = #tpu.dot_dimension_numbers<[1], [0], [0], [1], [0, 0, 1, 1], [], []>} : vector<14x128xbf16>, vector<128x112xbf16>, vector<14x112xf32> -> vector<14x112xf32>
    %66 = arith.addf %52, %62 : vector<14x112xf32>
    %67 = arith.addf %53, %63 : vector<14x112xf32>
    %68 = arith.addf %54, %64 : vector<14x112xf32>
    %69 = arith.addf %55, %65 : vector<14x112xf32>
    %70 = arith.maximumf %66, %67 : vector<14x112xf32>
    %71 = arith.maximumf %68, %69 : vector<14x112xf32>
    %72 = arith.maximumf %70, %71 : vector<14x112xf32>
    %c0_52 = arith.constant 0 : index
    %c0_53 = arith.constant 0 : index
    %73 = vector.load %arg4[%c0_52, %c0_53] : memref<1x112xf32, #tpu.memory_space<vmem>>, vector<1x112xf32>
    %74 = vector.broadcast %73 : vector<1x112xf32> to vector<14x112xf32>
    %75 = arith.addf %72, %74 : vector<14x112xf32>
    %cst_54 = arith.constant 0.000000e+00 : f32
    %76 = vector.broadcast %cst_54 : f32 to vector<14x112xf32>
    %77 = arith.maximumf %75, %76 : vector<14x112xf32>
    %78 = arith.truncf %77 : vector<14x112xf32> to vector<14x112xbf16>
    %79 = vector.extract_strided_slice %78 {offsets = [0, 0], sizes = [10, 112], strides = [1, 1]} : vector<14x112xbf16> to vector<10x112xbf16>
    %c0_55 = arith.constant 0 : index
    %c0_56 = arith.constant 0 : index
    %c0_57 = arith.constant 0 : index
    %80 = vector.load %arg5[%c0_55, %c0_56, %c0_57] : memref<5x112x80xbf16, #tpu.memory_space<vmem>>, vector<1x112x80xbf16>
    %81 = vector.shape_cast %80 : vector<1x112x80xbf16> to vector<112x80xbf16>
    %cst_58 = arith.constant dense<0.000000e+00> : vector<10x80xf32>
    %82 = tpu.matmul %79, %81, %cst_58 {dimension_numbers = #tpu.dot_dimension_numbers<[1], [0], [0], [1], [0, 0, 1, 1], [], []>} : vector<10x112xbf16>, vector<112x80xbf16>, vector<10x80xf32> -> vector<10x80xf32>
    %c0_59 = arith.constant 0 : index
    %c0_60 = arith.constant 0 : index
    %c0_61 = arith.constant 0 : index
    %83 = vector.load %arg6[%c0_59, %c0_60, %c0_61] : memref<5x112x80xbf16, #tpu.memory_space<vmem>>, vector<1x112x80xbf16>
    %84 = vector.shape_cast %83 : vector<1x112x80xbf16> to vector<112x80xbf16>
    %cst_62 = arith.constant dense<0.000000e+00> : vector<10x80xf32>
    %85 = tpu.matmul %79, %84, %cst_62 {dimension_numbers = #tpu.dot_dimension_numbers<[1], [0], [0], [1], [0, 0, 1, 1], [], []>} : vector<10x112xbf16>, vector<112x80xbf16>, vector<10x80xf32> -> vector<10x80xf32>
    %86 = vector.extract_strided_slice %78 {offsets = [1, 0], sizes = [10, 112], strides = [1, 1]} : vector<14x112xbf16> to vector<10x112xbf16>
    %c1_63 = arith.constant 1 : index
    %c0_64 = arith.constant 0 : index
    %c0_65 = arith.constant 0 : index
    %87 = vector.load %arg5[%c1_63, %c0_64, %c0_65] : memref<5x112x80xbf16, #tpu.memory_space<vmem>>, vector<1x112x80xbf16>
    %88 = vector.shape_cast %87 : vector<1x112x80xbf16> to vector<112x80xbf16>
    %cst_66 = arith.constant dense<0.000000e+00> : vector<10x80xf32>
    %89 = tpu.matmul %86, %88, %cst_66 {dimension_numbers = #tpu.dot_dimension_numbers<[1], [0], [0], [1], [0, 0, 1, 1], [], []>} : vector<10x112xbf16>, vector<112x80xbf16>, vector<10x80xf32> -> vector<10x80xf32>
    %c1_67 = arith.constant 1 : index
    %c0_68 = arith.constant 0 : index
    %c0_69 = arith.constant 0 : index
    %90 = vector.load %arg6[%c1_67, %c0_68, %c0_69] : memref<5x112x80xbf16, #tpu.memory_space<vmem>>, vector<1x112x80xbf16>
    %91 = vector.shape_cast %90 : vector<1x112x80xbf16> to vector<112x80xbf16>
    %cst_70 = arith.constant dense<0.000000e+00> : vector<10x80xf32>
    %92 = tpu.matmul %86, %91, %cst_70 {dimension_numbers = #tpu.dot_dimension_numbers<[1], [0], [0], [1], [0, 0, 1, 1], [], []>} : vector<10x112xbf16>, vector<112x80xbf16>, vector<10x80xf32> -> vector<10x80xf32>
    %93 = arith.addf %82, %89 : vector<10x80xf32>
    %94 = arith.addf %85, %92 : vector<10x80xf32>
    %95 = vector.extract_strided_slice %78 {offsets = [2, 0], sizes = [10, 112], strides = [1, 1]} : vector<14x112xbf16> to vector<10x112xbf16>
    %c2_71 = arith.constant 2 : index
    %c0_72 = arith.constant 0 : index
    %c0_73 = arith.constant 0 : index
    %96 = vector.load %arg5[%c2_71, %c0_72, %c0_73] : memref<5x112x80xbf16, #tpu.memory_space<vmem>>, vector<1x112x80xbf16>
    %97 = vector.shape_cast %96 : vector<1x112x80xbf16> to vector<112x80xbf16>
    %cst_74 = arith.constant dense<0.000000e+00> : vector<10x80xf32>
    %98 = tpu.matmul %95, %97, %cst_74 {dimension_numbers = #tpu.dot_dimension_numbers<[1], [0], [0], [1], [0, 0, 1, 1], [], []>} : vector<10x112xbf16>, vector<112x80xbf16>, vector<10x80xf32> -> vector<10x80xf32>
    %c2_75 = arith.constant 2 : index
    %c0_76 = arith.constant 0 : index
    %c0_77 = arith.constant 0 : index
    %99 = vector.load %arg6[%c2_75, %c0_76, %c0_77] : memref<5x112x80xbf16, #tpu.memory_space<vmem>>, vector<1x112x80xbf16>
    %100 = vector.shape_cast %99 : vector<1x112x80xbf16> to vector<112x80xbf16>
    %cst_78 = arith.constant dense<0.000000e+00> : vector<10x80xf32>
    %101 = tpu.matmul %95, %100, %cst_78 {dimension_numbers = #tpu.dot_dimension_numbers<[1], [0], [0], [1], [0, 0, 1, 1], [], []>} : vector<10x112xbf16>, vector<112x80xbf16>, vector<10x80xf32> -> vector<10x80xf32>
    %102 = arith.addf %93, %98 : vector<10x80xf32>
    %103 = arith.addf %94, %101 : vector<10x80xf32>
    %104 = vector.extract_strided_slice %78 {offsets = [3, 0], sizes = [10, 112], strides = [1, 1]} : vector<14x112xbf16> to vector<10x112xbf16>
    %c3_79 = arith.constant 3 : index
    %c0_80 = arith.constant 0 : index
    %c0_81 = arith.constant 0 : index
    %105 = vector.load %arg5[%c3_79, %c0_80, %c0_81] : memref<5x112x80xbf16, #tpu.memory_space<vmem>>, vector<1x112x80xbf16>
    %106 = vector.shape_cast %105 : vector<1x112x80xbf16> to vector<112x80xbf16>
    %cst_82 = arith.constant dense<0.000000e+00> : vector<10x80xf32>
    %107 = tpu.matmul %104, %106, %cst_82 {dimension_numbers = #tpu.dot_dimension_numbers<[1], [0], [0], [1], [0, 0, 1, 1], [], []>} : vector<10x112xbf16>, vector<112x80xbf16>, vector<10x80xf32> -> vector<10x80xf32>
    %c3_83 = arith.constant 3 : index
    %c0_84 = arith.constant 0 : index
    %c0_85 = arith.constant 0 : index
    %108 = vector.load %arg6[%c3_83, %c0_84, %c0_85] : memref<5x112x80xbf16, #tpu.memory_space<vmem>>, vector<1x112x80xbf16>
    %109 = vector.shape_cast %108 : vector<1x112x80xbf16> to vector<112x80xbf16>
    %cst_86 = arith.constant dense<0.000000e+00> : vector<10x80xf32>
    %110 = tpu.matmul %104, %109, %cst_86 {dimension_numbers = #tpu.dot_dimension_numbers<[1], [0], [0], [1], [0, 0, 1, 1], [], []>} : vector<10x112xbf16>, vector<112x80xbf16>, vector<10x80xf32> -> vector<10x80xf32>
    %111 = arith.addf %102, %107 : vector<10x80xf32>
    %112 = arith.addf %103, %110 : vector<10x80xf32>
    %113 = vector.extract_strided_slice %78 {offsets = [4, 0], sizes = [10, 112], strides = [1, 1]} : vector<14x112xbf16> to vector<10x112xbf16>
    %c4_87 = arith.constant 4 : index
    %c0_88 = arith.constant 0 : index
    %c0_89 = arith.constant 0 : index
    %114 = vector.load %arg5[%c4_87, %c0_88, %c0_89] : memref<5x112x80xbf16, #tpu.memory_space<vmem>>, vector<1x112x80xbf16>
    %115 = vector.shape_cast %114 : vector<1x112x80xbf16> to vector<112x80xbf16>
    %cst_90 = arith.constant dense<0.000000e+00> : vector<10x80xf32>
    %116 = tpu.matmul %113, %115, %cst_90 {dimension_numbers = #tpu.dot_dimension_numbers<[1], [0], [0], [1], [0, 0, 1, 1], [], []>} : vector<10x112xbf16>, vector<112x80xbf16>, vector<10x80xf32> -> vector<10x80xf32>
    %c4_91 = arith.constant 4 : index
    %c0_92 = arith.constant 0 : index
    %c0_93 = arith.constant 0 : index
    %117 = vector.load %arg6[%c4_91, %c0_92, %c0_93] : memref<5x112x80xbf16, #tpu.memory_space<vmem>>, vector<1x112x80xbf16>
    %118 = vector.shape_cast %117 : vector<1x112x80xbf16> to vector<112x80xbf16>
    %cst_94 = arith.constant dense<0.000000e+00> : vector<10x80xf32>
    %119 = tpu.matmul %113, %118, %cst_94 {dimension_numbers = #tpu.dot_dimension_numbers<[1], [0], [0], [1], [0, 0, 1, 1], [], []>} : vector<10x112xbf16>, vector<112x80xbf16>, vector<10x80xf32> -> vector<10x80xf32>
    %120 = arith.addf %111, %116 : vector<10x80xf32>
    %121 = arith.addf %112, %119 : vector<10x80xf32>
    %122 = arith.maximumf %120, %121 : vector<10x80xf32>
    %c0_95 = arith.constant 0 : index
    %c0_96 = arith.constant 0 : index
    %123 = vector.load %arg7[%c0_95, %c0_96] : memref<1x80xf32, #tpu.memory_space<vmem>>, vector<1x80xf32>
    %124 = vector.broadcast %123 : vector<1x80xf32> to vector<10x80xf32>
    %125 = arith.addf %122, %124 : vector<10x80xf32>
    %cst_97 = arith.constant 0.000000e+00 : f32
    %126 = vector.broadcast %cst_97 : f32 to vector<10x80xf32>
    %127 = arith.maximumf %125, %126 : vector<10x80xf32>
    %128 = vector.extract_strided_slice %127 {offsets = [0, 0], sizes = [1, 80], strides = [1, 1]} : vector<10x80xf32> to vector<1x80xf32>
    %129 = vector.extract_strided_slice %127 {offsets = [1, 0], sizes = [1, 80], strides = [1, 1]} : vector<10x80xf32> to vector<1x80xf32>
    %130 = arith.maximumf %128, %129 : vector<1x80xf32>
    %131 = arith.truncf %130 : vector<1x80xf32> to vector<1x80xbf16>
    %c0_98 = arith.constant 0 : index
    %c0_99 = arith.constant 0 : index
    %c0_100 = arith.constant 0 : index
    %132 = vector.load %arg8[%c0_98, %c0_99, %c0_100] : memref<5x80x128xbf16, #tpu.memory_space<vmem>>, vector<1x80x128xbf16>
    %133 = vector.shape_cast %132 : vector<1x80x128xbf16> to vector<80x128xbf16>
    %cst_101 = arith.constant dense<0.000000e+00> : vector<1x128xf32>
    %134 = tpu.matmul %131, %133, %cst_101 {dimension_numbers = #tpu.dot_dimension_numbers<[1], [0], [0], [1], [0, 0, 1, 1], [], []>} : vector<1x80xbf16>, vector<80x128xbf16>, vector<1x128xf32> -> vector<1x128xf32>
    %135 = vector.extract_strided_slice %127 {offsets = [2, 0], sizes = [1, 80], strides = [1, 1]} : vector<10x80xf32> to vector<1x80xf32>
    %136 = vector.extract_strided_slice %127 {offsets = [3, 0], sizes = [1, 80], strides = [1, 1]} : vector<10x80xf32> to vector<1x80xf32>
    %137 = arith.maximumf %135, %136 : vector<1x80xf32>
    %138 = arith.truncf %137 : vector<1x80xf32> to vector<1x80xbf16>
    %c1_102 = arith.constant 1 : index
    %c0_103 = arith.constant 0 : index
    %c0_104 = arith.constant 0 : index
    %139 = vector.load %arg8[%c1_102, %c0_103, %c0_104] : memref<5x80x128xbf16, #tpu.memory_space<vmem>>, vector<1x80x128xbf16>
    %140 = vector.shape_cast %139 : vector<1x80x128xbf16> to vector<80x128xbf16>
    %cst_105 = arith.constant dense<0.000000e+00> : vector<1x128xf32>
    %141 = tpu.matmul %138, %140, %cst_105 {dimension_numbers = #tpu.dot_dimension_numbers<[1], [0], [0], [1], [0, 0, 1, 1], [], []>} : vector<1x80xbf16>, vector<80x128xbf16>, vector<1x128xf32> -> vector<1x128xf32>
    %142 = arith.addf %134, %141 : vector<1x128xf32>
    %143 = vector.extract_strided_slice %127 {offsets = [4, 0], sizes = [1, 80], strides = [1, 1]} : vector<10x80xf32> to vector<1x80xf32>
    %144 = vector.extract_strided_slice %127 {offsets = [5, 0], sizes = [1, 80], strides = [1, 1]} : vector<10x80xf32> to vector<1x80xf32>
    %145 = arith.maximumf %143, %144 : vector<1x80xf32>
    %146 = arith.truncf %145 : vector<1x80xf32> to vector<1x80xbf16>
    %c2_106 = arith.constant 2 : index
    %c0_107 = arith.constant 0 : index
    %c0_108 = arith.constant 0 : index
    %147 = vector.load %arg8[%c2_106, %c0_107, %c0_108] : memref<5x80x128xbf16, #tpu.memory_space<vmem>>, vector<1x80x128xbf16>
    %148 = vector.shape_cast %147 : vector<1x80x128xbf16> to vector<80x128xbf16>
    %cst_109 = arith.constant dense<0.000000e+00> : vector<1x128xf32>
    %149 = tpu.matmul %146, %148, %cst_109 {dimension_numbers = #tpu.dot_dimension_numbers<[1], [0], [0], [1], [0, 0, 1, 1], [], []>} : vector<1x80xbf16>, vector<80x128xbf16>, vector<1x128xf32> -> vector<1x128xf32>
    %150 = arith.addf %142, %149 : vector<1x128xf32>
    %151 = vector.extract_strided_slice %127 {offsets = [6, 0], sizes = [1, 80], strides = [1, 1]} : vector<10x80xf32> to vector<1x80xf32>
    %152 = vector.extract_strided_slice %127 {offsets = [7, 0], sizes = [1, 80], strides = [1, 1]} : vector<10x80xf32> to vector<1x80xf32>
    %153 = arith.maximumf %151, %152 : vector<1x80xf32>
    %154 = arith.truncf %153 : vector<1x80xf32> to vector<1x80xbf16>
    %c3_110 = arith.constant 3 : index
    %c0_111 = arith.constant 0 : index
    %c0_112 = arith.constant 0 : index
    %155 = vector.load %arg8[%c3_110, %c0_111, %c0_112] : memref<5x80x128xbf16, #tpu.memory_space<vmem>>, vector<1x80x128xbf16>
    %156 = vector.shape_cast %155 : vector<1x80x128xbf16> to vector<80x128xbf16>
    %cst_113 = arith.constant dense<0.000000e+00> : vector<1x128xf32>
    %157 = tpu.matmul %154, %156, %cst_113 {dimension_numbers = #tpu.dot_dimension_numbers<[1], [0], [0], [1], [0, 0, 1, 1], [], []>} : vector<1x80xbf16>, vector<80x128xbf16>, vector<1x128xf32> -> vector<1x128xf32>
    %158 = arith.addf %150, %157 : vector<1x128xf32>
    %159 = vector.extract_strided_slice %127 {offsets = [8, 0], sizes = [1, 80], strides = [1, 1]} : vector<10x80xf32> to vector<1x80xf32>
    %160 = vector.extract_strided_slice %127 {offsets = [9, 0], sizes = [1, 80], strides = [1, 1]} : vector<10x80xf32> to vector<1x80xf32>
    %161 = arith.maximumf %159, %160 : vector<1x80xf32>
    %162 = arith.truncf %161 : vector<1x80xf32> to vector<1x80xbf16>
    %c4_114 = arith.constant 4 : index
    %c0_115 = arith.constant 0 : index
    %c0_116 = arith.constant 0 : index
    %163 = vector.load %arg8[%c4_114, %c0_115, %c0_116] : memref<5x80x128xbf16, #tpu.memory_space<vmem>>, vector<1x80x128xbf16>
    %164 = vector.shape_cast %163 : vector<1x80x128xbf16> to vector<80x128xbf16>
    %cst_117 = arith.constant dense<0.000000e+00> : vector<1x128xf32>
    %165 = tpu.matmul %162, %164, %cst_117 {dimension_numbers = #tpu.dot_dimension_numbers<[1], [0], [0], [1], [0, 0, 1, 1], [], []>} : vector<1x80xbf16>, vector<80x128xbf16>, vector<1x128xf32> -> vector<1x128xf32>
    %166 = arith.addf %158, %165 : vector<1x128xf32>
    %c0_118 = arith.constant 0 : index
    %c0_119 = arith.constant 0 : index
    %167 = vector.load %arg9[%c0_118, %c0_119] : memref<1x128xf32, #tpu.memory_space<vmem>>, vector<1x128xf32>
    %168 = arith.addf %166, %167 : vector<1x128xf32>
    %cst_120 = arith.constant 0.000000e+00 : f32
    %169 = vector.broadcast %cst_120 : f32 to vector<1x128xf32>
    %170 = arith.maximumf %168, %169 : vector<1x128xf32>
    %171 = arith.truncf %170 : vector<1x128xf32> to vector<1x128xbf16>
    %c0_121 = arith.constant 0 : index
    %c0_122 = arith.constant 0 : index
    %172 = vector.load %arg10[%c0_121, %c0_122] : memref<128x128xbf16, #tpu.memory_space<vmem>>, vector<128x128xbf16>
    %cst_123 = arith.constant dense<0.000000e+00> : vector<1x128xf32>
    %173 = tpu.matmul %171, %172, %cst_123 {dimension_numbers = #tpu.dot_dimension_numbers<[1], [0], [0], [1], [0, 0, 1, 1], [], []>} : vector<1x128xbf16>, vector<128x128xbf16>, vector<1x128xf32> -> vector<1x128xf32>
    %c0_124 = arith.constant 0 : index
    %c0_125 = arith.constant 0 : index
    %174 = vector.load %arg11[%c0_124, %c0_125] : memref<1x128xf32, #tpu.memory_space<vmem>>, vector<1x128xf32>
    %175 = arith.addf %173, %174 : vector<1x128xf32>
    %cst_126 = arith.constant 0.000000e+00 : f32
    %176 = vector.broadcast %cst_126 : f32 to vector<1x128xf32>
    %177 = arith.maximumf %175, %176 : vector<1x128xf32>
    %178 = arith.truncf %177 : vector<1x128xf32> to vector<1x128xbf16>
    %c0_127 = arith.constant 0 : index
    %c0_128 = arith.constant 0 : index
    %179 = vector.load %arg12[%c0_127, %c0_128] : memref<128x128xbf16, #tpu.memory_space<vmem>>, vector<128x128xbf16>
    %cst_129 = arith.constant dense<0.000000e+00> : vector<1x128xf32>
    %180 = tpu.matmul %178, %179, %cst_129 {dimension_numbers = #tpu.dot_dimension_numbers<[1], [0], [0], [1], [0, 0, 1, 1], [], []>} : vector<1x128xbf16>, vector<128x128xbf16>, vector<1x128xf32> -> vector<1x128xf32>
    %c0_130 = arith.constant 0 : index
    %c0_131 = arith.constant 0 : index
    %181 = vector.load %arg13[%c0_130, %c0_131] : memref<1x128xf32, #tpu.memory_space<vmem>>, vector<1x128xf32>
    %182 = arith.addf %180, %181 : vector<1x128xf32>
    %c0_132 = arith.constant 0 : index
    %c0_133 = arith.constant 0 : index
    %c0_134 = arith.constant 0 : index
    %183 = vector.load %arg14[%c0_132, %c0_133, %c0_134] : memref<1x1x128xf32, #tpu.memory_space<vmem>>, vector<1x1x128xf32>
    %184 = vector.shape_cast %183 : vector<1x1x128xf32> to vector<1x128xf32>
    %185 = vector.shape_cast %182 : vector<1x128xf32> to vector<1x1x128xf32>
    tpu.vector_store %arg14[%c0_132, %c0_133, %c0_134], %185 {strides = array<i32>} : memref<1x1x128xf32, #tpu.memory_space<vmem>>, vector<1x1x128xf32>,
    return
  }
  func.func @transform_0(%arg0: i32) -> (i32, i32, i32, i32) {
    %c0_i32 = arith.constant 0 : i32
    %c0_i32_0 = arith.constant 0 : i32
    %c0_i32_1 = arith.constant 0 : i32
    %c0_i32_2 = arith.constant 0 : i32
    return %arg0, %c0_i32, %c0_i32_0, %c0_i32_1 : i32, i32, i32, i32
  }
  func.func @transform_1(%arg0: i32) -> (i32, i32, i32) {
    %c0_i32 = arith.constant 0 : i32
    %c0_i32_0 = arith.constant 0 : i32
    %c0_i32_1 = arith.constant 0 : i32
    %c0_i32_2 = arith.constant 0 : i32
    return %c0_i32, %c0_i32_0, %c0_i32_1 : i32, i32, i32
  }
  func.func @transform_2(%arg0: i32) -> (i32, i32, i32) {
    %c0_i32 = arith.constant 0 : i32
    %c0_i32_0 = arith.constant 0 : i32
    %c0_i32_1 = arith.constant 0 : i32
    %c0_i32_2 = arith.constant 0 : i32
    return %c0_i32, %c0_i32_0, %c0_i32_1 : i32, i32, i32
  }
  func.func @transform_3(%arg0: i32) -> (i32, i32) {
    %c0_i32 = arith.constant 0 : i32
    %c0_i32_0 = arith.constant 0 : i32
    %c0_i32_1 = arith.constant 0 : i32
    return %c0_i32, %c0_i32_0 : i32, i32
  }
  func.func @transform_4(%arg0: i32) -> (i32, i32, i32) {
    %c0_i32 = arith.constant 0 : i32
    %c0_i32_0 = arith.constant 0 : i32
    %c0_i32_1 = arith.constant 0 : i32
    %c0_i32_2 = arith.constant 0 : i32
    return %c0_i32, %c0_i32_0, %c0_i32_1 : i32, i32, i32
  }
  func.func @transform_5(%arg0: i32) -> (i32, i32, i32) {
    %c0_i32 = arith.constant 0 : i32
    %c0_i32_0 = arith.constant 0 : i32
    %c0_i32_1 = arith.constant 0 : i32
    %c0_i32_2 = arith.constant 0 : i32
    return %c0_i32, %c0_i32_0, %c0_i32_1 : i32, i32, i32
  }
  func.func @transform_6(%arg0: i32) -> (i32, i32) {
    %c0_i32 = arith.constant 0 : i32
    %c0_i32_0 = arith.constant 0 : i32
    %c0_i32_1 = arith.constant 0 : i32
    return %c0_i32, %c0_i32_0 : i32, i32
  }
  func.func @transform_7(%arg0: i32) -> (i32, i32, i32) {
    %c0_i32 = arith.constant 0 : i32
    %c0_i32_0 = arith.constant 0 : i32
    %c0_i32_1 = arith.constant 0 : i32
    %c0_i32_2 = arith.constant 0 : i32
    return %c0_i32, %c0_i32_0, %c0_i32_1 : i32, i32, i32
  }
  func.func @transform_8(%arg0: i32) -> (i32, i32) {
    %c0_i32 = arith.constant 0 : i32
    %c0_i32_0 = arith.constant 0 : i32
    %c0_i32_1 = arith.constant 0 : i32
    return %c0_i32, %c0_i32_0 : i32, i32
  }
  func.func @transform_9(%arg0: i32) -> (i32, i32) {
    %c0_i32 = arith.constant 0 : i32
    %c0_i32_0 = arith.constant 0 : i32
    %c0_i32_1 = arith.constant 0 : i32
    return %c0_i32, %c0_i32_0 : i32, i32
  }
  func.func @transform_10(%arg0: i32) -> (i32, i32) {
    %c0_i32 = arith.constant 0 : i32
    %c0_i32_0 = arith.constant 0 : i32
    %c0_i32_1 = arith.constant 0 : i32
    return %c0_i32, %c0_i32_0 : i32, i32
  }
  func.func @transform_11(%arg0: i32) -> (i32, i32) {
    %c0_i32 = arith.constant 0 : i32
    %c0_i32_0 = arith.constant 0 : i32
    %c0_i32_1 = arith.constant 0 : i32
    return %c0_i32, %c0_i32_0 : i32, i32
  }
  func.func @transform_12(%arg0: i32) -> (i32, i32) {
    %c0_i32 = arith.constant 0 : i32
    %c0_i32_0 = arith.constant 0 : i32
    %c0_i32_1 = arith.constant 0 : i32
    return %c0_i32, %c0_i32_0 : i32, i32
  }
  func.func @transform_13(%arg0: i32) -> (i32, i32, i32) {
    %c0_i32 = arith.constant 0 : i32
    %c0_i32_0 = arith.constant 0 : i32
    %c0_i32_1 = arith.constant 0 : i32
    return %arg0, %c0_i32, %c0_i32_0 : i32, i32, i32
  }
}

</mosaic_0001>

<llo_original>
// kernel: net_forward.1
$region0: #{net_forward.1}
  #allocation0 [shape = 'u32[]', space=smem, size = 0x4, offset = 0x4, fixed_abs, tag = 'smem constant byte address 0x4 - core index']
  #allocation1 [shape = 'u32[144,128]{1,0:T(1,128)}', space=vmem, size = 0x12000, scoped, tag = 'internal scratch']
  %s0 = inlined_call_operand.vmem [shape: bf16[2,2,16,128], index: 0, kind: input, shape index: {}]
  %s1 = inlined_call_operand.vmem [shape: bf16[5,128,112], index: 1, kind: input, shape index: {}]
  %s2 = inlined_call_operand.vmem [shape: bf16[5,128,112], index: 2, kind: input, shape index: {}]
  %s3 = inlined_call_operand.vmem [shape: f32[1,112], index: 3, kind: input, shape index: {}]
  %s4 = inlined_call_operand.vmem [shape: bf16[5,112,80], index: 4, kind: input, shape index: {}]
  %s5 = inlined_call_operand.vmem [shape: bf16[5,112,80], index: 5, kind: input, shape index: {}]
  %s6 = inlined_call_operand.vmem [shape: f32[1,80], index: 6, kind: input, shape index: {}]
  %s7 = inlined_call_operand.vmem [shape: bf16[5,80,128], index: 7, kind: input, shape index: {}]
  %s8 = inlined_call_operand.vmem [shape: f32[1,128], index: 8, kind: input, shape index: {}]
  %s9 = inlined_call_operand.vmem [shape: bf16[128,128], index: 9, kind: input, shape index: {}]
  %s10 = inlined_call_operand.vmem [shape: f32[1,128], index: 10, kind: input, shape index: {}]
  %s11 = inlined_call_operand.vmem [shape: bf16[128,128], index: 11, kind: input, shape index: {}]
  %s12 = inlined_call_operand.vmem [shape: f32[1,128], index: 12, kind: input, shape index: {}]
  %s13 = inlined_call_operand.hbm [shape: f32[2,1,128], index: 13, kind: output, shape index: {}]
  %s14 = sld [smem:[#allocation0]]
  $region85: #{net_forward.1} parent=0
    _
  %s16 = ssub.s32 1, %s14
  %s17 = scalar_select 0, %s16, %s14
  $region1: #{net_forward.1} parent=0
    #allocation2 [shape = 'u8[1024]{0}', space=vmem, size = 0x400, scoped, tag = 'output window, operand 0']
    #allocation3 [shape = 's32[2]{0}', space=sflag, size = 0x8, scoped, tag = 'scoped memory for net_forward.1']
    %18 = vsyncpa [#allocation3], 0
    %s19 = scalar_lea.sflag [#allocation3], 1
    %20 = vsyncpa %s19, 0
    loop: start=0, step=1, limit=4
    $region2: #{net_forward.1} parent=1 // loop_pre_header
      _
    $region3: #{net_forward.1} parent=1 // loop_header
      %s22 = sphi 0, %s26
      %p23 = scmp.ge.s32.totalorder %s22, 4
      %s32 = sphi 0, %s34
      %s35 = sphi 0, %s32
      %s36 = sphi 0, %s35
      %s52 = sphi 0, %s36
      %s56 = sphi 0, %s56
      %s58 = sphi 0, %s56
      %s59 = sphi 0, %s58
      %s73 = sphi 0, %s59
      %s77 = sphi 0, %s77
      %s79 = sphi 0, %s77
      %s80 = sphi 0, %s79
      %s94 = sphi 0, %s80
      %s98 = sphi 0, %s98
      %s100 = sphi 0, %s98
      %s101 = sphi 0, %s100
      %s115 = sphi 0, %s101
      %s119 = sphi 0, %s119
      %s121 = sphi 0, %s119
      %s122 = sphi 0, %s121
      %s136 = sphi 0, %s122
      %s140 = sphi 0, %s140
      %s142 = sphi 0, %s140
      %s143 = sphi 0, %s142
      %s157 = sphi 0, %s143
      %s161 = sphi 0, %s161
      %s163 = sphi 0, %s161
      %s164 = sphi 0, %s163
      %s178 = sphi 0, %s164
      %s182 = sphi 0, %s182
      %s184 = sphi 0, %s182
      %s185 = sphi 0, %s184
      %s199 = sphi 0, %s185
      %s203 = sphi 0, %s203
      %s205 = sphi 0, %s203
      %s206 = sphi 0, %s205
      %s220 = sphi 0, %s206
      %s224 = sphi 0, %s224
      %s226 = sphi 0, %s224
      %s227 = sphi 0, %s226
      %s241 = sphi 0, %s227
      %s245 = sphi 0, %s245
      %s247 = sphi 0, %s245
      %s248 = sphi 0, %s247
      %s262 = sphi 0, %s248
      %s266 = sphi 0, %s266
      %s268 = sphi 0, %s266
      %s269 = sphi 0, %s268
      %s283 = sphi 0, %s269
      %s287 = sphi 0, %s287
      %s289 = sphi 0, %s287
      %s290 = sphi 0, %s289
      %s304 = sphi 0, %s290
      %s310 = sphi 0, %s312
      %s313 = sphi 0, %s310
      %s314 = sphi 0, %s313
      %s330 = sphi 0, %s314
    $region4: #{net_forward.1} parent=1 // loop_header_branch
      %25 = sbr.rel (%p23) target = $region8
    $region5: #{net_forward.1} parent=1 // loop_body
      %s27 = ssub.s32 %s22, 1
      %s28 = ssub.s32 %s22, 2
      %s29 = sadd.s32 %s22, 1
      %s30 = ssub.s32 %s22, %s29
      %p31 = scmp.eq.s32.totalorder %s30, 0
      %s33 = sadd.s32 %s32, 1
      %s34 = scalar_select %p31, %s32, %s33
      %p37 = pneg %p31
      %p38 = scmp.eq.s32.totalorder %s22, 1
      %p39 = por %p37, %p38
      %p40 = scmp.ne.s32.totalorder %s32, %s35
      %p41 = scmp.eq.s32.totalorder %s22, 0
      %p42 = por %p40, %p41
      %p43 = scmp.ne.s32.totalorder %s32, %s35
      %p44 = scmp.eq.s32.totalorder %s27, 1
      %p45 = por %p43, %p44
      %p46 = scmp.ne.s32.totalorder %s35, %s36
      %p47 = scmp.eq.s32.totalorder %s27, 0
      %p48 = por %p46, %p47
      %p49 = scmp.ne.s32.totalorder %s35, %s36
      %p50 = scmp.eq.s32.totalorder %s28, 1
      %p51 = por %p49, %p50
      %p53 = scmp.ne.s32.totalorder %s36, %s52
      %p54 = scmp.eq.s32.totalorder %s28, 0
      %p55 = por %p53, %p54
      %s57 = sadd.s32 %s56, 1
      %p60 = scmp.eq.s32.totalorder %s22, 1
      %p61 = scmp.ne.s32.totalorder %s56, %s58
      %p62 = scmp.eq.s32.totalorder %s22, 0
      %p63 = por %p61, %p62
      %p64 = scmp.ne.s32.totalorder %s56, %s58
      %p65 = scmp.eq.s32.totalorder %s27, 1
      %p66 = por %p64, %p65
      %p67 = scmp.ne.s32.totalorder %s58, %s59
      %p68 = scmp.eq.s32.totalorder %s27, 0
      %p69 = por %p67, %p68
      %p70 = scmp.ne.s32.totalorder %s58, %s59
      %p71 = scmp.eq.s32.totalorder %s28, 1
      %p72 = por %p70, %p71
      %p74 = scmp.ne.s32.totalorder %s59, %s73
      %p75 = scmp.eq.s32.totalorder %s28, 0
      %p76 = por %p74, %p75
      %s78 = sadd.s32 %s77, 1
      %p81 = scmp.eq.s32.totalorder %s22, 1
      %p82 = scmp.ne.s32.totalorder %s77, %s79
      %p83 = scmp.eq.s32.totalorder %s22, 0
      %p84 = por %p82, %p83
      %p85 = scmp.ne.s32.totalorder %s77, %s79
      %p86 = scmp.eq.s32.totalorder %s27, 1
      %p87 = por %p85, %p86
      %p88 = scmp.ne.s32.totalorder %s79, %s80
      %p89 = scmp.eq.s32.totalorder %s27, 0
      %p90 = por %p88, %p89
      %p91 = scmp.ne.s32.totalorder %s79, %s80
      %p92 = scmp.eq.s32.totalorder %s28, 1
      %p93 = por %p91, %p92
      %p95 = scmp.ne.s32.totalorder %s80, %s94
      %p96 = scmp.eq.s32.totalorder %s28, 0
      %p97 = por %p95, %p96
      %s99 = sadd.s32 %s98, 1
      %p102 = scmp.eq.s32.totalorder %s22, 1
      %p103 = scmp.ne.s32.totalorder %s98, %s100
      %p104 = scmp.eq.s32.totalorder %s22, 0
      %p105 = por %p103, %p104
      %p106 = scmp.ne.s32.totalorder %s98, %s100
      %p107 = scmp.eq.s32.totalorder %s27, 1
      %p108 = por %p106, %p107
      %p109 = scmp.ne.s32.totalorder %s100, %s101
      %p110 = scmp.eq.s32.totalorder %s27, 0
      %p111 = por %p109, %p110
      %p112 = scmp.ne.s32.totalorder %s100, %s101
      %p113 = scmp.eq.s32.totalorder %s28, 1
      %p114 = por %p112, %p113
      %p116 = scmp.ne.s32.totalorder %s101, %s115
      %p117 = scmp.eq.s32.totalorder %s28, 0
      %p118 = por %p116, %p117
      %s120 = sadd.s32 %s119, 1
      %p123 = scmp.eq.s32.totalorder %s22, 1
      %p124 = scmp.ne.s32.totalorder %s119, %s121
      %p125 = scmp.eq.s32.totalorder %s22, 0
      %p126 = por %p124, %p125
      %p127 = scmp.ne.s32.totalorder %s119, %s121
      %p128 = scmp.eq.s32.totalorder %s27, 1
      %p129 = por %p127, %p128
      %p130 = scmp.ne.s32.totalorder %s121, %s122
      %p131 = scmp.eq.s32.totalorder %s27, 0
      %p132 = por %p130, %p131
      %p133 = scmp.ne.s32.totalorder %s121, %s122
      %p134 = scmp.eq.s32.totalorder %s28, 1
      %p135 = por %p133, %p134
      %p137 = scmp.ne.s32.totalorder %s122, %s136
      %p138 = scmp.eq.s32.totalorder %s28, 0
      %p139 = por %p137, %p138
      %s141 = sadd.s32 %s140, 1
      %p144 = scmp.eq.s32.totalorder %s22, 1
      %p145 = scmp.ne.s32.totalorder %s140, %s142
      %p146 = scmp.eq.s32.totalorder %s22, 0
      %p147 = por %p145, %p146
      %p148 = scmp.ne.s32.totalorder %s140, %s142
      %p149 = scmp.eq.s32.totalorder %s27, 1
      %p150 = por %p148, %p149
      %p151 = scmp.ne.s32.totalorder %s142, %s143
      %p152 = scmp.eq.s32.totalorder %s27, 0
      %p153 = por %p151, %p152
      %p154 = scmp.ne.s32.totalorder %s142, %s143
      %p155 = scmp.eq.s32.totalorder %s28, 1
      %p156 = por %p154, %p155
      %p158 = scmp.ne.s32.totalorder %s143, %s157
      %p159 = scmp.eq.s32.totalorder %s28, 0
      %p160 = por %p158, %p159
      %s162 = sadd.s32 %s161, 1
      %p165 = scmp.eq.s32.totalorder %s22, 1
      %p166 = scmp.ne.s32.totalorder %s161, %s163
      %p167 = scmp.eq.s32.totalorder %s22, 0
      %p168 = por %p166, %p167
      %p169 = scmp.ne.s32.totalorder %s161, %s163
      %p170 = scmp.eq.s32.totalorder %s27, 1
      %p171 = por %p169, %p170
      %p172 = scmp.ne.s32.totalorder %s163, %s164
      %p173 = scmp.eq.s32.totalorder %s27, 0
      %p174 = por %p172, %p173
      %p175 = scmp.ne.s32.totalorder %s163, %s164
      %p176 = scmp.eq.s32.totalorder %s28, 1
      %p177 = por %p175, %p176
      %p179 = scmp.ne.s32.totalorder %s164, %s178
      %p180 = scmp.eq.s32.totalorder %s28, 0
      %p181 = por %p179, %p180
      %s183 = sadd.s32 %s182, 1
      %p186 = scmp.eq.s32.totalorder %s22, 1
      %p187 = scmp.ne.s32.totalorder %s182, %s184
      %p188 = scmp.eq.s32.totalorder %s22, 0
      %p189 = por %p187, %p188
      %p190 = scmp.ne.s32.totalorder %s182, %s184
      %p191 = scmp.eq.s32.totalorder %s27, 1
      %p192 = por %p190, %p191
      %p193 = scmp.ne.s32.totalorder %s184, %s185
      %p194 = scmp.eq.s32.totalorder %s27, 0
      %p195 = por %p193, %p194
      %p196 = scmp.ne.s32.totalorder %s184, %s185
      %p197 = scmp.eq.s32.totalorder %s28, 1
      %p198 = por %p196, %p197
      %p200 = scmp.ne.s32.totalorder %s185, %s199
      %p201 = scmp.eq.s32.totalorder %s28, 0
      %p202 = por %p200, %p201
      %s204 = sadd.s32 %s203, 1
      %p207 = scmp.eq.s32.totalorder %s22, 1
      %p208 = scmp.ne.s32.totalorder %s203, %s205
      %p209 = scmp.eq.s32.totalorder %s22, 0
      %p210 = por %p208, %p209
      %p211 = scmp.ne.s32.totalorder %s203, %s205
      %p212 = scmp.eq.s32.totalorder %s27, 1
      %p213 = por %p211, %p212
      %p214 = scmp.ne.s32.totalorder %s205, %s206
      %p215 = scmp.eq.s32.totalorder %s27, 0
      %p216 = por %p214, %p215
      %p217 = scmp.ne.s32.totalorder %s205, %s206
      %p218 = scmp.eq.s32.totalorder %s28, 1
      %p219 = por %p217, %p218
      %p221 = scmp.ne.s32.totalorder %s206, %s220
      %p222 = scmp.eq.s32.totalorder %s28, 0
      %p223 = por %p221, %p222
      %s225 = sadd.s32 %s224, 1
      %p228 = scmp.eq.s32.totalorder %s22, 1
      %p229 = scmp.ne.s32.totalorder %s224, %s226
      %p230 = scmp.eq.s32.totalorder %s22, 0
      %p231 = por %p229, %p230
      %p232 = scmp.ne.s32.totalorder %s224, %s226
      %p233 = scmp.eq.s32.totalorder %s27, 1
      %p234 = por %p232, %p233
      %p235 = scmp.ne.s32.totalorder %s226, %s227
      %p236 = scmp.eq.s32.totalorder %s27, 0
      %p237 = por %p235, %p236
      %p238 = scmp.ne.s32.totalorder %s226, %s227
      %p239 = scmp.eq.s32.totalorder %s28, 1
      %p240 = por %p238, %p239
      %p242 = scmp.ne.s32.totalorder %s227, %s241
      %p243 = scmp.eq.s32.totalorder %s28, 0
      %p244 = por %p242, %p243
      %s246 = sadd.s32 %s245, 1
      %p249 = scmp.eq.s32.totalorder %s22, 1
      %p250 = scmp.ne.s32.totalorder %s245, %s247
      %p251 = scmp.eq.s32.totalorder %s22, 0
      %p252 = por %p250, %p251
      %p253 = scmp.ne.s32.totalorder %s245, %s247
      %p254 = scmp.eq.s32.totalorder %s27, 1
      %p255 = por %p253, %p254
      %p256 = scmp.ne.s32.totalorder %s247, %s248
      %p257 = scmp.eq.s32.totalorder %s27, 0
      %p258 = por %p256, %p257
      %p259 = scmp.ne.s32.totalorder %s247, %s248
      %p260 = scmp.eq.s32.totalorder %s28, 1
      %p261 = por %p259, %p260
      %p263 = scmp.ne.s32.totalorder %s248, %s262
      %p264 = scmp.eq.s32.totalorder %s28, 0
      %p265 = por %p263, %p264
      %s267 = sadd.s32 %s266, 1
      %p270 = scmp.eq.s32.totalorder %s22, 1
      %p271 = scmp.ne.s32.totalorder %s266, %s268
      %p272 = scmp.eq.s32.totalorder %s22, 0
      %p273 = por %p271, %p272
      %p274 = scmp.ne.s32.totalorder %s266, %s268
      %p275 = scmp.eq.s32.totalorder %s27, 1
      %p276 = por %p274, %p275
      %p277 = scmp.ne.s32.totalorder %s268, %s269
      %p278 = scmp.eq.s32.totalorder %s27, 0
      %p279 = por %p277, %p278
      %p280 = scmp.ne.s32.totalorder %s268, %s269
      %p281 = scmp.eq.s32.totalorder %s28, 1
      %p282 = por %p280, %p281
      %p284 = scmp.ne.s32.totalorder %s269, %s283
      %p285 = scmp.eq.s32.totalorder %s28, 0
      %p286 = por %p284, %p285
      %s288 = sadd.s32 %s287, 1
      %p291 = scmp.eq.s32.totalorder %s22, 1
      %p292 = scmp.ne.s32.totalorder %s287, %s289
      %p293 = scmp.eq.s32.totalorder %s22, 0
      %p294 = por %p292, %p293
      %p295 = scmp.ne.s32.totalorder %s287, %s289
      %p296 = scmp.eq.s32.totalorder %s27, 1
      %p297 = por %p295, %p296
      %p298 = scmp.ne.s32.totalorder %s289, %s290
      %p299 = scmp.eq.s32.totalorder %s27, 0
      %p300 = por %p298, %p299
      %p301 = scmp.ne.s32.totalorder %s289, %s290
      %p302 = scmp.eq.s32.totalorder %s28, 1
      %p303 = por %p301, %p302
      %p305 = scmp.ne.s32.totalorder %s290, %s304
      %p306 = scmp.eq.s32.totalorder %s28, 0
      %p307 = por %p305, %p306
      %s308 = ssub.s32 %s22, %s29
      %p309 = scmp.eq.s32.totalorder %s308, 0
      %s311 = sadd.s32 %s310, 1
      %s312 = scalar_select %p309, %s310, %s311
      %p315 = pneg %p309
      %p316 = scmp.eq.s32.totalorder %s22, 1
      %p317 = por %p315, %p316
      %p318 = scmp.ne.s32.totalorder %s310, %s313
      %p319 = scmp.eq.s32.totalorder %s22, 0
      %p320 = por %p318, %p319
      %p321 = scmp.ne.s32.totalorder %s310, %s313
      %p322 = scmp.eq.s32.totalorder %s27, 1
      %p323 = por %p321, %p322
      %p324 = scmp.ne.s32.totalorder %s313, %s314
      %p325 = scmp.eq.s32.totalorder %s27, 0
      %p326 = por %p324, %p325
      %p327 = scmp.ne.s32.totalorder %s313, %s314
      %p328 = scmp.eq.s32.totalorder %s28, 1
      %p329 = por %p327, %p328
      %p331 = scmp.ne.s32.totalorder %s314, %s330
      %p332 = scmp.eq.s32.totalorder %s28, 0
      %p333 = por %p331, %p332
      %p334 = scmp.le.s32.totalorder 1, %s22
      %p335 = scmp.lt.s32.totalorder %s22, 3
      %p336 = pnand %p334, %p335
      %p337 = pneg %p336
      // Predicated region
      $region9: #{net_forward.1} parent=5 // pred_check
        _
      $region10: #{net_forward.1} parent=5 // pred_check_branch
        %339 = sbr.rel (%p336) target = $region12
      $region11: #{net_forward.1} parent=5 // pred_region
        %s340 = ssub.s32 %s22, 1
        // Predicated region
        $region13: #{net_forward.1} parent=11 // pred_check
          %p341 = pneg %p69
        $region14: #{net_forward.1} parent=11 // pred_check_branch
          %343 = sbr.rel (%p341) target = $region16
        $region15: #{net_forward.1} parent=11 // pred_region
          _
        $region16: #{net_forward.1} parent=11 // pred_fallthru
          _
        // Predicated region
        $region17: #{net_forward.1} parent=11 // pred_check
          %p344 = pneg %p90
        $region18: #{net_forward.1} parent=11 // pred_check_branch
          %346 = sbr.rel (%p344) target = $region20
        $region19: #{net_forward.1} parent=11 // pred_region
          _
        $region20: #{net_forward.1} parent=11 // pred_fallthru
          _
        // Predicated region
        $region21: #{net_forward.1} parent=11 // pred_check
          %p347 = pneg %p111
        $region22: #{net_forward.1} parent=11 // pred_check_branch
          %349 = sbr.rel (%p347) target = $region24
        $region23: #{net_forward.1} parent=11 // pred_region
          _
        $region24: #{net_forward.1} parent=11 // pred_fallthru
          _
        // Predicated region
        $region25: #{net_forward.1} parent=11 // pred_check
          %p350 = pneg %p132
        $region26: #{net_forward.1} parent=11 // pred_check_branch
          %352 = sbr.rel (%p350) target = $region28
        $region27: #{net_forward.1} parent=11 // pred_region
          _
        $region28: #{net_forward.1} parent=11 // pred_fallthru
          _
        // Predicated region
        $region29: #{net_forward.1} parent=11 // pred_check
          %p353 = pneg %p153
        $region30: #{net_forward.1} parent=11 // pred_check_branch
          %355 = sbr.rel (%p353) target = $region32
        $region31: #{net_forward.1} parent=11 // pred_region
          _
        $region32: #{net_forward.1} parent=11 // pred_fallthru
          _
        // Predicated region
        $region33: #{net_forward.1} parent=11 // pred_check
          %p356 = pneg %p174
        $region34: #{net_forward.1} parent=11 // pred_check_branch
          %358 = sbr.rel (%p356) target = $region36
        $region35: #{net_forward.1} parent=11 // pred_region
          _
        $region36: #{net_forward.1} parent=11 // pred_fallthru
          _
        // Predicated region
        $region37: #{net_forward.1} parent=11 // pred_check
          %p359 = pneg %p195
        $region38: #{net_forward.1} parent=11 // pred_check_branch
          %361 = sbr.rel (%p359) target = $region40
        $region39: #{net_forward.1} parent=11 // pred_region
          _
        $region40: #{net_forward.1} parent=11 // pred_fallthru
          _
        // Predicated region
        $region41: #{net_forward.1} parent=11 // pred_check
          %p362 = pneg %p216
        $region42: #{net_forward.1} parent=11 // pred_check_branch
          %364 = sbr.rel (%p362) target = $region44
        $region43: #{net_forward.1} parent=11 // pred_region
          _
        $region44: #{net_forward.1} parent=11 // pred_fallthru
          _
        // Predicated region
        $region45: #{net_forward.1} parent=11 // pred_check
          %p365 = pneg %p237
        $region46: #{net_forward.1} parent=11 // pred_check_branch
          %367 = sbr.rel (%p365) target = $region48
        $region47: #{net_forward.1} parent=11 // pred_region
          _
        $region48: #{net_forward.1} parent=11 // pred_fallthru
          _
        // Predicated region
        $region49: #{net_forward.1} parent=11 // pred_check
          %p368 = pneg %p258
        $region50: #{net_forward.1} parent=11 // pred_check_branch
          %370 = sbr.rel (%p368) target = $region52
        $region51: #{net_forward.1} parent=11 // pred_region
          _
        $region52: #{net_forward.1} parent=11 // pred_fallthru
          _
        // Predicated region
        $region53: #{net_forward.1} parent=11 // pred_check
          %p371 = pneg %p279
        $region54: #{net_forward.1} parent=11 // pred_check_branch
          %373 = sbr.rel (%p371) target = $region56
        $region55: #{net_forward.1} parent=11 // pred_region
          _
        $region56: #{net_forward.1} parent=11 // pred_fallthru
          _
        // Predicated region
        $region57: #{net_forward.1} parent=11 // pred_check
          %p374 = pneg %p300
        $region58: #{net_forward.1} parent=11 // pred_check_branch
          %376 = sbr.rel (%p374) target = $region60
        $region59: #{net_forward.1} parent=11 // pred_region
          _
        $region60: #{net_forward.1} parent=11 // pred_fallthru
          _
      $region12: #{net_forward.1} parent=5 // pred_fallthru
        _
      %p377 = scmp.lt.s32.totalorder %s22, 2
      // Predicated region
      $region61: #{net_forward.1} parent=5 // pred_check
        %p378 = pneg %p377
      $region62: #{net_forward.1} parent=5 // pred_check_branch
        %380 = sbr.rel (%p378) target = $region64
      $region63: #{net_forward.1} parent=5 // pred_region
        // Predicated region
        $region65: #{net_forward.1} parent=63 // pred_check
          %p381 = pneg %p42
        $region66: #{net_forward.1} parent=63 // pred_check_branch
          %383 = sbr.rel (%p381) target = $region68
        $region67: #{net_forward.1} parent=63 // pred_region
          %p384 = scmp.lt.s32.totalorder %s22, 1
          %s385 = scalar_select %p384, %s22, 1
          %s386 = smul.addr %s385, 4
          %s387 = smul.addr %s386, 4
          %s388 = scalar_lea.vmem %s0, %s387
        $region68: #{net_forward.1} parent=63 // pred_fallthru
          _
      $region64: #{net_forward.1} parent=5 // pred_fallthru
        _
      %p389 = scmp.le.s32.totalorder 1, %s22
      %p390 = scmp.lt.s32.totalorder %s22, 3
      %p391 = pnand %p389, %p390
      %p392 = pneg %p391
      // Predicated region
      $region69: #{net_forward.1} parent=5 // pred_check
        _
      $region70: #{net_forward.1} parent=5 // pred_check_branch
        %394 = sbr.rel (%p391) target = $region72
      $region71: #{net_forward.1} parent=5 // pred_region
        %s395 = ssub.s32 %s22, 1
        %p396 = scmp.lt.s32.totalorder %s27, 1
        %s397 = scalar_select %p396, %s27, 1
        %s398 = smul.addr %s397, 4
        %s399 = smul.addr %s398, 4
        %s400 = scalar_lea.vmem %s0, %s399
        %p401 = pneg %p48
        %p402 = pneg %p45
        %p403 = pneg %p69
        %p404 = pneg %p66
        %p405 = pneg %p90
        %p406 = pneg %p87
        %p407 = pneg %p111
        %p408 = pneg %p108
        %p409 = pneg %p132
        %p410 = pneg %p129
        %p411 = pneg %p153
        %p412 = pneg %p150
        %p413 = pneg %p174
        %p414 = pneg %p171
        %p415 = pneg %p195
        %p416 = pneg %p192
        %p417 = pneg %p216
        %p418 = pneg %p213
        %p419 = pneg %p237
        %p420 = pneg %p234
        %p421 = pneg %p258
        %p422 = pneg %p255
        %p423 = pneg %p279
        %p424 = pneg %p276
        %p425 = pneg %p300
        %p426 = pneg %p297
        %p427 = pneg %p326
        %p428 = pneg %p323
        %s429 = sand.u32 %s313, 1
        %s430 = scalar_lea.sflag [#allocation3], %s429
        %s431 = sand.u32 %s313, 1
        %s432 = scalar_lea.vmem [#allocation2], %s431
        %p433 = scmp.lt.s32.totalorder %s27, 1
        %s434 = scalar_select %p433, %s27, 1
        %s435 = smul.addr %s434, 4
        %s436 = smul.addr %s435, 4
        %s437 = scalar_lea.vmem %s0, %s436
        %v439 = vld [vmem:[%s437] sm:$0xf]
        %v440 = vld [vmem:[%s437 + $0x4] sm:$0xf]
        %s441 = scalar_lea.vmem %s437, 8
        %v442 = vld [vmem:[%s441] sm:$0xf]
        %v443 = vld [vmem:[%s441 + $0x4] sm:$0xf]
        %v444 = vld [vmem:[%s1] sm:$0xf]
        %v445 = vld [vmem:[%s1 + $0x4] sm:$0xf]
        %v446 = vld [vmem:[%s1 + $0x8] sm:$0xf]
        %v447 = vld [vmem:[%s1 + $0xc] sm:$0xf]
        %v448 = vld [vmem:[%s1 + $0x10] sm:$0xf]
        %v449 = vld [vmem:[%s1 + $0x14] sm:$0xf]
        %v450 = vld [vmem:[%s1 + $0x18] sm:$0xf]
        %v451 = vld [vmem:[%s1 + $0x1c] sm:$0xf]
        %v452 = vld [vmem:[%s1 + $0x20] sm:$0xf]
        %v453 = vld [vmem:[%s1 + $0x24] sm:$0xf]
        %v454 = vld [vmem:[%s1 + $0x28] sm:$0xf]
        %v455 = vld [vmem:[%s1 + $0x2c] sm:$0xf]
        %v456 = vld [vmem:[%s1 + $0x30] sm:$0xf]
        %v457 = vld [vmem:[%s1 + $0x34] sm:$0xf]
        %v458 = vld [vmem:[%s1 + $0x38] sm:$0xf]
        %v459 = vld [vmem:[%s1 + $0x3c] sm:$0xf]
        %v460 = vld [vmem:[%s2] sm:$0xf]
        %v461 = vld [vmem:[%s2 + $0x4] sm:$0xf]
        %v462 = vld [vmem:[%s2 + $0x8] sm:$0xf]
        %v463 = vld [vmem:[%s2 + $0xc] sm:$0xf]
        %v464 = vld [vmem:[%s2 + $0x10] sm:$0xf]
        %v465 = vld [vmem:[%s2 + $0x14] sm:$0xf]
        %v466 = vld [vmem:[%s2 + $0x18] sm:$0xf]
        %v467 = vld [vmem:[%s2 + $0x1c] sm:$0xf]
        %v468 = vld [vmem:[%s2 + $0x20] sm:$0xf]
        %v469 = vld [vmem:[%s2 + $0x24] sm:$0xf]
        %v470 = vld [vmem:[%s2 + $0x28] sm:$0xf]
        %v471 = vld [vmem:[%s2 + $0x2c] sm:$0xf]
        %v472 = vld [vmem:[%s2 + $0x30] sm:$0xf]
        %v473 = vld [vmem:[%s2 + $0x34] sm:$0xf]
        %v474 = vld [vmem:[%s2 + $0x38] sm:$0xf]
        %v475 = vld [vmem:[%s2 + $0x3c] sm:$0xf]
        %s476 = scalar_lea.vmem %s1, 64
        %v477 = vld [vmem:[%s476] sm:$0xf]
        %v478 = vld [vmem:[%s476 + $0x4] sm:$0xf]
        %v479 = vld [vmem:[%s476 + $0x8] sm:$0xf]
        %v480 = vld [vmem:[%s476 + $0xc] sm:$0xf]
        %v481 = vld [vmem:[%s476 + $0x10] sm:$0xf]
        %v482 = vld [vmem:[%s476 + $0x14] sm:$0xf]
        %v483 = vld [vmem:[%s476 + $0x18] sm:$0xf]
        %v484 = vld [vmem:[%s476 + $0x1c] sm:$0xf]
        %v485 = vld [vmem:[%s476 + $0x20] sm:$0xf]
        %v486 = vld [vmem:[%s476 + $0x24] sm:$0xf]
        %v487 = vld [vmem:[%s476 + $0x28] sm:$0xf]
        %v488 = vld [vmem:[%s476 + $0x2c] sm:$0xf]
        %v489 = vld [vmem:[%s476 + $0x30] sm:$0xf]
        %v490 = vld [vmem:[%s476 + $0x34] sm:$0xf]
        %v491 = vld [vmem:[%s476 + $0x38] sm:$0xf]
        %v492 = vld [vmem:[%s476 + $0x3c] sm:$0xf]
        %s493 = scalar_lea.vmem %s2, 64
        %v494 = vld [vmem:[%s493] sm:$0xf]
        %v495 = vld [vmem:[%s493 + $0x4] sm:$0xf]
        %v496 = vld [vmem:[%s493 + $0x8] sm:$0xf]
        %v497 = vld [vmem:[%s493 + $0xc] sm:$0xf]
        %v498 = vld [vmem:[%s493 + $0x10] sm:$0xf]
        %v499 = vld [vmem:[%s493 + $0x14] sm:$0xf]
        %v500 = vld [vmem:[%s493 + $0x18] sm:$0xf]
        %v501 = vld [vmem:[%s493 + $0x1c] sm:$0xf]
        %v502 = vld [vmem:[%s493 + $0x20] sm:$0xf]
        %v503 = vld [vmem:[%s493 + $0x24] sm:$0xf]
        %v504 = vld [vmem:[%s493 + $0x28] sm:$0xf]
        %v505 = vld [vmem:[%s493 + $0x2c] sm:$0xf]
        %v506 = vld [vmem:[%s493 + $0x30] sm:$0xf]
        %v507 = vld [vmem:[%s493 + $0x34] sm:$0xf]
        %v508 = vld [vmem:[%s493 + $0x38] sm:$0xf]
        %v509 = vld [vmem:[%s493 + $0x3c] sm:$0xf]
        %v512 = vunpack.c.l.b16 %v442
        %v513 = vunpack.c.l.b16 %v443
        %v514 = vpack.c.b16 %v513, %v512
        %v532 = vunpack.c.l.b16 %v477
        %v533 = vunpack.c.l.b16 %v478
        %v534 = vunpack.c.l.b16 %v479
        %v535 = vunpack.c.l.b16 %v480
        %v536 = vunpack.c.l.b16 %v481
        %v537 = vunpack.c.l.b16 %v482
        %v538 = vunpack.c.l.b16 %v483
        %v539 = vunpack.c.l.b16 %v484
        %v540 = vunpack.c.l.b16 %v485
        %v541 = vunpack.c.l.b16 %v486
        %v542 = vunpack.c.l.b16 %v487
        %v543 = vunpack.c.l.b16 %v488
        %v544 = vunpack.c.l.b16 %v489
        %v545 = vunpack.c.l.b16 %v490
        %v546 = vunpack.c.l.b16 %v491
        %v547 = vunpack.c.l.b16 %v492
        %v548 = vpack.c.b16 %v533, %v532
        %v549 = vpack.c.b16 %v535, %v534
        %v550 = vpack.c.b16 %v537, %v536
        %v551 = vpack.c.b16 %v539, %v538
        %v552 = vpack.c.b16 %v541, %v540
        %v553 = vpack.c.b16 %v543, %v542
        %v554 = vpack.c.b16 %v545, %v544
        %v555 = vpack.c.b16 %v547, %v546
        %564 = vmatprep.subr.bf16.mxu0 0
        %565 = vmatpush1.bf16.msra.mxu0 %v555
        %566 = vmatprep.subr.bf16.mxu0 0
        %567 = vmatpush1.bf16.msra.mxu0 %v554
        %568 = vmatprep.subr.bf16.mxu0 0
        %569 = vmatpush1.bf16.msra.mxu0 %v553
        %570 = vmatprep.subr.bf16.mxu0 0
        %571 = vmatpush1.bf16.msra.mxu0 %v552
        %572 = vmatprep.subr.bf16.mxu0 0
        %573 = vmatpush1.bf16.msra.mxu0 %v551
        %574 = vmatprep.subr.bf16.mxu0 0
        %575 = vmatpush1.bf16.msra.mxu0 %v550
        %576 = vmatprep.subr.bf16.mxu0 0
        %577 = vmatpush1.bf16.msra.mxu0 %v549
        %578 = vmatprep.subr.bf16.mxu0 0
        %579 = vmatpush1.bf16.msra.mxu0 %v548
        %580 = vmatprep.subr.bf16.mxu0 0
        %581 = vmatpush2.bf16.msra.mxu0 0
        %582 = vmatprep.subr.bf16.mxu0 0
        %583 = vmatpush2.bf16.msra.mxu0 0
        %584 = vmatprep.subr.bf16.mxu0 0
        %585 = vmatpush2.bf16.msra.mxu0 0
        %586 = vmatprep.subr.bf16.mxu0 0
        %587 = vmatpush2.bf16.msra.mxu0 0
        %588 = vmatprep.subr.bf16.mxu0 0
        %589 = vmatpush2.bf16.msra.mxu0 0
        %590 = vmatprep.subr.bf16.mxu0 0
        %591 = vmatpush2.bf16.msra.mxu0 0
        %592 = vmatprep.subr.bf16.mxu0 0
        %593 = vmatpush2.bf16.msra.mxu0 0
        %594 = vmatprep.subr.bf16.mxu0 0
        %595 = vmatpush2.bf16.msra.mxu0 0
        %596 = vmatprep.mubr.bf16.mxu0 0
        %597 = vmatmul.mubr.bf16.gmra.mxu0 %v514
        %v598 = vpop.f32.mrf.mxu0
        %v599 = vadd.f32 0.0, %v598
        %v600 = vpop.f32.mrf.mxu0
        %v601 = vpop.f32.mrf.mxu0
        %v602 = vadd.f32 0.0, %v601
        %v603 = vpop.f32.mrf.mxu0
        %604 = vdwg.mxu0
        %v621 = vunpack.c.l.b16 %v494
        %v622 = vunpack.c.l.b16 %v495
        %v623 = vunpack.c.l.b16 %v496
        %v624 = vunpack.c.l.b16 %v497
        %v625 = vunpack.c.l.b16 %v498
        %v626 = vunpack.c.l.b16 %v499
        %v627 = vunpack.c.l.b16 %v500
        %v628 = vunpack.c.l.b16 %v501
        %v629 = vunpack.c.l.b16 %v502
        %v630 = vunpack.c.l.b16 %v503
        %v631 = vunpack.c.l.b16 %v504
        %v632 = vunpack.c.l.b16 %v505
        %v633 = vunpack.c.l.b16 %v506
        %v634 = vunpack.c.l.b16 %v507
        %v635 = vunpack.c.l.b16 %v508
        %v636 = vunpack.c.l.b16 %v509
        %v637 = vpack.c.b16 %v622, %v621
        %v638 = vpack.c.b16 %v624, %v623
        %v639 = vpack.c.b16 %v626, %v625
        %v640 = vpack.c.b16 %v628, %v627
        %v641 = vpack.c.b16 %v630, %v629
        %v642 = vpack.c.b16 %v632, %v631
        %v643 = vpack.c.b16 %v634, %v633
        %v644 = vpack.c.b16 %v636, %v635
        %653 = vmatprep.subr.bf16.mxu0 0
        %654 = vmatpush1.bf16.msra.mxu0 %v644
        %655 = vmatprep.subr.bf16.mxu0 0
        %656 = vmatpush1.bf16.msra.mxu0 %v643
        %657 = vmatprep.subr.bf16.mxu0 0
        %658 = vmatpush1.bf16.msra.mxu0 %v642
        %659 = vmatprep.subr.bf16.mxu0 0
        %660 = vmatpush1.bf16.msra.mxu0 %v641
        %661 = vmatprep.subr.bf16.mxu0 0
        %662 = vmatpush1.bf16.msra.mxu0 %v640
        %663 = vmatprep.subr.bf16.mxu0 0
        %664 = vmatpush1.bf16.msra.mxu0 %v639
        %665 = vmatprep.subr.bf16.mxu0 0
        %666 = vmatpush1.bf16.msra.mxu0 %v638
        %667 = vmatprep.subr.bf16.mxu0 0
        %668 = vmatpush1.bf16.msra.mxu0 %v637
        %669 = vmatprep.subr.bf16.mxu0 0
        %670 = vmatpush2.bf16.msra.mxu0 0
        %671 = vmatprep.subr.bf16.mxu0 0
        %672 = vmatpush2.bf16.msra.mxu0 0
        %673 = vmatprep.subr.bf16.mxu0 0
        %674 = vmatpush2.bf16.msra.mxu0 0
        %675 = vmatprep.subr.bf16.mxu0 0
        %676 = vmatpush2.bf16.msra.mxu0 0
        %677 = vmatprep.subr.bf16.mxu0 0
        %678 = vmatpush2.bf16.msra.mxu0 0
        %679 = vmatprep.subr.bf16.mxu0 0
        %680 = vmatpush2.bf16.msra.mxu0 0
        %681 = vmatprep.subr.bf16.mxu0 0
        %682 = vmatpush2.bf16.msra.mxu0 0
        %683 = vmatprep.subr.bf16.mxu0 0
        %684 = vmatpush2.bf16.msra.mxu0 0
        %685 = vmatprep.mubr.bf16.mxu0 0
        %686 = vmatmul.mubr.bf16.gmra.mxu0 %v514
        %v687 = vpop.f32.mrf.mxu0
        %v688 = vadd.f32 0.0, %v687
        %v689 = vpop.f32.mrf.mxu0
        %v690 = vpop.f32.mrf.mxu0
        %v691 = vadd.f32 0.0, %v690
        %v692 = vpop.f32.mrf.mxu0
        %693 = vdwg.mxu0
        %v696 = vunpack.c.l.b16 %v439
        %v697 = vunpack.c.l.b16 %v440
        %v698 = vpack.c.b16 %v697, %v696
        %v700 = vshrl.u32 %v698, 16
        %v702 = vshll.u32 %v698, 16
        %v704 = vrot.slane %v702, 1
        %v705 = vor.u32 %v700, %v704
        %707 = vmatprep.subr.bf16.mxu0 0
        %708 = vmatpush1.bf16.msra.mxu0 %v555
        %709 = vmatprep.subr.bf16.mxu0 0
        %710 = vmatpush1.bf16.msra.mxu0 %v554
        %711 = vmatprep.subr.bf16.mxu0 0
        %712 = vmatpush1.bf16.msra.mxu0 %v553
        %713 = vmatprep.subr.bf16.mxu0 0
        %714 = vmatpush1.bf16.msra.mxu0 %v552
        %715 = vmatprep.subr.bf16.mxu0 0
        %716 = vmatpush1.bf16.msra.mxu0 %v551
        %717 = vmatprep.subr.bf16.mxu0 0
        %718 = vmatpush1.bf16.msra.mxu0 %v550
        %719 = vmatprep.subr.bf16.mxu0 0
        %720 = vmatpush1.bf16.msra.mxu0 %v549
        %721 = vmatprep.subr.bf16.mxu0 0
        %722 = vmatpush1.bf16.msra.mxu0 %v548
        %723 = vmatprep.subr.bf16.mxu0 0
        %724 = vmatpush2.bf16.msra.mxu0 0
        %725 = vmatprep.subr.bf16.mxu0 0
        %726 = vmatpush2.bf16.msra.mxu0 0
        %727 = vmatprep.subr.bf16.mxu0 0
        %728 = vmatpush2.bf16.msra.mxu0 0
        %729 = vmatprep.subr.bf16.mxu0 0
        %730 = vmatpush2.bf16.msra.mxu0 0
        %731 = vmatprep.subr.bf16.mxu0 0
        %732 = vmatpush2.bf16.msra.mxu0 0
        %733 = vmatprep.subr.bf16.mxu0 0
        %734 = vmatpush2.bf16.msra.mxu0 0
        %735 = vmatprep.subr.bf16.mxu0 0
        %736 = vmatpush2.bf16.msra.mxu0 0
        %737 = vmatprep.subr.bf16.mxu0 0
        %738 = vmatpush2.bf16.msra.mxu0 0
        %739 = vmatprep.mubr.bf16.mxu0 0
        %740 = vmatmul.mubr.bf16.gmra.mxu0 %v705
        %v741 = vpop.f32.mrf.mxu0
        %v742 = vadd.f32 0.0, %v741
        %v743 = vpop.f32.mrf.mxu0
        %v744 = vpop.f32.mrf.mxu0
        %v745 = vadd.f32 0.0, %v744
        %v746 = vpop.f32.mrf.mxu0
        %747 = vdwg.mxu0
        %748 = vmatprep.subr.bf16.mxu0 0
        %749 = vmatpush1.bf16.msra.mxu0 %v644
        %750 = vmatprep.subr.bf16.mxu0 0
        %751 = vmatpush1.bf16.msra.mxu0 %v643
        %752 = vmatprep.subr.bf16.mxu0 0
        %753 = vmatpush1.bf16.msra.mxu0 %v642
        %754 = vmatprep.subr.bf16.mxu0 0
        %755 = vmatpush1.bf16.msra.mxu0 %v641
        %756 = vmatprep.subr.bf16.mxu0 0
        %757 = vmatpush1.bf16.msra.mxu0 %v640
        %758 = vmatprep.subr.bf16.mxu0 0
        %759 = vmatpush1.bf16.msra.mxu0 %v639
        %760 = vmatprep.subr.bf16.mxu0 0
        %761 = vmatpush1.bf16.msra.mxu0 %v638
        %762 = vmatprep.subr.bf16.mxu0 0
        %763 = vmatpush1.bf16.msra.mxu0 %v637
        %764 = vmatprep.subr.bf16.mxu0 0
        %765 = vmatpush2.bf16.msra.mxu0 0
        %766 = vmatprep.subr.bf16.mxu0 0
        %767 = vmatpush2.bf16.msra.mxu0 0
        %768 = vmatprep.subr.bf16.mxu0 0
        %769 = vmatpush2.bf16.msra.mxu0 0
        %770 = vmatprep.subr.bf16.mxu0 0
        %771 = vmatpush2.bf16.msra.mxu0 0
        %772 = vmatprep.subr.bf16.mxu0 0
        %773 = vmatpush2.bf16.msra.mxu0 0
        %774 = vmatprep.subr.bf16.mxu0 0
        %775 = vmatpush2.bf16.msra.mxu0 0
        %776 = vmatprep.subr.bf16.mxu0 0
        %777 = vmatpush2.bf16.msra.mxu0 0
        %778 = vmatprep.subr.bf16.mxu0 0
        %779 = vmatpush2.bf16.msra.mxu0 0
        %780 = vmatprep.mubr.bf16.mxu0 0
        %781 = vmatmul.mubr.bf16.gmra.mxu0 %v705
        %v782 = vpop.f32.mrf.mxu0
        %v783 = vadd.f32 0.0, %v782
        %v784 = vpop.f32.mrf.mxu0
        %v785 = vpop.f32.mrf.mxu0
        %v786 = vadd.f32 0.0, %v785
        %v787 = vpop.f32.mrf.mxu0
        %788 = vdwg.mxu0
        %v806 = vunpack.c.l.b16 %v444
        %v807 = vunpack.c.l.b16 %v445
        %v808 = vunpack.c.l.b16 %v446
        %v809 = vunpack.c.l.b16 %v447
        %v810 = vunpack.c.l.b16 %v448
        %v811 = vunpack.c.l.b16 %v449
        %v812 = vunpack.c.l.b16 %v450
        %v813 = vunpack.c.l.b16 %v451
        %v814 = vunpack.c.l.b16 %v452
        %v815 = vunpack.c.l.b16 %v453
        %v816 = vunpack.c.l.b16 %v454
        %v817 = vunpack.c.l.b16 %v455
        %v818 = vunpack.c.l.b16 %v456
        %v819 = vunpack.c.l.b16 %v457
        %v820 = vunpack.c.l.b16 %v458
        %v821 = vunpack.c.l.b16 %v459
        %v822 = vpack.c.b16 %v807, %v806
        %v823 = vpack.c.b16 %v809, %v808
        %v824 = vpack.c.b16 %v811, %v810
        %v825 = vpack.c.b16 %v813, %v812
        %v826 = vpack.c.b16 %v815, %v814
        %v827 = vpack.c.b16 %v817, %v816
        %v828 = vpack.c.b16 %v819, %v818
        %v829 = vpack.c.b16 %v821, %v820
        %838 = vmatprep.subr.bf16.mxu0 0
        %839 = vmatpush1.bf16.msra.mxu0 %v829
        %840 = vmatprep.subr.bf16.mxu0 0
        %841 = vmatpush1.bf16.msra.mxu0 %v828
        %842 = vmatprep.subr.bf16.mxu0 0
        %843 = vmatpush1.bf16.msra.mxu0 %v827
        %844 = vmatprep.subr.bf16.mxu0 0
        %845 = vmatpush1.bf16.msra.mxu0 %v826
        %846 = vmatprep.subr.bf16.mxu0 0
        %847 = vmatpush1.bf16.msra.mxu0 %v825
        %848 = vmatprep.subr.bf16.mxu0 0
        %849 = vmatpush1.bf16.msra.mxu0 %v824
        %850 = vmatprep.subr.bf16.mxu0 0
        %851 = vmatpush1.bf16.msra.mxu0 %v823
        %852 = vmatprep.subr.bf16.mxu0 0
        %853 = vmatpush1.bf16.msra.mxu0 %v822
        %854 = vmatprep.subr.bf16.mxu0 0
        %855 = vmatpush2.bf16.msra.mxu0 0
        %856 = vmatprep.subr.bf16.mxu0 0
        %857 = vmatpush2.bf16.msra.mxu0 0
        %858 = vmatprep.subr.bf16.mxu0 0
        %859 = vmatpush2.bf16.msra.mxu0 0
        %860 = vmatprep.subr.bf16.mxu0 0
        %861 = vmatpush2.bf16.msra.mxu0 0
        %862 = vmatprep.subr.bf16.mxu0 0
        %863 = vmatpush2.bf16.msra.mxu0 0
        %864 = vmatprep.subr.bf16.mxu0 0
        %865 = vmatpush2.bf16.msra.mxu0 0
        %866 = vmatprep.subr.bf16.mxu0 0
        %867 = vmatpush2.bf16.msra.mxu0 0
        %868 = vmatprep.subr.bf16.mxu0 0
        %869 = vmatpush2.bf16.msra.mxu0 0
        %870 = vmatprep.mubr.bf16.mxu0 0
        %871 = vmatmul.mubr.bf16.gmra.mxu0 %v698
        %v872 = vpop.f32.mrf.mxu0
        %v873 = vadd.f32 %v599, %v872
        %v874 = vpop.f32.mrf.mxu0
        %v875 = vpop.f32.mrf.mxu0
        %v876 = vadd.f32 %v602, %v875
        %v877 = vpop.f32.mrf.mxu0
        %878 = vdwg.mxu0
        %v895 = vunpack.c.l.b16 %v460
        %v896 = vunpack.c.l.b16 %v461
        %v897 = vunpack.c.l.b16 %v462
        %v898 = vunpack.c.l.b16 %v463
        %v899 = vunpack.c.l.b16 %v464
        %v900 = vunpack.c.l.b16 %v465
        %v901 = vunpack.c.l.b16 %v466
        %v902 = vunpack.c.l.b16 %v467
        %v903 = vunpack.c.l.b16 %v468
        %v904 = vunpack.c.l.b16 %v469
        %v905 = vunpack.c.l.b16 %v470
        %v906 = vunpack.c.l.b16 %v471
        %v907 = vunpack.c.l.b16 %v472
        %v908 = vunpack.c.l.b16 %v473
        %v909 = vunpack.c.l.b16 %v474
        %v910 = vunpack.c.l.b16 %v475
        %v911 = vpack.c.b16 %v896, %v895
        %v912 = vpack.c.b16 %v898, %v897
        %v913 = vpack.c.b16 %v900, %v899
        %v914 = vpack.c.b16 %v902, %v901
        %v915 = vpack.c.b16 %v904, %v903
        %v916 = vpack.c.b16 %v906, %v905
        %v917 = vpack.c.b16 %v908, %v907
        %v918 = vpack.c.b16 %v910, %v909
        %927 = vmatprep.subr.bf16.mxu0 0
        %928 = vmatpush1.bf16.msra.mxu0 %v918
        %929 = vmatprep.subr.bf16.mxu0 0
        %930 = vmatpush1.bf16.msra.mxu0 %v917
        %931 = vmatprep.subr.bf16.mxu0 0
        %932 = vmatpush1.bf16.msra.mxu0 %v916
        %933 = vmatprep.subr.bf16.mxu0 0
        %934 = vmatpush1.bf16.msra.mxu0 %v915
        %935 = vmatprep.subr.bf16.mxu0 0
        %936 = vmatpush1.bf16.msra.mxu0 %v914
        %937 = vmatprep.subr.bf16.mxu0 0
        %938 = vmatpush1.bf16.msra.mxu0 %v913
        %939 = vmatprep.subr.bf16.mxu0 0
        %940 = vmatpush1.bf16.msra.mxu0 %v912
        %941 = vmatprep.subr.bf16.mxu0 0
        %942 = vmatpush1.bf16.msra.mxu0 %v911
        %943 = vmatprep.subr.bf16.mxu0 0
        %944 = vmatpush2.bf16.msra.mxu0 0
        %945 = vmatprep.subr.bf16.mxu0 0
        %946 = vmatpush2.bf16.msra.mxu0 0
        %947 = vmatprep.subr.bf16.mxu0 0
        %948 = vmatpush2.bf16.msra.mxu0 0
        %949 = vmatprep.subr.bf16.mxu0 0
        %950 = vmatpush2.bf16.msra.mxu0 0
        %951 = vmatprep.subr.bf16.mxu0 0
        %952 = vmatpush2.bf16.msra.mxu0 0
        %953 = vmatprep.subr.bf16.mxu0 0
        %954 = vmatpush2.bf16.msra.mxu0 0
        %955 = vmatprep.subr.bf16.mxu0 0
        %956 = vmatpush2.bf16.msra.mxu0 0
        %957 = vmatprep.subr.bf16.mxu0 0
        %958 = vmatpush2.bf16.msra.mxu0 0
        %959 = vmatprep.mubr.bf16.mxu0 0
        %960 = vmatmul.mubr.bf16.gmra.mxu0 %v698
        %v961 = vpop.f32.mrf.mxu0
        %v962 = vadd.f32 %v688, %v961
        %v963 = vpop.f32.mrf.mxu0
        %v964 = vpop.f32.mrf.mxu0
        %v965 = vadd.f32 %v691, %v964
        %v966 = vpop.f32.mrf.mxu0
        %967 = vdwg.mxu0
        %968 = vmatprep.subr.bf16.mxu0 0
        %969 = vmatpush1.bf16.msra.mxu0 %v829
        %970 = vmatprep.subr.bf16.mxu0 0
        %971 = vmatpush1.bf16.msra.mxu0 %v828
        %972 = vmatprep.subr.bf16.mxu0 0
        %973 = vmatpush1.bf16.msra.mxu0 %v827
        %974 = vmatprep.subr.bf16.mxu0 0
        %975 = vmatpush1.bf16.msra.mxu0 %v826
        %976 = vmatprep.subr.bf16.mxu0 0
        %977 = vmatpush1.bf16.msra.mxu0 %v825
        %978 = vmatprep.subr.bf16.mxu0 0
        %979 = vmatpush1.bf16.msra.mxu0 %v824
        %980 = vmatprep.subr.bf16.mxu0 0
        %981 = vmatpush1.bf16.msra.mxu0 %v823
        %982 = vmatprep.subr.bf16.mxu0 0
        %983 = vmatpush1.bf16.msra.mxu0 %v822
        %984 = vmatprep.subr.bf16.mxu0 0
        %985 = vmatpush2.bf16.msra.mxu0 0
        %986 = vmatprep.subr.bf16.mxu0 0
        %987 = vmatpush2.bf16.msra.mxu0 0
        %988 = vmatprep.subr.bf16.mxu0 0
        %989 = vmatpush2.bf16.msra.mxu0 0
        %990 = vmatprep.subr.bf16.mxu0 0
        %991 = vmatpush2.bf16.msra.mxu0 0
        %992 = vmatprep.subr.bf16.mxu0 0
        %993 = vmatpush2.bf16.msra.mxu0 0
        %994 = vmatprep.subr.bf16.mxu0 0
        %995 = vmatpush2.bf16.msra.mxu0 0
        %996 = vmatprep.subr.bf16.mxu0 0
        %997 = vmatpush2.bf16.msra.mxu0 0
        %998 = vmatprep.subr.bf16.mxu0 0
        %999 = vmatpush2.bf16.msra.mxu0 0
        %1000 = vmatprep.mubr.bf16.mxu0 0
        %1001 = vmatmul.mubr.bf16.gmra.mxu0 %v514
        %v1002 = vpop.f32.mrf.mxu0
        %v1003 = vadd.f32 %v742, %v1002
        %v1004 = vpop.f32.mrf.mxu0
        %v1005 = vpop.f32.mrf.mxu0
        %v1006 = vadd.f32 %v745, %v1005
        %v1007 = vpop.f32.mrf.mxu0
        %1008 = vdwg.mxu0
        %1009 = vmatprep.subr.bf16.mxu0 0
        %1010 = vmatpush1.bf16.msra.mxu0 %v918
        %1011 = vmatprep.subr.bf16.mxu0 0
        %1012 = vmatpush1.bf16.msra.mxu0 %v917
        %1013 = vmatprep.subr.bf16.mxu0 0
        %1014 = vmatpush1.bf16.msra.mxu0 %v916
        %1015 = vmatprep.subr.bf16.mxu0 0
        %1016 = vmatpush1.bf16.msra.mxu0 %v915
        %1017 = vmatprep.subr.bf16.mxu0 0
        %1018 = vmatpush1.bf16.msra.mxu0 %v914
        %1019 = vmatprep.subr.bf16.mxu0 0
        %1020 = vmatpush1.bf16.msra.mxu0 %v913
        %1021 = vmatprep.subr.bf16.mxu0 0
        %1022 = vmatpush1.bf16.msra.mxu0 %v912
        %1023 = vmatprep.subr.bf16.mxu0 0
        %1024 = vmatpush1.bf16.msra.mxu0 %v911
        %1025 = vmatprep.subr.bf16.mxu0 0
        %1026 = vmatpush2.bf16.msra.mxu0 0
        %1027 = vmatprep.subr.bf16.mxu0 0
        %1028 = vmatpush2.bf16.msra.mxu0 0
        %1029 = vmatprep.subr.bf16.mxu0 0
        %1030 = vmatpush2.bf16.msra.mxu0 0
        %1031 = vmatprep.subr.bf16.mxu0 0
        %1032 = vmatpush2.bf16.msra.mxu0 0
        %1033 = vmatprep.subr.bf16.mxu0 0
        %1034 = vmatpush2.bf16.msra.mxu0 0
        %1035 = vmatprep.subr.bf16.mxu0 0
        %1036 = vmatpush2.bf16.msra.mxu0 0
        %1037 = vmatprep.subr.bf16.mxu0 0
        %1038 = vmatpush2.bf16.msra.mxu0 0
        %1039 = vmatprep.subr.bf16.mxu0 0
        %1040 = vmatpush2.bf16.msra.mxu0 0
        %1041 = vmatprep.mubr.bf16.mxu0 0
        %1042 = vmatmul.mubr.bf16.gmra.mxu0 %v514
        %v1043 = vpop.f32.mrf.mxu0
        %v1044 = vadd.f32 %v783, %v1043
        %v1045 = vpop.f32.mrf.mxu0
        %v1046 = vpop.f32.mrf.mxu0
        %v1047 = vadd.f32 %v786, %v1046
        %v1048 = vpop.f32.mrf.mxu0
        %1049 = vdwg.mxu0
        %s1050 = scalar_lea.vmem %s1, 128
        %v1051 = vld [vmem:[%s1050] sm:$0xf]
        %v1052 = vld [vmem:[%s1050 + $0x4] sm:$0xf]
        %v1053 = vld [vmem:[%s1050 + $0x8] sm:$0xf]
        %v1054 = vld [vmem:[%s1050 + $0xc] sm:$0xf]
        %v1055 = vld [vmem:[%s1050 + $0x10] sm:$0xf]
        %v1056 = vld [vmem:[%s1050 + $0x14] sm:$0xf]
        %v1057 = vld [vmem:[%s1050 + $0x18] sm:$0xf]
        %v1058 = vld [vmem:[%s1050 + $0x1c] sm:$0xf]
        %v1059 = vld [vmem:[%s1050 + $0x20] sm:$0xf]
        %v1060 = vld [vmem:[%s1050 + $0x24] sm:$0xf]
        %v1061 = vld [vmem:[%s1050 + $0x28] sm:$0xf]
        %v1062 = vld [vmem:[%s1050 + $0x2c] sm:$0xf]
        %v1063 = vld [vmem:[%s1050 + $0x30] sm:$0xf]
        %v1064 = vld [vmem:[%s1050 + $0x34] sm:$0xf]
        %v1065 = vld [vmem:[%s1050 + $0x38] sm:$0xf]
        %v1066 = vld [vmem:[%s1050 + $0x3c] sm:$0xf]
        %s1067 = scalar_lea.vmem %s2, 128
        %v1068 = vld [vmem:[%s1067] sm:$0xf]
        %v1069 = vld [vmem:[%s1067 + $0x4] sm:$0xf]
        %v1070 = vld [vmem:[%s1067 + $0x8] sm:$0xf]
        %v1071 = vld [vmem:[%s1067 + $0xc] sm:$0xf]
        %v1072 = vld [vmem:[%s1067 + $0x10] sm:$0xf]
        %v1073 = vld [vmem:[%s1067 + $0x14] sm:$0xf]
        %v1074 = vld [vmem:[%s1067 + $0x18] sm:$0xf]
        %v1075 = vld [vmem:[%s1067 + $0x1c] sm:$0xf]
        %v1076 = vld [vmem:[%s1067 + $0x20] sm:$0xf]
        %v1077 = vld [vmem:[%s1067 + $0x24] sm:$0xf]
        %v1078 = vld [vmem:[%s1067 + $0x28] sm:$0xf]
        %v1079 = vld [vmem:[%s1067 + $0x2c] sm:$0xf]
        %v1080 = vld [vmem:[%s1067 + $0x30] sm:$0xf]
        %v1081 = vld [vmem:[%s1067 + $0x34] sm:$0xf]
        %v1082 = vld [vmem:[%s1067 + $0x38] sm:$0xf]
        %v1083 = vld [vmem:[%s1067 + $0x3c] sm:$0xf]
        %v1100 = vunpack.c.l.b16 %v1051
        %v1101 = vunpack.c.l.b16 %v1052
        %v1102 = vunpack.c.l.b16 %v1053
        %v1103 = vunpack.c.l.b16 %v1054
        %v1104 = vunpack.c.l.b16 %v1055
        %v1105 = vunpack.c.l.b16 %v1056
        %v1106 = vunpack.c.l.b16 %v1057
        %v1107 = vunpack.c.l.b16 %v1058
        %v1108 = vunpack.c.l.b16 %v1059
        %v1109 = vunpack.c.l.b16 %v1060
        %v1110 = vunpack.c.l.b16 %v1061
        %v1111 = vunpack.c.l.b16 %v1062
        %v1112 = vunpack.c.l.b16 %v1063
        %v1113 = vunpack.c.l.b16 %v1064
        %v1114 = vunpack.c.l.b16 %v1065
        %v1115 = vunpack.c.l.b16 %v1066
        %v1116 = vpack.c.b16 %v1101, %v1100
        %v1117 = vpack.c.b16 %v1103, %v1102
        %v1118 = vpack.c.b16 %v1105, %v1104
        %v1119 = vpack.c.b16 %v1107, %v1106
        %v1120 = vpack.c.b16 %v1109, %v1108
        %v1121 = vpack.c.b16 %v1111, %v1110
        %v1122 = vpack.c.b16 %v1113, %v1112
        %v1123 = vpack.c.b16 %v1115, %v1114
        %1132 = vmatprep.subr.bf16.mxu0 0
        %1133 = vmatpush1.bf16.msra.mxu0 %v1123
        %1134 = vmatprep.subr.bf16.mxu0 0
        %1135 = vmatpush1.bf16.msra.mxu0 %v1122
        %1136 = vmatprep.subr.bf16.mxu0 0
        %1137 = vmatpush1.bf16.msra.mxu0 %v1121
        %1138 = vmatprep.subr.bf16.mxu0 0
        %1139 = vmatpush1.bf16.msra.mxu0 %v1120
        %1140 = vmatprep.subr.bf16.mxu0 0
        %1141 = vmatpush1.bf16.msra.mxu0 %v1119
        %1142 = vmatprep.subr.bf16.mxu0 0
        %1143 = vmatpush1.bf16.msra.mxu0 %v1118
        %1144 = vmatprep.subr.bf16.mxu0 0
        %1145 = vmatpush1.bf16.msra.mxu0 %v1117
        %1146 = vmatprep.subr.bf16.mxu0 0
        %1147 = vmatpush1.bf16.msra.mxu0 %v1116
        %1148 = vmatprep.subr.bf16.mxu0 0
        %1149 = vmatpush2.bf16.msra.mxu0 0
        %1150 = vmatprep.subr.bf16.mxu0 0
        %1151 = vmatpush2.bf16.msra.mxu0 0
        %1152 = vmatprep.subr.bf16.mxu0 0
        %1153 = vmatpush2.bf16.msra.mxu0 0
        %1154 = vmatprep.subr.bf16.mxu0 0
        %1155 = vmatpush2.bf16.msra.mxu0 0
        %1156 = vmatprep.subr.bf16.mxu0 0
        %1157 = vmatpush2.bf16.msra.mxu0 0
        %1158 = vmatprep.subr.bf16.mxu0 0
        %1159 = vmatpush2.bf16.msra.mxu0 0
        %1160 = vmatprep.subr.bf16.mxu0 0
        %1161 = vmatpush2.bf16.msra.mxu0 0
        %1162 = vmatprep.subr.bf16.mxu0 0
        %1163 = vmatpush2.bf16.msra.mxu0 0
        %1164 = vmatprep.mubr.bf16.mxu0 0
        %1165 = vmatmul.mubr.bf16.gmra.mxu0 %v705
        %v1166 = vpop.f32.mrf.mxu0
        %v1167 = vadd.f32 0.0, %v1166
        %v1168 = vpop.f32.mrf.mxu0
        %v1169 = vpop.f32.mrf.mxu0
        %v1170 = vadd.f32 0.0, %v1169
        %v1171 = vpop.f32.mrf.mxu0
        %1172 = vdwg.mxu0
        %v1189 = vunpack.c.l.b16 %v1068
        %v1190 = vunpack.c.l.b16 %v1069
        %v1191 = vunpack.c.l.b16 %v1070
        %v1192 = vunpack.c.l.b16 %v1071
        %v1193 = vunpack.c.l.b16 %v1072
        %v1194 = vunpack.c.l.b16 %v1073
        %v1195 = vunpack.c.l.b16 %v1074
        %v1196 = vunpack.c.l.b16 %v1075
        %v1197 = vunpack.c.l.b16 %v1076
        %v1198 = vunpack.c.l.b16 %v1077
        %v1199 = vunpack.c.l.b16 %v1078
        %v1200 = vunpack.c.l.b16 %v1079
        %v1201 = vunpack.c.l.b16 %v1080
        %v1202 = vunpack.c.l.b16 %v1081
        %v1203 = vunpack.c.l.b16 %v1082
        %v1204 = vunpack.c.l.b16 %v1083
        %v1205 = vpack.c.b16 %v1190, %v1189
        %v1206 = vpack.c.b16 %v1192, %v1191
        %v1207 = vpack.c.b16 %v1194, %v1193
        %v1208 = vpack.c.b16 %v1196, %v1195
        %v1209 = vpack.c.b16 %v1198, %v1197
        %v1210 = vpack.c.b16 %v1200, %v1199
        %v1211 = vpack.c.b16 %v1202, %v1201
        %v1212 = vpack.c.b16 %v1204, %v1203
        %1221 = vmatprep.subr.bf16.mxu0 0
        %1222 = vmatpush1.bf16.msra.mxu0 %v1212
        %1223 = vmatprep.subr.bf16.mxu0 0
        %1224 = vmatpush1.bf16.msra.mxu0 %v1211
        %1225 = vmatprep.subr.bf16.mxu0 0
        %1226 = vmatpush1.bf16.msra.mxu0 %v1210
        %1227 = vmatprep.subr.bf16.mxu0 0
        %1228 = vmatpush1.bf16.msra.mxu0 %v1209
        %1229 = vmatprep.subr.bf16.mxu0 0
        %1230 = vmatpush1.bf16.msra.mxu0 %v1208
        %1231 = vmatprep.subr.bf16.mxu0 0
        %1232 = vmatpush1.bf16.msra.mxu0 %v1207
        %1233 = vmatprep.subr.bf16.mxu0 0
        %1234 = vmatpush1.bf16.msra.mxu0 %v1206
        %1235 = vmatprep.subr.bf16.mxu0 0
        %1236 = vmatpush1.bf16.msra.mxu0 %v1205
        %1237 = vmatprep.subr.bf16.mxu0 0
        %1238 = vmatpush2.bf16.msra.mxu0 0
        %1239 = vmatprep.subr.bf16.mxu0 0
        %1240 = vmatpush2.bf16.msra.mxu0 0
        %1241 = vmatprep.subr.bf16.mxu0 0
        %1242 = vmatpush2.bf16.msra.mxu0 0
        %1243 = vmatprep.subr.bf16.mxu0 0
        %1244 = vmatpush2.bf16.msra.mxu0 0
        %1245 = vmatprep.subr.bf16.mxu0 0
        %1246 = vmatpush2.bf16.msra.mxu0 0
        %1247 = vmatprep.subr.bf16.mxu0 0
        %1248 = vmatpush2.bf16.msra.mxu0 0
        %1249 = vmatprep.subr.bf16.mxu0 0
        %1250 = vmatpush2.bf16.msra.mxu0 0
        %1251 = vmatprep.subr.bf16.mxu0 0
        %1252 = vmatpush2.bf16.msra.mxu0 0
        %1253 = vmatprep.mubr.bf16.mxu0 0
        %1254 = vmatmul.mubr.bf16.gmra.mxu0 %v705
        %v1255 = vpop.f32.mrf.mxu0
        %v1256 = vadd.f32 0.0, %v1255
        %v1257 = vpop.f32.mrf.mxu0
        %v1258 = vpop.f32.mrf.mxu0
        %v1259 = vadd.f32 0.0, %v1258
        %v1260 = vpop.f32.mrf.mxu0
        %1261 = vdwg.mxu0
        %v1263 = vshrl.u32 %v514, 16
        %v1265 = vshll.u32 %v514, 16
        %v1267 = vrot.slane %v1265, 1
        %v1268 = vor.u32 %v1263, %v1267
        %1270 = vmatprep.subr.bf16.mxu0 0
        %1271 = vmatpush1.bf16.msra.mxu0 %v1123
        %1272 = vmatprep.subr.bf16.mxu0 0
        %1273 = vmatpush1.bf16.msra.mxu0 %v1122
        %1274 = vmatprep.subr.bf16.mxu0 0
        %1275 = vmatpush1.bf16.msra.mxu0 %v1121
        %1276 = vmatprep.subr.bf16.mxu0 0
        %1277 = vmatpush1.bf16.msra.mxu0 %v1120
        %1278 = vmatprep.subr.bf16.mxu0 0
        %1279 = vmatpush1.bf16.msra.mxu0 %v1119
        %1280 = vmatprep.subr.bf16.mxu0 0
        %1281 = vmatpush1.bf16.msra.mxu0 %v1118
        %1282 = vmatprep.subr.bf16.mxu0 0
        %1283 = vmatpush1.bf16.msra.mxu0 %v1117
        %1284 = vmatprep.subr.bf16.mxu0 0
        %1285 = vmatpush1.bf16.msra.mxu0 %v1116
        %1286 = vmatprep.subr.bf16.mxu0 0
        %1287 = vmatpush2.bf16.msra.mxu0 0
        %1288 = vmatprep.subr.bf16.mxu0 0
        %1289 = vmatpush2.bf16.msra.mxu0 0
        %1290 = vmatprep.subr.bf16.mxu0 0
        %1291 = vmatpush2.bf16.msra.mxu0 0
        %1292 = vmatprep.subr.bf16.mxu0 0
        %1293 = vmatpush2.bf16.msra.mxu0 0
        %1294 = vmatprep.subr.bf16.mxu0 0
        %1295 = vmatpush2.bf16.msra.mxu0 0
        %1296 = vmatprep.subr.bf16.mxu0 0
        %1297 = vmatpush2.bf16.msra.mxu0 0
        %1298 = vmatprep.subr.bf16.mxu0 0
        %1299 = vmatpush2.bf16.msra.mxu0 0
        %1300 = vmatprep.subr.bf16.mxu0 0
        %1301 = vmatpush2.bf16.msra.mxu0 0
        %1302 = vmatprep.mubr.bf16.mxu0 0
        %1303 = vmatmul.mubr.bf16.gmra.mxu0 %v1268
        %v1304 = vpop.f32.mrf.mxu0
        %v1305 = vadd.f32 0.0, %v1304
        %v1306 = vpop.f32.mrf.mxu0
        %v1307 = vpop.f32.mrf.mxu0
        %v1308 = vadd.f32 0.0, %v1307
        %v1309 = vpop.f32.mrf.mxu0
        %1310 = vdwg.mxu0
        %1311 = vmatprep.subr.bf16.mxu0 0
        %1312 = vmatpush1.bf16.msra.mxu0 %v1212
        %1313 = vmatprep.subr.bf16.mxu0 0
        %1314 = vmatpush1.bf16.msra.mxu0 %v1211
        %1315 = vmatprep.subr.bf16.mxu0 0
        %1316 = vmatpush1.bf16.msra.mxu0 %v1210
        %1317 = vmatprep.subr.bf16.mxu0 0
        %1318 = vmatpush1.bf16.msra.mxu0 %v1209
        %1319 = vmatprep.subr.bf16.mxu0 0
        %1320 = vmatpush1.bf16.msra.mxu0 %v1208
        %1321 = vmatprep.subr.bf16.mxu0 0
        %1322 = vmatpush1.bf16.msra.mxu0 %v1207
        %1323 = vmatprep.subr.bf16.mxu0 0
        %1324 = vmatpush1.bf16.msra.mxu0 %v1206
        %1325 = vmatprep.subr.bf16.mxu0 0
        %1326 = vmatpush1.bf16.msra.mxu0 %v1205
        %1327 = vmatprep.subr.bf16.mxu0 0
        %1328 = vmatpush2.bf16.msra.mxu0 0
        %1329 = vmatprep.subr.bf16.mxu0 0
        %1330 = vmatpush2.bf16.msra.mxu0 0
        %1331 = vmatprep.subr.bf16.mxu0 0
        %1332 = vmatpush2.bf16.msra.mxu0 0
        %1333 = vmatprep.subr.bf16.mxu0 0
        %1334 = vmatpush2.bf16.msra.mxu0 0
        %1335 = vmatprep.subr.bf16.mxu0 0
        %1336 = vmatpush2.bf16.msra.mxu0 0
        %1337 = vmatprep.subr.bf16.mxu0 0
        %1338 = vmatpush2.bf16.msra.mxu0 0
        %1339 = vmatprep.subr.bf16.mxu0 0
        %1340 = vmatpush2.bf16.msra.mxu0 0
        %1341 = vmatprep.subr.bf16.mxu0 0
        %1342 = vmatpush2.bf16.msra.mxu0 0
        %1343 = vmatprep.mubr.bf16.mxu0 0
        %1344 = vmatmul.mubr.bf16.gmra.mxu0 %v1268
        %v1345 = vpop.f32.mrf.mxu0
        %v1346 = vadd.f32 0.0, %v1345
        %v1347 = vpop.f32.mrf.mxu0
        %v1348 = vpop.f32.mrf.mxu0
        %v1349 = vadd.f32 0.0, %v1348
        %v1350 = vpop.f32.mrf.mxu0
        %1351 = vdwg.mxu0
        %v1352 = vadd.f32 %v873, %v1167
        %v1353 = vadd.f32 %v876, %v1170
        %v1354 = vadd.f32 %v962, %v1256
        %v1355 = vadd.f32 %v965, %v1259
        %v1356 = vadd.f32 %v1003, %v1305
        %v1357 = vadd.f32 %v1006, %v1308
        %v1358 = vadd.f32 %v1044, %v1346
        %v1359 = vadd.f32 %v1047, %v1349
        %s1360 = scalar_lea.vmem %s1, 192
        %v1361 = vld [vmem:[%s1360] sm:$0xf]
        %v1362 = vld [vmem:[%s1360 + $0x4] sm:$0xf]
        %v1363 = vld [vmem:[%s1360 + $0x8] sm:$0xf]
        %v1364 = vld [vmem:[%s1360 + $0xc] sm:$0xf]
        %v1365 = vld [vmem:[%s1360 + $0x10] sm:$0xf]
        %v1366 = vld [vmem:[%s1360 + $0x14] sm:$0xf]
        %v1367 = vld [vmem:[%s1360 + $0x18] sm:$0xf]
        %v1368 = vld [vmem:[%s1360 + $0x1c] sm:$0xf]
        %v1369 = vld [vmem:[%s1360 + $0x20] sm:$0xf]
        %v1370 = vld [vmem:[%s1360 + $0x24] sm:$0xf]
        %v1371 = vld [vmem:[%s1360 + $0x28] sm:$0xf]
        %v1372 = vld [vmem:[%s1360 + $0x2c] sm:$0xf]
        %v1373 = vld [vmem:[%s1360 + $0x30] sm:$0xf]
        %v1374 = vld [vmem:[%s1360 + $0x34] sm:$0xf]
        %v1375 = vld [vmem:[%s1360 + $0x38] sm:$0xf]
        %v1376 = vld [vmem:[%s1360 + $0x3c] sm:$0xf]
        %s1377 = scalar_lea.vmem %s2, 192
        %v1378 = vld [vmem:[%s1377] sm:$0xf]
        %v1379 = vld [vmem:[%s1377 + $0x4] sm:$0xf]
        %v1380 = vld [vmem:[%s1377 + $0x8] sm:$0xf]
        %v1381 = vld [vmem:[%s1377 + $0xc] sm:$0xf]
        %v1382 = vld [vmem:[%s1377 + $0x10] sm:$0xf]
        %v1383 = vld [vmem:[%s1377 + $0x14] sm:$0xf]
        %v1384 = vld [vmem:[%s1377 + $0x18] sm:$0xf]
        %v1385 = vld [vmem:[%s1377 + $0x1c] sm:$0xf]
        %v1386 = vld [vmem:[%s1377 + $0x20] sm:$0xf]
        %v1387 = vld [vmem:[%s1377 + $0x24] sm:$0xf]
        %v1388 = vld [vmem:[%s1377 + $0x28] sm:$0xf]
        %v1389 = vld [vmem:[%s1377 + $0x2c] sm:$0xf]
        %v1390 = vld [vmem:[%s1377 + $0x30] sm:$0xf]
        %v1391 = vld [vmem:[%s1377 + $0x34] sm:$0xf]
        %v1392 = vld [vmem:[%s1377 + $0x38] sm:$0xf]
        %v1393 = vld [vmem:[%s1377 + $0x3c] sm:$0xf]
        %v1410 = vunpack.c.l.b16 %v1361
        %v1411 = vunpack.c.l.b16 %v1362
        %v1412 = vunpack.c.l.b16 %v1363
        %v1413 = vunpack.c.l.b16 %v1364
        %v1414 = vunpack.c.l.b16 %v1365
        %v1415 = vunpack.c.l.b16 %v1366
        %v1416 = vunpack.c.l.b16 %v1367
        %v1417 = vunpack.c.l.b16 %v1368
        %v1418 = vunpack.c.l.b16 %v1369
        %v1419 = vunpack.c.l.b16 %v1370
        %v1420 = vunpack.c.l.b16 %v1371
        %v1421 = vunpack.c.l.b16 %v1372
        %v1422 = vunpack.c.l.b16 %v1373
        %v1423 = vunpack.c.l.b16 %v1374
        %v1424 = vunpack.c.l.b16 %v1375
        %v1425 = vunpack.c.l.b16 %v1376
        %v1426 = vpack.c.b16 %v1411, %v1410
        %v1427 = vpack.c.b16 %v1413, %v1412
        %v1428 = vpack.c.b16 %v1415, %v1414
        %v1429 = vpack.c.b16 %v1417, %v1416
        %v1430 = vpack.c.b16 %v1419, %v1418
        %v1431 = vpack.c.b16 %v1421, %v1420
        %v1432 = vpack.c.b16 %v1423, %v1422
        %v1433 = vpack.c.b16 %v1425, %v1424
        %1442 = vmatprep.subr.bf16.mxu0 0
        %1443 = vmatpush1.bf16.msra.mxu0 %v1433
        %1444 = vmatprep.subr.bf16.mxu0 0
        %1445 = vmatpush1.bf16.msra.mxu0 %v1432
        %1446 = vmatprep.subr.bf16.mxu0 0
        %1447 = vmatpush1.bf16.msra.mxu0 %v1431
        %1448 = vmatprep.subr.bf16.mxu0 0
        %1449 = vmatpush1.bf16.msra.mxu0 %v1430
        %1450 = vmatprep.subr.bf16.mxu0 0
        %1451 = vmatpush1.bf16.msra.mxu0 %v1429
        %1452 = vmatprep.subr.bf16.mxu0 0
        %1453 = vmatpush1.bf16.msra.mxu0 %v1428
        %1454 = vmatprep.subr.bf16.mxu0 0
        %1455 = vmatpush1.bf16.msra.mxu0 %v1427
        %1456 = vmatprep.subr.bf16.mxu0 0
        %1457 = vmatpush1.bf16.msra.mxu0 %v1426
        %1458 = vmatprep.subr.bf16.mxu0 0
        %1459 = vmatpush2.bf16.msra.mxu0 0
        %1460 = vmatprep.subr.bf16.mxu0 0
        %1461 = vmatpush2.bf16.msra.mxu0 0
        %1462 = vmatprep.subr.bf16.mxu0 0
        %1463 = vmatpush2.bf16.msra.mxu0 0
        %1464 = vmatprep.subr.bf16.mxu0 0
        %1465 = vmatpush2.bf16.msra.mxu0 0
        %1466 = vmatprep.subr.bf16.mxu0 0
        %1467 = vmatpush2.bf16.msra.mxu0 0
        %1468 = vmatprep.subr.bf16.mxu0 0
        %1469 = vmatpush2.bf16.msra.mxu0 0
        %1470 = vmatprep.subr.bf16.mxu0 0
        %1471 = vmatpush2.bf16.msra.mxu0 0
        %1472 = vmatprep.subr.bf16.mxu0 0
        %1473 = vmatpush2.bf16.msra.mxu0 0
        %1474 = vmatprep.mubr.bf16.mxu0 0
        %1475 = vmatmul.mubr.bf16.gmra.mxu0 %v1268
        %v1476 = vpop.f32.mrf.mxu0
        %v1477 = vadd.f32 0.0, %v1476
        %v1478 = vpop.f32.mrf.mxu0
        %v1479 = vpop.f32.mrf.mxu0
        %v1480 = vadd.f32 0.0, %v1479
        %v1481 = vpop.f32.mrf.mxu0
        %1482 = vdwg.mxu0
        %v1499 = vunpack.c.l.b16 %v1378
        %v1500 = vunpack.c.l.b16 %v1379
        %v1501 = vunpack.c.l.b16 %v1380
        %v1502 = vunpack.c.l.b16 %v1381
        %v1503 = vunpack.c.l.b16 %v1382
        %v1504 = vunpack.c.l.b16 %v1383
        %v1505 = vunpack.c.l.b16 %v1384
        %v1506 = vunpack.c.l.b16 %v1385
        %v1507 = vunpack.c.l.b16 %v1386
        %v1508 = vunpack.c.l.b16 %v1387
        %v1509 = vunpack.c.l.b16 %v1388
        %v1510 = vunpack.c.l.b16 %v1389
        %v1511 = vunpack.c.l.b16 %v1390
        %v1512 = vunpack.c.l.b16 %v1391
        %v1513 = vunpack.c.l.b16 %v1392
        %v1514 = vunpack.c.l.b16 %v1393
        %v1515 = vpack.c.b16 %v1500, %v1499
        %v1516 = vpack.c.b16 %v1502, %v1501
        %v1517 = vpack.c.b16 %v1504, %v1503
        %v1518 = vpack.c.b16 %v1506, %v1505
        %v1519 = vpack.c.b16 %v1508, %v1507
        %v1520 = vpack.c.b16 %v1510, %v1509
        %v1521 = vpack.c.b16 %v1512, %v1511
        %v1522 = vpack.c.b16 %v1514, %v1513
        %1531 = vmatprep.subr.bf16.mxu0 0
        %1532 = vmatpush1.bf16.msra.mxu0 %v1522
        %1533 = vmatprep.subr.bf16.mxu0 0
        %1534 = vmatpush1.bf16.msra.mxu0 %v1521
        %1535 = vmatprep.subr.bf16.mxu0 0
        %1536 = vmatpush1.bf16.msra.mxu0 %v1520
        %1537 = vmatprep.subr.bf16.mxu0 0
        %1538 = vmatpush1.bf16.msra.mxu0 %v1519
        %1539 = vmatprep.subr.bf16.mxu0 0
        %1540 = vmatpush1.bf16.msra.mxu0 %v1518
        %1541 = vmatprep.subr.bf16.mxu0 0
        %1542 = vmatpush1.bf16.msra.mxu0 %v1517
        %1543 = vmatprep.subr.bf16.mxu0 0
        %1544 = vmatpush1.bf16.msra.mxu0 %v1516
        %1545 = vmatprep.subr.bf16.mxu0 0
        %1546 = vmatpush1.bf16.msra.mxu0 %v1515
        %1547 = vmatprep.subr.bf16.mxu0 0
        %1548 = vmatpush2.bf16.msra.mxu0 0
        %1549 = vmatprep.subr.bf16.mxu0 0
        %1550 = vmatpush2.bf16.msra.mxu0 0
        %1551 = vmatprep.subr.bf16.mxu0 0
        %1552 = vmatpush2.bf16.msra.mxu0 0
        %1553 = vmatprep.subr.bf16.mxu0 0
        %1554 = vmatpush2.bf16.msra.mxu0 0
        %1555 = vmatprep.subr.bf16.mxu0 0
        %1556 = vmatpush2.bf16.msra.mxu0 0
        %1557 = vmatprep.subr.bf16.mxu0 0
        %1558 = vmatpush2.bf16.msra.mxu0 0
        %1559 = vmatprep.subr.bf16.mxu0 0
        %1560 = vmatpush2.bf16.msra.mxu0 0
        %1561 = vmatprep.subr.bf16.mxu0 0
        %1562 = vmatpush2.bf16.msra.mxu0 0
        %1563 = vmatprep.mubr.bf16.mxu0 0
        %1564 = vmatmul.mubr.bf16.gmra.mxu0 %v1268
        %v1565 = vpop.f32.mrf.mxu0
        %v1566 = vadd.f32 0.0, %v1565
        %v1567 = vpop.f32.mrf.mxu0
        %v1568 = vpop.f32.mrf.mxu0
        %v1569 = vadd.f32 0.0, %v1568
        %v1570 = vpop.f32.mrf.mxu0
        %1571 = vdwg.mxu0
        %v1572 = vrot.slane %v698, 1
        %1574 = vmatprep.subr.bf16.mxu0 0
        %1575 = vmatpush1.bf16.msra.mxu0 %v1433
        %1576 = vmatprep.subr.bf16.mxu0 0
        %1577 = vmatpush1.bf16.msra.mxu0 %v1432
        %1578 = vmatprep.subr.bf16.mxu0 0
        %1579 = vmatpush1.bf16.msra.mxu0 %v1431
        %1580 = vmatprep.subr.bf16.mxu0 0
        %1581 = vmatpush1.bf16.msra.mxu0 %v1430
        %1582 = vmatprep.subr.bf16.mxu0 0
        %1583 = vmatpush1.bf16.msra.mxu0 %v1429
        %1584 = vmatprep.subr.bf16.mxu0 0
        %1585 = vmatpush1.bf16.msra.mxu0 %v1428
        %1586 = vmatprep.subr.bf16.mxu0 0
        %1587 = vmatpush1.bf16.msra.mxu0 %v1427
        %1588 = vmatprep.subr.bf16.mxu0 0
        %1589 = vmatpush1.bf16.msra.mxu0 %v1426
        %1590 = vmatprep.subr.bf16.mxu0 0
        %1591 = vmatpush2.bf16.msra.mxu0 0
        %1592 = vmatprep.subr.bf16.mxu0 0
        %1593 = vmatpush2.bf16.msra.mxu0 0
        %1594 = vmatprep.subr.bf16.mxu0 0
        %1595 = vmatpush2.bf16.msra.mxu0 0
        %1596 = vmatprep.subr.bf16.mxu0 0
        %1597 = vmatpush2.bf16.msra.mxu0 0
        %1598 = vmatprep.subr.bf16.mxu0 0
        %1599 = vmatpush2.bf16.msra.mxu0 0
        %1600 = vmatprep.subr.bf16.mxu0 0
        %1601 = vmatpush2.bf16.msra.mxu0 0
        %1602 = vmatprep.subr.bf16.mxu0 0
        %1603 = vmatpush2.bf16.msra.mxu0 0
        %1604 = vmatprep.subr.bf16.mxu0 0
        %1605 = vmatpush2.bf16.msra.mxu0 0
        %1606 = vmatprep.mubr.bf16.mxu0 0
        %1607 = vmatmul.mubr.bf16.gmra.mxu0 %v1572
        %v1608 = vpop.f32.mrf.mxu0
        %v1609 = vadd.f32 0.0, %v1608
        %v1610 = vpop.f32.mrf.mxu0
        %v1611 = vpop.f32.mrf.mxu0
        %v1612 = vadd.f32 0.0, %v1611
        %v1613 = vpop.f32.mrf.mxu0
        %1614 = vdwg.mxu0
        %1615 = vmatprep.subr.bf16.mxu0 0
        %1616 = vmatpush1.bf16.msra.mxu0 %v1522
        %1617 = vmatprep.subr.bf16.mxu0 0
        %1618 = vmatpush1.bf16.msra.mxu0 %v1521
        %1619 = vmatprep.subr.bf16.mxu0 0
        %1620 = vmatpush1.bf16.msra.mxu0 %v1520
        %1621 = vmatprep.subr.bf16.mxu0 0
        %1622 = vmatpush1.bf16.msra.mxu0 %v1519
        %1623 = vmatprep.subr.bf16.mxu0 0
        %1624 = vmatpush1.bf16.msra.mxu0 %v1518
        %1625 = vmatprep.subr.bf16.mxu0 0
        %1626 = vmatpush1.bf16.msra.mxu0 %v1517
        %1627 = vmatprep.subr.bf16.mxu0 0
        %1628 = vmatpush1.bf16.msra.mxu0 %v1516
        %1629 = vmatprep.subr.bf16.mxu0 0
        %1630 = vmatpush1.bf16.msra.mxu0 %v1515
        %1631 = vmatprep.subr.bf16.mxu0 0
        %1632 = vmatpush2.bf16.msra.mxu0 0
        %1633 = vmatprep.subr.bf16.mxu0 0
        %1634 = vmatpush2.bf16.msra.mxu0 0
        %1635 = vmatprep.subr.bf16.mxu0 0
        %1636 = vmatpush2.bf16.msra.mxu0 0
        %1637 = vmatprep.subr.bf16.mxu0 0
        %1638 = vmatpush2.bf16.msra.mxu0 0
        %1639 = vmatprep.subr.bf16.mxu0 0
        %1640 = vmatpush2.bf16.msra.mxu0 0
        %1641 = vmatprep.subr.bf16.mxu0 0
        %1642 = vmatpush2.bf16.msra.mxu0 0
        %1643 = vmatprep.subr.bf16.mxu0 0
        %1644 = vmatpush2.bf16.msra.mxu0 0
        %1645 = vmatprep.subr.bf16.mxu0 0
        %1646 = vmatpush2.bf16.msra.mxu0 0
        %1647 = vmatprep.mubr.bf16.mxu0 0
        %1648 = vmatmul.mubr.bf16.gmra.mxu0 %v1572
        %v1649 = vpop.f32.mrf.mxu0
        %v1650 = vadd.f32 0.0, %v1649
        %v1651 = vpop.f32.mrf.mxu0
        %v1652 = vpop.f32.mrf.mxu0
        %v1653 = vadd.f32 0.0, %v1652
        %v1654 = vpop.f32.mrf.mxu0
        %1655 = vdwg.mxu0
        %v1656 = vadd.f32 %v1352, %v1477
        %v1657 = vadd.f32 %v1353, %v1480
        %v1658 = vadd.f32 %v1354, %v1566
        %v1659 = vadd.f32 %v1355, %v1569
        %v1660 = vadd.f32 %v1356, %v1609
        %v1661 = vadd.f32 %v1357, %v1612
        %v1662 = vadd.f32 %v1358, %v1650
        %v1663 = vadd.f32 %v1359, %v1653
        %s1664 = scalar_lea.vmem %s1, 256
        %v1665 = vld [vmem:[%s1664] sm:$0xf]
        %v1666 = vld [vmem:[%s1664 + $0x4] sm:$0xf]
        %v1667 = vld [vmem:[%s1664 + $0x8] sm:$0xf]
        %v1668 = vld [vmem:[%s1664 + $0xc] sm:$0xf]
        %v1669 = vld [vmem:[%s1664 + $0x10] sm:$0xf]
        %v1670 = vld [vmem:[%s1664 + $0x14] sm:$0xf]
        %v1671 = vld [vmem:[%s1664 + $0x18] sm:$0xf]
        %v1672 = vld [vmem:[%s1664 + $0x1c] sm:$0xf]
        %v1673 = vld [vmem:[%s1664 + $0x20] sm:$0xf]
        %v1674 = vld [vmem:[%s1664 + $0x24] sm:$0xf]
        %v1675 = vld [vmem:[%s1664 + $0x28] sm:$0xf]
        %v1676 = vld [vmem:[%s1664 + $0x2c] sm:$0xf]
        %v1677 = vld [vmem:[%s1664 + $0x30] sm:$0xf]
        %v1678 = vld [vmem:[%s1664 + $0x34] sm:$0xf]
        %v1679 = vld [vmem:[%s1664 + $0x38] sm:$0xf]
        %v1680 = vld [vmem:[%s1664 + $0x3c] sm:$0xf]
        %s1681 = scalar_lea.vmem %s2, 256
        %v1682 = vld [vmem:[%s1681] sm:$0xf]
        %v1683 = vld [vmem:[%s1681 + $0x4] sm:$0xf]
        %v1684 = vld [vmem:[%s1681 + $0x8] sm:$0xf]
        %v1685 = vld [vmem:[%s1681 + $0xc] sm:$0xf]
        %v1686 = vld [vmem:[%s1681 + $0x10] sm:$0xf]
        %v1687 = vld [vmem:[%s1681 + $0x14] sm:$0xf]
        %v1688 = vld [vmem:[%s1681 + $0x18] sm:$0xf]
        %v1689 = vld [vmem:[%s1681 + $0x1c] sm:$0xf]
        %v1690 = vld [vmem:[%s1681 + $0x20] sm:$0xf]
        %v1691 = vld [vmem:[%s1681 + $0x24] sm:$0xf]
        %v1692 = vld [vmem:[%s1681 + $0x28] sm:$0xf]
        %v1693 = vld [vmem:[%s1681 + $0x2c] sm:$0xf]
        %v1694 = vld [vmem:[%s1681 + $0x30] sm:$0xf]
        %v1695 = vld [vmem:[%s1681 + $0x34] sm:$0xf]
        %v1696 = vld [vmem:[%s1681 + $0x38] sm:$0xf]
        %v1697 = vld [vmem:[%s1681 + $0x3c] sm:$0xf]
        %v1714 = vunpack.c.l.b16 %v1665
        %v1715 = vunpack.c.l.b16 %v1666
        %v1716 = vunpack.c.l.b16 %v1667
        %v1717 = vunpack.c.l.b16 %v1668
        %v1718 = vunpack.c.l.b16 %v1669
        %v1719 = vunpack.c.l.b16 %v1670
        %v1720 = vunpack.c.l.b16 %v1671
        %v1721 = vunpack.c.l.b16 %v1672
        %v1722 = vunpack.c.l.b16 %v1673
        %v1723 = vunpack.c.l.b16 %v1674
        %v1724 = vunpack.c.l.b16 %v1675
        %v1725 = vunpack.c.l.b16 %v1676
        %v1726 = vunpack.c.l.b16 %v1677
        %v1727 = vunpack.c.l.b16 %v1678
        %v1728 = vunpack.c.l.b16 %v1679
        %v1729 = vunpack.c.l.b16 %v1680
        %v1730 = vpack.c.b16 %v1715, %v1714
        %v1731 = vpack.c.b16 %v1717, %v1716
        %v1732 = vpack.c.b16 %v1719, %v1718
        %v1733 = vpack.c.b16 %v1721, %v1720
        %v1734 = vpack.c.b16 %v1723, %v1722
        %v1735 = vpack.c.b16 %v1725, %v1724
        %v1736 = vpack.c.b16 %v1727, %v1726
        %v1737 = vpack.c.b16 %v1729, %v1728
        %1746 = vmatprep.subr.bf16.mxu0 0
        %1747 = vmatpush1.bf16.msra.mxu0 %v1737
        %1748 = vmatprep.subr.bf16.mxu0 0
        %1749 = vmatpush1.bf16.msra.mxu0 %v1736
        %1750 = vmatprep.subr.bf16.mxu0 0
        %1751 = vmatpush1.bf16.msra.mxu0 %v1735
        %1752 = vmatprep.subr.bf16.mxu0 0
        %1753 = vmatpush1.bf16.msra.mxu0 %v1734
        %1754 = vmatprep.subr.bf16.mxu0 0
        %1755 = vmatpush1.bf16.msra.mxu0 %v1733
        %1756 = vmatprep.subr.bf16.mxu0 0
        %1757 = vmatpush1.bf16.msra.mxu0 %v1732
        %1758 = vmatprep.subr.bf16.mxu0 0
        %1759 = vmatpush1.bf16.msra.mxu0 %v1731
        %1760 = vmatprep.subr.bf16.mxu0 0
        %1761 = vmatpush1.bf16.msra.mxu0 %v1730
        %1762 = vmatprep.subr.bf16.mxu0 0
        %1763 = vmatpush2.bf16.msra.mxu0 0
        %1764 = vmatprep.subr.bf16.mxu0 0
        %1765 = vmatpush2.bf16.msra.mxu0 0
        %1766 = vmatprep.subr.bf16.mxu0 0
        %1767 = vmatpush2.bf16.msra.mxu0 0
        %1768 = vmatprep.subr.bf16.mxu0 0
        %1769 = vmatpush2.bf16.msra.mxu0 0
        %1770 = vmatprep.subr.bf16.mxu0 0
        %1771 = vmatpush2.bf16.msra.mxu0 0
        %1772 = vmatprep.subr.bf16.mxu0 0
        %1773 = vmatpush2.bf16.msra.mxu0 0
        %1774 = vmatprep.subr.bf16.mxu0 0
        %1775 = vmatpush2.bf16.msra.mxu0 0
        %1776 = vmatprep.subr.bf16.mxu0 0
        %1777 = vmatpush2.bf16.msra.mxu0 0
        %1778 = vmatprep.mubr.bf16.mxu0 0
        %1779 = vmatmul.mubr.bf16.gmra.mxu0 %v1572
        %v1780 = vpop.f32.mrf.mxu0
        %v1781 = vadd.f32 0.0, %v1780
        %v1782 = vpop.f32.mrf.mxu0
        %v1783 = vpop.f32.mrf.mxu0
        %v1784 = vadd.f32 0.0, %v1783
        %v1785 = vpop.f32.mrf.mxu0
        %1786 = vdwg.mxu0
        %v1803 = vunpack.c.l.b16 %v1682
        %v1804 = vunpack.c.l.b16 %v1683
        %v1805 = vunpack.c.l.b16 %v1684
        %v1806 = vunpack.c.l.b16 %v1685
        %v1807 = vunpack.c.l.b16 %v1686
        %v1808 = vunpack.c.l.b16 %v1687
        %v1809 = vunpack.c.l.b16 %v1688
        %v1810 = vunpack.c.l.b16 %v1689
        %v1811 = vunpack.c.l.b16 %v1690
        %v1812 = vunpack.c.l.b16 %v1691
        %v1813 = vunpack.c.l.b16 %v1692
        %v1814 = vunpack.c.l.b16 %v1693
        %v1815 = vunpack.c.l.b16 %v1694
        %v1816 = vunpack.c.l.b16 %v1695
        %v1817 = vunpack.c.l.b16 %v1696
        %v1818 = vunpack.c.l.b16 %v1697
        %v1819 = vpack.c.b16 %v1804, %v1803
        %v1820 = vpack.c.b16 %v1806, %v1805
        %v1821 = vpack.c.b16 %v1808, %v1807
        %v1822 = vpack.c.b16 %v1810, %v1809
        %v1823 = vpack.c.b16 %v1812, %v1811
        %v1824 = vpack.c.b16 %v1814, %v1813
        %v1825 = vpack.c.b16 %v1816, %v1815
        %v1826 = vpack.c.b16 %v1818, %v1817
        %1835 = vmatprep.subr.bf16.mxu0 0
        %1836 = vmatpush1.bf16.msra.mxu0 %v1826
        %1837 = vmatprep.subr.bf16.mxu0 0
        %1838 = vmatpush1.bf16.msra.mxu0 %v1825
        %1839 = vmatprep.subr.bf16.mxu0 0
        %1840 = vmatpush1.bf16.msra.mxu0 %v1824
        %1841 = vmatprep.subr.bf16.mxu0 0
        %1842 = vmatpush1.bf16.msra.mxu0 %v1823
        %1843 = vmatprep.subr.bf16.mxu0 0
        %1844 = vmatpush1.bf16.msra.mxu0 %v1822
        %1845 = vmatprep.subr.bf16.mxu0 0
        %1846 = vmatpush1.bf16.msra.mxu0 %v1821
        %1847 = vmatprep.subr.bf16.mxu0 0
        %1848 = vmatpush1.bf16.msra.mxu0 %v1820
        %1849 = vmatprep.subr.bf16.mxu0 0
        %1850 = vmatpush1.bf16.msra.mxu0 %v1819
        %1851 = vmatprep.subr.bf16.mxu0 0
        %1852 = vmatpush2.bf16.msra.mxu0 0
        %1853 = vmatprep.subr.bf16.mxu0 0
        %1854 = vmatpush2.bf16.msra.mxu0 0
        %1855 = vmatprep.subr.bf16.mxu0 0
        %1856 = vmatpush2.bf16.msra.mxu0 0
        %1857 = vmatprep.subr.bf16.mxu0 0
        %1858 = vmatpush2.bf16.msra.mxu0 0
        %1859 = vmatprep.subr.bf16.mxu0 0
        %1860 = vmatpush2.bf16.msra.mxu0 0
        %1861 = vmatprep.subr.bf16.mxu0 0
        %1862 = vmatpush2.bf16.msra.mxu0 0
        %1863 = vmatprep.subr.bf16.mxu0 0
        %1864 = vmatpush2.bf16.msra.mxu0 0
        %1865 = vmatprep.subr.bf16.mxu0 0
        %1866 = vmatpush2.bf16.msra.mxu0 0
        %1867 = vmatprep.mubr.bf16.mxu0 0
        %1868 = vmatmul.mubr.bf16.gmra.mxu0 %v1572
        %v1869 = vpop.f32.mrf.mxu0
        %v1870 = vadd.f32 0.0, %v1869
        %v1871 = vpop.f32.mrf.mxu0
        %v1872 = vpop.f32.mrf.mxu0
        %v1873 = vadd.f32 0.0, %v1872
        %v1874 = vpop.f32.mrf.mxu0
        %1875 = vdwg.mxu0
        %v1876 = vrot.slane %v514, 1
        %1878 = vmatprep.subr.bf16.mxu0 0
        %1879 = vmatpush1.bf16.msra.mxu0 %v1737
        %1880 = vmatprep.subr.bf16.mxu0 0
        %1881 = vmatpush1.bf16.msra.mxu0 %v1736
        %1882 = vmatprep.subr.bf16.mxu0 0
        %1883 = vmatpush1.bf16.msra.mxu0 %v1735
        %1884 = vmatprep.subr.bf16.mxu0 0
        %1885 = vmatpush1.bf16.msra.mxu0 %v1734
        %1886 = vmatprep.subr.bf16.mxu0 0
        %1887 = vmatpush1.bf16.msra.mxu0 %v1733
        %1888 = vmatprep.subr.bf16.mxu0 0
        %1889 = vmatpush1.bf16.msra.mxu0 %v1732
        %1890 = vmatprep.subr.bf16.mxu0 0
        %1891 = vmatpush1.bf16.msra.mxu0 %v1731
        %1892 = vmatprep.subr.bf16.mxu0 0
        %1893 = vmatpush1.bf16.msra.mxu0 %v1730
        %1894 = vmatprep.subr.bf16.mxu0 0
        %1895 = vmatpush2.bf16.msra.mxu0 0
        %1896 = vmatprep.subr.bf16.mxu0 0
        %1897 = vmatpush2.bf16.msra.mxu0 0
        %1898 = vmatprep.subr.bf16.mxu0 0
        %1899 = vmatpush2.bf16.msra.mxu0 0
        %1900 = vmatprep.subr.bf16.mxu0 0
        %1901 = vmatpush2.bf16.msra.mxu0 0
        %1902 = vmatprep.subr.bf16.mxu0 0
        %1903 = vmatpush2.bf16.msra.mxu0 0
        %1904 = vmatprep.subr.bf16.mxu0 0
        %1905 = vmatpush2.bf16.msra.mxu0 0
        %1906 = vmatprep.subr.bf16.mxu0 0
        %1907 = vmatpush2.bf16.msra.mxu0 0
        %1908 = vmatprep.subr.bf16.mxu0 0
        %1909 = vmatpush2.bf16.msra.mxu0 0
        %1910 = vmatprep.mubr.bf16.mxu0 0
        %1911 = vmatmul.mubr.bf16.gmra.mxu0 %v1876
        %v1912 = vpop.f32.mrf.mxu0
        %v1913 = vadd.f32 0.0, %v1912
        %v1914 = vpop.f32.mrf.mxu0
        %v1915 = vpop.f32.mrf.mxu0
        %v1916 = vadd.f32 0.0, %v1915
        %v1917 = vpop.f32.mrf.mxu0
        %1918 = vdwg.mxu0
        %1919 = vmatprep.subr.bf16.mxu0 0
        %1920 = vmatpush1.bf16.msra.mxu0 %v1826
        %1921 = vmatprep.subr.bf16.mxu0 0
        %1922 = vmatpush1.bf16.msra.mxu0 %v1825
        %1923 = vmatprep.subr.bf16.mxu0 0
        %1924 = vmatpush1.bf16.msra.mxu0 %v1824
        %1925 = vmatprep.subr.bf16.mxu0 0
        %1926 = vmatpush1.bf16.msra.mxu0 %v1823
        %1927 = vmatprep.subr.bf16.mxu0 0
        %1928 = vmatpush1.bf16.msra.mxu0 %v1822
        %1929 = vmatprep.subr.bf16.mxu0 0
        %1930 = vmatpush1.bf16.msra.mxu0 %v1821
        %1931 = vmatprep.subr.bf16.mxu0 0
        %1932 = vmatpush1.bf16.msra.mxu0 %v1820
        %1933 = vmatprep.subr.bf16.mxu0 0
        %1934 = vmatpush1.bf16.msra.mxu0 %v1819
        %1935 = vmatprep.subr.bf16.mxu0 0
        %1936 = vmatpush2.bf16.msra.mxu0 0
        %1937 = vmatprep.subr.bf16.mxu0 0
        %1938 = vmatpush2.bf16.msra.mxu0 0
        %1939 = vmatprep.subr.bf16.mxu0 0
        %1940 = vmatpush2.bf16.msra.mxu0 0
        %1941 = vmatprep.subr.bf16.mxu0 0
        %1942 = vmatpush2.bf16.msra.mxu0 0
        %1943 = vmatprep.subr.bf16.mxu0 0
        %1944 = vmatpush2.bf16.msra.mxu0 0
        %1945 = vmatprep.subr.bf16.mxu0 0
        %1946 = vmatpush2.bf16.msra.mxu0 0
        %1947 = vmatprep.subr.bf16.mxu0 0
        %1948 = vmatpush2.bf16.msra.mxu0 0
        %1949 = vmatprep.subr.bf16.mxu0 0
        %1950 = vmatpush2.bf16.msra.mxu0 0
        %1951 = vmatprep.mubr.bf16.mxu0 0
        %1952 = vmatmul.mubr.bf16.gmra.mxu0 %v1876
        %v1953 = vpop.f32.mrf.mxu0
        %v1954 = vadd.f32 0.0, %v1953
        %v1955 = vpop.f32.mrf.mxu0
        %v1956 = vpop.f32.mrf.mxu0
        %v1957 = vadd.f32 0.0, %v1956
        %v1958 = vpop.f32.mrf.mxu0
        %1959 = vdwg.mxu0
        %v1960 = vadd.f32 %v1656, %v1781
        %v1961 = vadd.f32 %v1657, %v1784
        %v1962 = vadd.f32 %v1658, %v1870
        %v1963 = vadd.f32 %v1659, %v1873
        %v1964 = vadd.f32 %v1660, %v1913
        %v1965 = vadd.f32 %v1661, %v1916
        %v1966 = vadd.f32 %v1662, %v1954
        %v1967 = vadd.f32 %v1663, %v1957
        %v1968 = vmax.f32 %v1960, %v1962
        %v1969 = vmax.f32 %v1961, %v1963
        %v1970 = vmax.f32 %v1964, %v1966
        %v1971 = vmax.f32 %v1965, %v1967
        %v1972 = vmax.f32 %v1968, %v1970
        %v1973 = vmax.f32 %v1969, %v1971
        %v1974 = vld [vmem:[%s3] sm:$0x1]
        %v1976 = vlaneseq
        %v1977 = vshrl.u32 %v1976, 7
        %v1978 = vsub.s32 0, %v1977
        %v1979 = vrot.slane %v1974, %v1978
        %v1981 = vadd.f32 %v1972, %v1979
        %v1982 = vadd.f32 %v1973, %v1979
        %v1983 = vmax.f32 %v1981, 0.0
        %v1984 = vmax.f32 %v1982, 0.0
        %v1985 = vpack.c.bf16 %v1984, %v1983
        %v1986 = vld [vmem:[%s4] sm:$0xf]
        %v1987 = vld [vmem:[%s4 + $0x4] sm:$0xf]
        %v1988 = vld [vmem:[%s4 + $0x8] sm:$0xf]
        %v1989 = vld [vmem:[%s4 + $0xc] sm:$0xf]
        %v1990 = vld [vmem:[%s4 + $0x10] sm:$0xf]
        %v1991 = vld [vmem:[%s4 + $0x14] sm:$0xf]
        %v1992 = vld [vmem:[%s4 + $0x18] sm:$0xf]
        %v1993 = vld [vmem:[%s4 + $0x1c] sm:$0xf]
        %v1994 = vld [vmem:[%s4 + $0x20] sm:$0xf]
        %v1995 = vld [vmem:[%s4 + $0x24] sm:$0xf]
        %v1996 = vld [vmem:[%s4 + $0x28] sm:$0xf]
        %v1997 = vld [vmem:[%s4 + $0x2c] sm:$0xf]
        %v1998 = vld [vmem:[%s4 + $0x30] sm:$0xf]
        %v1999 = vld [vmem:[%s4 + $0x34] sm:$0xf]
        %v2000 = vld [vmem:[%s5] sm:$0xf]
        %v2001 = vld [vmem:[%s5 + $0x4] sm:$0xf]
        %v2002 = vld [vmem:[%s5 + $0x8] sm:$0xf]
        %v2003 = vld [vmem:[%s5 + $0xc] sm:$0xf]
        %v2004 = vld [vmem:[%s5 + $0x10] sm:$0xf]
        %v2005 = vld [vmem:[%s5 + $0x14] sm:$0xf]
        %v2006 = vld [vmem:[%s5 + $0x18] sm:$0xf]
        %v2007 = vld [vmem:[%s5 + $0x1c] sm:$0xf]
        %v2008 = vld [vmem:[%s5 + $0x20] sm:$0xf]
        %v2009 = vld [vmem:[%s5 + $0x24] sm:$0xf]
        %v2010 = vld [vmem:[%s5 + $0x28] sm:$0xf]
        %v2011 = vld [vmem:[%s5 + $0x2c] sm:$0xf]
        %v2012 = vld [vmem:[%s5 + $0x30] sm:$0xf]
        %v2013 = vld [vmem:[%s5 + $0x34] sm:$0xf]
        %s2014 = scalar_lea.vmem %s4, 56
        %v2015 = vld [vmem:[%s2014] sm:$0xf]
        %v2016 = vld [vmem:[%s2014 + $0x4] sm:$0xf]
        %v2017 = vld [vmem:[%s2014 + $0x8] sm:$0xf]
        %v2018 = vld [vmem:[%s2014 + $0xc] sm:$0xf]
        %v2019 = vld [vmem:[%s2014 + $0x10] sm:$0xf]
        %v2020 = vld [vmem:[%s2014 + $0x14] sm:$0xf]
        %v2021 = vld [vmem:[%s2014 + $0x18] sm:$0xf]
        %v2022 = vld [vmem:[%s2014 + $0x1c] sm:$0xf]
        %v2023 = vld [vmem:[%s2014 + $0x20] sm:$0xf]
        %v2024 = vld [vmem:[%s2014 + $0x24] sm:$0xf]
        %v2025 = vld [vmem:[%s2014 + $0x28] sm:$0xf]
        %v2026 = vld [vmem:[%s2014 + $0x2c] sm:$0xf]
        %v2027 = vld [vmem:[%s2014 + $0x30] sm:$0xf]
        %v2028 = vld [vmem:[%s2014 + $0x34] sm:$0xf]
        %v2030 = vshrl.u32 %v1985, 16
        %v2032 = vshll.u32 %v1985, 16
        %v2034 = vrot.slane %v2032, 1
        %v2035 = vor.u32 %v2030, %v2034
        %v2050 = vunpack.c.l.b16 %v2015
        %v2051 = vunpack.c.l.b16 %v2016
        %v2052 = vunpack.c.l.b16 %v2017
        %v2053 = vunpack.c.l.b16 %v2018
        %v2054 = vunpack.c.l.b16 %v2019
        %v2055 = vunpack.c.l.b16 %v2020
        %v2056 = vunpack.c.l.b16 %v2021
        %v2057 = vunpack.c.l.b16 %v2022
        %v2058 = vunpack.c.l.b16 %v2023
        %v2059 = vunpack.c.l.b16 %v2024
        %v2060 = vunpack.c.l.b16 %v2025
        %v2061 = vunpack.c.l.b16 %v2026
        %v2062 = vunpack.c.l.b16 %v2027
        %v2063 = vunpack.c.l.b16 %v2028
        %v2064 = vpack.c.b16 %v2051, %v2050
        %v2065 = vpack.c.b16 %v2053, %v2052
        %v2066 = vpack.c.b16 %v2055, %v2054
        %v2067 = vpack.c.b16 %v2057, %v2056
        %v2068 = vpack.c.b16 %v2059, %v2058
        %v2069 = vpack.c.b16 %v2061, %v2060
        %v2070 = vpack.c.b16 %v2063, %v2062
        %vm2078 = vcmask 916480
        %v2080 = vsel %vm2078, %v2035, 0
        %2082 = vmatprep.subr.bf16.mxu0 0
        %2083 = vmatpush1.bf16.msra.mxu0 0
        %2084 = vmatprep.subr.bf16.mxu0 0
        %2085 = vmatpush1.bf16.msra.mxu0 %v2070
        %2086 = vmatprep.subr.bf16.mxu0 0
        %2087 = vmatpush1.bf16.msra.mxu0 %v2069
        %2088 = vmatprep.subr.bf16.mxu0 0
        %2089 = vmatpush1.bf16.msra.mxu0 %v2068
        %2090 = vmatprep.subr.bf16.mxu0 0
        %2091 = vmatpush1.bf16.msra.mxu0 %v2067
        %2092 = vmatprep.subr.bf16.mxu0 0
        %2093 = vmatpush1.bf16.msra.mxu0 %v2066
        %2094 = vmatprep.subr.bf16.mxu0 0
        %2095 = vmatpush1.bf16.msra.mxu0 %v2065
        %2096 = vmatprep.subr.bf16.mxu0 0
        %2097 = vmatpush1.bf16.msra.mxu0 %v2064
        %2098 = vmatprep.subr.bf16.mxu0 0
        %2099 = vmatpush2.bf16.msra.mxu0 0
        %2100 = vmatprep.subr.bf16.mxu0 0
        %2101 = vmatpush2.bf16.msra.mxu0 0
        %2102 = vmatprep.subr.bf16.mxu0 0
        %2103 = vmatpush2.bf16.msra.mxu0 0
        %2104 = vmatprep.subr.bf16.mxu0 0
        %2105 = vmatpush2.bf16.msra.mxu0 0
        %2106 = vmatprep.subr.bf16.mxu0 0
        %2107 = vmatpush2.bf16.msra.mxu0 0
        %2108 = vmatprep.subr.bf16.mxu0 0
        %2109 = vmatpush2.bf16.msra.mxu0 0
        %2110 = vmatprep.subr.bf16.mxu0 0
        %2111 = vmatpush2.bf16.msra.mxu0 0
        %2112 = vmatprep.subr.bf16.mxu0 0
        %2113 = vmatpush2.bf16.msra.mxu0 0
        %2114 = vmatprep.mubr.bf16.mxu0 0
        %2115 = vmatmul.mubr.bf16.gmra.mxu0 %v2080
        %v2116 = vpop.f32.mrf.mxu0
        %v2117 = vadd.f32 0.0, %v2116
        %v2118 = vpop.f32.mrf.mxu0
        %v2119 = vpop.f32.mrf.mxu0
        %v2120 = vadd.f32 0.0, %v2119
        %v2121 = vpop.f32.mrf.mxu0
        %2122 = vdwg.mxu0
        %s2123 = scalar_lea.vmem %s5, 56
        %v2124 = vld [vmem:[%s2123] sm:$0xf]
        %v2125 = vld [vmem:[%s2123 + $0x4] sm:$0xf]
        %v2126 = vld [vmem:[%s2123 + $0x8] sm:$0xf]
        %v2127 = vld [vmem:[%s2123 + $0xc] sm:$0xf]
        %v2128 = vld [vmem:[%s2123 + $0x10] sm:$0xf]
        %v2129 = vld [vmem:[%s2123 + $0x14] sm:$0xf]
        %v2130 = vld [vmem:[%s2123 + $0x18] sm:$0xf]
        %v2131 = vld [vmem:[%s2123 + $0x1c] sm:$0xf]
        %v2132 = vld [vmem:[%s2123 + $0x20] sm:$0xf]
        %v2133 = vld [vmem:[%s2123 + $0x24] sm:$0xf]
        %v2134 = vld [vmem:[%s2123 + $0x28] sm:$0xf]
        %v2135 = vld [vmem:[%s2123 + $0x2c] sm:$0xf]
        %v2136 = vld [vmem:[%s2123 + $0x30] sm:$0xf]
        %v2137 = vld [vmem:[%s2123 + $0x34] sm:$0xf]
        %v2152 = vunpack.c.l.b16 %v2124
        %v2153 = vunpack.c.l.b16 %v2125
        %v2154 = vunpack.c.l.b16 %v2126
        %v2155 = vunpack.c.l.b16 %v2127
        %v2156 = vunpack.c.l.b16 %v2128
        %v2157 = vunpack.c.l.b16 %v2129
        %v2158 = vunpack.c.l.b16 %v2130
        %v2159 = vunpack.c.l.b16 %v2131
        %v2160 = vunpack.c.l.b16 %v2132
        %v2161 = vunpack.c.l.b16 %v2133
        %v2162 = vunpack.c.l.b16 %v2134
        %v2163 = vunpack.c.l.b16 %v2135
        %v2164 = vunpack.c.l.b16 %v2136
        %v2165 = vunpack.c.l.b16 %v2137
        %v2166 = vpack.c.b16 %v2153, %v2152
        %v2167 = vpack.c.b16 %v2155, %v2154
        %v2168 = vpack.c.b16 %v2157, %v2156
        %v2169 = vpack.c.b16 %v2159, %v2158
        %v2170 = vpack.c.b16 %v2161, %v2160
        %v2171 = vpack.c.b16 %v2163, %v2162
        %v2172 = vpack.c.b16 %v2165, %v2164
        %2180 = vmatprep.subr.bf16.mxu0 0
        %2181 = vmatpush1.bf16.msra.mxu0 0
        %2182 = vmatprep.subr.bf16.mxu0 0
        %2183 = vmatpush1.bf16.msra.mxu0 %v2172
        %2184 = vmatprep.subr.bf16.mxu0 0
        %2185 = vmatpush1.bf16.msra.mxu0 %v2171
        %2186 = vmatprep.subr.bf16.mxu0 0
        %2187 = vmatpush1.bf16.msra.mxu0 %v2170
        %2188 = vmatprep.subr.bf16.mxu0 0
        %2189 = vmatpush1.bf16.msra.mxu0 %v2169
        %2190 = vmatprep.subr.bf16.mxu0 0
        %2191 = vmatpush1.bf16.msra.mxu0 %v2168
        %2192 = vmatprep.subr.bf16.mxu0 0
        %2193 = vmatpush1.bf16.msra.mxu0 %v2167
        %2194 = vmatprep.subr.bf16.mxu0 0
        %2195 = vmatpush1.bf16.msra.mxu0 %v2166
        %2196 = vmatprep.subr.bf16.mxu0 0
        %2197 = vmatpush2.bf16.msra.mxu0 0
        %2198 = vmatprep.subr.bf16.mxu0 0
        %2199 = vmatpush2.bf16.msra.mxu0 0
        %2200 = vmatprep.subr.bf16.mxu0 0
        %2201 = vmatpush2.bf16.msra.mxu0 0
        %2202 = vmatprep.subr.bf16.mxu0 0
        %2203 = vmatpush2.bf16.msra.mxu0 0
        %2204 = vmatprep.subr.bf16.mxu0 0
        %2205 = vmatpush2.bf16.msra.mxu0 0
        %2206 = vmatprep.subr.bf16.mxu0 0
        %2207 = vmatpush2.bf16.msra.mxu0 0
        %2208 = vmatprep.subr.bf16.mxu0 0
        %2209 = vmatpush2.bf16.msra.mxu0 0
        %2210 = vmatprep.subr.bf16.mxu0 0
        %2211 = vmatpush2.bf16.msra.mxu0 0
        %2212 = vmatprep.mubr.bf16.mxu0 0
        %2213 = vmatmul.mubr.bf16.gmra.mxu0 %v2080
        %v2214 = vpop.f32.mrf.mxu0
        %v2215 = vadd.f32 0.0, %v2214
        %v2216 = vpop.f32.mrf.mxu0
        %v2217 = vpop.f32.mrf.mxu0
        %v2218 = vadd.f32 0.0, %v2217
        %v2219 = vpop.f32.mrf.mxu0
        %2220 = vdwg.mxu0
        %v2235 = vunpack.c.l.b16 %v1986
        %v2236 = vunpack.c.l.b16 %v1987
        %v2237 = vunpack.c.l.b16 %v1988
        %v2238 = vunpack.c.l.b16 %v1989
        %v2239 = vunpack.c.l.b16 %v1990
        %v2240 = vunpack.c.l.b16 %v1991
        %v2241 = vunpack.c.l.b16 %v1992
        %v2242 = vunpack.c.l.b16 %v1993
        %v2243 = vunpack.c.l.b16 %v1994
        %v2244 = vunpack.c.l.b16 %v1995
        %v2245 = vunpack.c.l.b16 %v1996
        %v2246 = vunpack.c.l.b16 %v1997
        %v2247 = vunpack.c.l.b16 %v1998
        %v2248 = vunpack.c.l.b16 %v1999
        %v2249 = vpack.c.b16 %v2236, %v2235
        %v2250 = vpack.c.b16 %v2238, %v2237
        %v2251 = vpack.c.b16 %v2240, %v2239
        %v2252 = vpack.c.b16 %v2242, %v2241
        %v2253 = vpack.c.b16 %v2244, %v2243
        %v2254 = vpack.c.b16 %v2246, %v2245
        %v2255 = vpack.c.b16 %v2248, %v2247
        %v2263 = vsel %vm2078, %v1985, 0
        %2265 = vmatprep.subr.bf16.mxu0 0
        %2266 = vmatpush1.bf16.msra.mxu0 0
        %2267 = vmatprep.subr.bf16.mxu0 0
        %2268 = vmatpush1.bf16.msra.mxu0 %v2255
        %2269 = vmatprep.subr.bf16.mxu0 0
        %2270 = vmatpush1.bf16.msra.mxu0 %v2254
        %2271 = vmatprep.subr.bf16.mxu0 0
        %2272 = vmatpush1.bf16.msra.mxu0 %v2253
        %2273 = vmatprep.subr.bf16.mxu0 0
        %2274 = vmatpush1.bf16.msra.mxu0 %v2252
        %2275 = vmatprep.subr.bf16.mxu0 0
        %2276 = vmatpush1.bf16.msra.mxu0 %v2251
        %2277 = vmatprep.subr.bf16.mxu0 0
        %2278 = vmatpush1.bf16.msra.mxu0 %v2250
        %2279 = vmatprep.subr.bf16.mxu0 0
        %2280 = vmatpush1.bf16.msra.mxu0 %v2249
        %2281 = vmatprep.subr.bf16.mxu0 0
        %2282 = vmatpush2.bf16.msra.mxu0 0
        %2283 = vmatprep.subr.bf16.mxu0 0
        %2284 = vmatpush2.bf16.msra.mxu0 0
        %2285 = vmatprep.subr.bf16.mxu0 0
        %2286 = vmatpush2.bf16.msra.mxu0 0
        %2287 = vmatprep.subr.bf16.mxu0 0
        %2288 = vmatpush2.bf16.msra.mxu0 0
        %2289 = vmatprep.subr.bf16.mxu0 0
        %2290 = vmatpush2.bf16.msra.mxu0 0
        %2291 = vmatprep.subr.bf16.mxu0 0
        %2292 = vmatpush2.bf16.msra.mxu0 0
        %2293 = vmatprep.subr.bf16.mxu0 0
        %2294 = vmatpush2.bf16.msra.mxu0 0
        %2295 = vmatprep.subr.bf16.mxu0 0
        %2296 = vmatpush2.bf16.msra.mxu0 0
        %2297 = vmatprep.mubr.bf16.mxu0 0
        %2298 = vmatmul.mubr.bf16.gmra.mxu0 %v2263
        %v2299 = vpop.f32.mrf.mxu0
        %v2300 = vadd.f32 %v2117, %v2299
        %v2301 = vpop.f32.mrf.mxu0
        %v2302 = vpop.f32.mrf.mxu0
        %v2303 = vadd.f32 %v2120, %v2302
        %v2304 = vpop.f32.mrf.mxu0
        %2305 = vdwg.mxu0
        %v2320 = vunpack.c.l.b16 %v2000
        %v2321 = vunpack.c.l.b16 %v2001
        %v2322 = vunpack.c.l.b16 %v2002
        %v2323 = vunpack.c.l.b16 %v2003
        %v2324 = vunpack.c.l.b16 %v2004
        %v2325 = vunpack.c.l.b16 %v2005
        %v2326 = vunpack.c.l.b16 %v2006
        %v2327 = vunpack.c.l.b16 %v2007
        %v2328 = vunpack.c.l.b16 %v2008
        %v2329 = vunpack.c.l.b16 %v2009
        %v2330 = vunpack.c.l.b16 %v2010
        %v2331 = vunpack.c.l.b16 %v2011
        %v2332 = vunpack.c.l.b16 %v2012
        %v2333 = vunpack.c.l.b16 %v2013
        %v2334 = vpack.c.b16 %v2321, %v2320
        %v2335 = vpack.c.b16 %v2323, %v2322
        %v2336 = vpack.c.b16 %v2325, %v2324
        %v2337 = vpack.c.b16 %v2327, %v2326
        %v2338 = vpack.c.b16 %v2329, %v2328
        %v2339 = vpack.c.b16 %v2331, %v2330
        %v2340 = vpack.c.b16 %v2333, %v2332
        %2348 = vmatprep.subr.bf16.mxu0 0
        %2349 = vmatpush1.bf16.msra.mxu0 0
        %2350 = vmatprep.subr.bf16.mxu0 0
        %2351 = vmatpush1.bf16.msra.mxu0 %v2340
        %2352 = vmatprep.subr.bf16.mxu0 0
        %2353 = vmatpush1.bf16.msra.mxu0 %v2339
        %2354 = vmatprep.subr.bf16.mxu0 0
        %2355 = vmatpush1.bf16.msra.mxu0 %v2338
        %2356 = vmatprep.subr.bf16.mxu0 0
        %2357 = vmatpush1.bf16.msra.mxu0 %v2337
        %2358 = vmatprep.subr.bf16.mxu0 0
        %2359 = vmatpush1.bf16.msra.mxu0 %v2336
        %2360 = vmatprep.subr.bf16.mxu0 0
        %2361 = vmatpush1.bf16.msra.mxu0 %v2335
        %2362 = vmatprep.subr.bf16.mxu0 0
        %2363 = vmatpush1.bf16.msra.mxu0 %v2334
        %2364 = vmatprep.subr.bf16.mxu0 0
        %2365 = vmatpush2.bf16.msra.mxu0 0
        %2366 = vmatprep.subr.bf16.mxu0 0
        %2367 = vmatpush2.bf16.msra.mxu0 0
        %2368 = vmatprep.subr.bf16.mxu0 0
        %2369 = vmatpush2.bf16.msra.mxu0 0
        %2370 = vmatprep.subr.bf16.mxu0 0
        %2371 = vmatpush2.bf16.msra.mxu0 0
        %2372 = vmatprep.subr.bf16.mxu0 0
        %2373 = vmatpush2.bf16.msra.mxu0 0
        %2374 = vmatprep.subr.bf16.mxu0 0
        %2375 = vmatpush2.bf16.msra.mxu0 0
        %2376 = vmatprep.subr.bf16.mxu0 0
        %2377 = vmatpush2.bf16.msra.mxu0 0
        %2378 = vmatprep.subr.bf16.mxu0 0
        %2379 = vmatpush2.bf16.msra.mxu0 0
        %2380 = vmatprep.mubr.bf16.mxu0 0
        %2381 = vmatmul.mubr.bf16.gmra.mxu0 %v2263
        %v2382 = vpop.f32.mrf.mxu0
        %v2383 = vadd.f32 %v2215, %v2382
        %v2384 = vpop.f32.mrf.mxu0
        %v2385 = vpop.f32.mrf.mxu0
        %v2386 = vadd.f32 %v2218, %v2385
        %v2387 = vpop.f32.mrf.mxu0
        %2388 = vdwg.mxu0
        %s2389 = scalar_lea.vmem %s4, 112
        %v2390 = vld [vmem:[%s2389] sm:$0xf]
        %v2391 = vld [vmem:[%s2389 + $0x4] sm:$0xf]
        %v2392 = vld [vmem:[%s2389 + $0x8] sm:$0xf]
        %v2393 = vld [vmem:[%s2389 + $0xc] sm:$0xf]
        %v2394 = vld [vmem:[%s2389 + $0x10] sm:$0xf]
        %v2395 = vld [vmem:[%s2389 + $0x14] sm:$0xf]
        %v2396 = vld [vmem:[%s2389 + $0x18] sm:$0xf]
        %v2397 = vld [vmem:[%s2389 + $0x1c] sm:$0xf]
        %v2398 = vld [vmem:[%s2389 + $0x20] sm:$0xf]
        %v2399 = vld [vmem:[%s2389 + $0x24] sm:$0xf]
        %v2400 = vld [vmem:[%s2389 + $0x28] sm:$0xf]
        %v2401 = vld [vmem:[%s2389 + $0x2c] sm:$0xf]
        %v2402 = vld [vmem:[%s2389 + $0x30] sm:$0xf]
        %v2403 = vld [vmem:[%s2389 + $0x34] sm:$0xf]
        %v2405 = vrot.slane %v1985, 1
        %v2420 = vunpack.c.l.b16 %v2390
        %v2421 = vunpack.c.l.b16 %v2391
        %v2422 = vunpack.c.l.b16 %v2392
        %v2423 = vunpack.c.l.b16 %v2393
        %v2424 = vunpack.c.l.b16 %v2394
        %v2425 = vunpack.c.l.b16 %v2395
        %v2426 = vunpack.c.l.b16 %v2396
        %v2427 = vunpack.c.l.b16 %v2397
        %v2428 = vunpack.c.l.b16 %v2398
        %v2429 = vunpack.c.l.b16 %v2399
        %v2430 = vunpack.c.l.b16 %v2400
        %v2431 = vunpack.c.l.b16 %v2401
        %v2432 = vunpack.c.l.b16 %v2402
        %v2433 = vunpack.c.l.b16 %v2403
        %v2434 = vpack.c.b16 %v2421, %v2420
        %v2435 = vpack.c.b16 %v2423, %v2422
        %v2436 = vpack.c.b16 %v2425, %v2424
        %v2437 = vpack.c.b16 %v2427, %v2426
        %v2438 = vpack.c.b16 %v2429, %v2428
        %v2439 = vpack.c.b16 %v2431, %v2430
        %v2440 = vpack.c.b16 %v2433, %v2432
        %v2449 = vsel %vm2078, %v2405, 0
        %2451 = vmatprep.subr.bf16.mxu0 0
        %2452 = vmatpush1.bf16.msra.mxu0 0
        %2453 = vmatprep.subr.bf16.mxu0 0
        %2454 = vmatpush1.bf16.msra.mxu0 %v2440
        %2455 = vmatprep.subr.bf16.mxu0 0
        %2456 = vmatpush1.bf16.msra.mxu0 %v2439
        %2457 = vmatprep.subr.bf16.mxu0 0
        %2458 = vmatpush1.bf16.msra.mxu0 %v2438
        %2459 = vmatprep.subr.bf16.mxu0 0
        %2460 = vmatpush1.bf16.msra.mxu0 %v2437
        %2461 = vmatprep.subr.bf16.mxu0 0
        %2462 = vmatpush1.bf16.msra.mxu0 %v2436
        %2463 = vmatprep.subr.bf16.mxu0 0
        %2464 = vmatpush1.bf16.msra.mxu0 %v2435
        %2465 = vmatprep.subr.bf16.mxu0 0
        %2466 = vmatpush1.bf16.msra.mxu0 %v2434
        %2467 = vmatprep.subr.bf16.mxu0 0
        %2468 = vmatpush2.bf16.msra.mxu0 0
        %2469 = vmatprep.subr.bf16.mxu0 0
        %2470 = vmatpush2.bf16.msra.mxu0 0
        %2471 = vmatprep.subr.bf16.mxu0 0
        %2472 = vmatpush2.bf16.msra.mxu0 0
        %2473 = vmatprep.subr.bf16.mxu0 0
        %2474 = vmatpush2.bf16.msra.mxu0 0
        %2475 = vmatprep.subr.bf16.mxu0 0
        %2476 = vmatpush2.bf16.msra.mxu0 0
        %2477 = vmatprep.subr.bf16.mxu0 0
        %2478 = vmatpush2.bf16.msra.mxu0 0
        %2479 = vmatprep.subr.bf16.mxu0 0
        %2480 = vmatpush2.bf16.msra.mxu0 0
        %2481 = vmatprep.subr.bf16.mxu0 0
        %2482 = vmatpush2.bf16.msra.mxu0 0
        %2483 = vmatprep.mubr.bf16.mxu0 0
        %2484 = vmatmul.mubr.bf16.gmra.mxu0 %v2449
        %v2485 = vpop.f32.mrf.mxu0
        %v2486 = vadd.f32 0.0, %v2485
        %v2487 = vpop.f32.mrf.mxu0
        %v2488 = vpop.f32.mrf.mxu0
        %v2489 = vadd.f32 0.0, %v2488
        %v2490 = vpop.f32.mrf.mxu0
        %2491 = vdwg.mxu0
        %s2492 = scalar_lea.vmem %s5, 112
        %v2493 = vld [vmem:[%s2492] sm:$0xf]
        %v2494 = vld [vmem:[%s2492 + $0x4] sm:$0xf]
        %v2495 = vld [vmem:[%s2492 + $0x8] sm:$0xf]
        %v2496 = vld [vmem:[%s2492 + $0xc] sm:$0xf]
        %v2497 = vld [vmem:[%s2492 + $0x10] sm:$0xf]
        %v2498 = vld [vmem:[%s2492 + $0x14] sm:$0xf]
        %v2499 = vld [vmem:[%s2492 + $0x18] sm:$0xf]
        %v2500 = vld [vmem:[%s2492 + $0x1c] sm:$0xf]
        %v2501 = vld [vmem:[%s2492 + $0x20] sm:$0xf]
        %v2502 = vld [vmem:[%s2492 + $0x24] sm:$0xf]
        %v2503 = vld [vmem:[%s2492 + $0x28] sm:$0xf]
        %v2504 = vld [vmem:[%s2492 + $0x2c] sm:$0xf]
        %v2505 = vld [vmem:[%s2492 + $0x30] sm:$0xf]
        %v2506 = vld [vmem:[%s2492 + $0x34] sm:$0xf]
        %v2521 = vunpack.c.l.b16 %v2493
        %v2522 = vunpack.c.l.b16 %v2494
        %v2523 = vunpack.c.l.b16 %v2495
        %v2524 = vunpack.c.l.b16 %v2496
        %v2525 = vunpack.c.l.b16 %v2497
        %v2526 = vunpack.c.l.b16 %v2498
        %v2527 = vunpack.c.l.b16 %v2499
        %v2528 = vunpack.c.l.b16 %v2500
        %v2529 = vunpack.c.l.b16 %v2501
        %v2530 = vunpack.c.l.b16 %v2502
        %v2531 = vunpack.c.l.b16 %v2503
        %v2532 = vunpack.c.l.b16 %v2504
        %v2533 = vunpack.c.l.b16 %v2505
        %v2534 = vunpack.c.l.b16 %v2506
        %v2535 = vpack.c.b16 %v2522, %v2521
        %v2536 = vpack.c.b16 %v2524, %v2523
        %v2537 = vpack.c.b16 %v2526, %v2525
        %v2538 = vpack.c.b16 %v2528, %v2527
        %v2539 = vpack.c.b16 %v2530, %v2529
        %v2540 = vpack.c.b16 %v2532, %v2531
        %v2541 = vpack.c.b16 %v2534, %v2533
        %2549 = vmatprep.subr.bf16.mxu0 0
        %2550 = vmatpush1.bf16.msra.mxu0 0
        %2551 = vmatprep.subr.bf16.mxu0 0
        %2552 = vmatpush1.bf16.msra.mxu0 %v2541
        %2553 = vmatprep.subr.bf16.mxu0 0
        %2554 = vmatpush1.bf16.msra.mxu0 %v2540
        %2555 = vmatprep.subr.bf16.mxu0 0
        %2556 = vmatpush1.bf16.msra.mxu0 %v2539
        %2557 = vmatprep.subr.bf16.mxu0 0
        %2558 = vmatpush1.bf16.msra.mxu0 %v2538
        %2559 = vmatprep.subr.bf16.mxu0 0
        %2560 = vmatpush1.bf16.msra.mxu0 %v2537
        %2561 = vmatprep.subr.bf16.mxu0 0
        %2562 = vmatpush1.bf16.msra.mxu0 %v2536
        %2563 = vmatprep.subr.bf16.mxu0 0
        %2564 = vmatpush1.bf16.msra.mxu0 %v2535
        %2565 = vmatprep.subr.bf16.mxu0 0
        %2566 = vmatpush2.bf16.msra.mxu0 0
        %2567 = vmatprep.subr.bf16.mxu0 0
        %2568 = vmatpush2.bf16.msra.mxu0 0
        %2569 = vmatprep.subr.bf16.mxu0 0
        %2570 = vmatpush2.bf16.msra.mxu0 0
        %2571 = vmatprep.subr.bf16.mxu0 0
        %2572 = vmatpush2.bf16.msra.mxu0 0
        %2573 = vmatprep.subr.bf16.mxu0 0
        %2574 = vmatpush2.bf16.msra.mxu0 0
        %2575 = vmatprep.subr.bf16.mxu0 0
        %2576 = vmatpush2.bf16.msra.mxu0 0
        %2577 = vmatprep.subr.bf16.mxu0 0
        %2578 = vmatpush2.bf16.msra.mxu0 0
        %2579 = vmatprep.subr.bf16.mxu0 0
        %2580 = vmatpush2.bf16.msra.mxu0 0
        %2581 = vmatprep.mubr.bf16.mxu0 0
        %2582 = vmatmul.mubr.bf16.gmra.mxu0 %v2449
        %v2583 = vpop.f32.mrf.mxu0
        %v2584 = vadd.f32 0.0, %v2583
        %v2585 = vpop.f32.mrf.mxu0
        %v2586 = vpop.f32.mrf.mxu0
        %v2587 = vadd.f32 0.0, %v2586
        %v2588 = vpop.f32.mrf.mxu0
        %2589 = vdwg.mxu0
        %v2590 = vadd.f32 %v2300, %v2486
        %v2591 = vadd.f32 %v2303, %v2489
        %v2592 = vadd.f32 %v2383, %v2584
        %v2593 = vadd.f32 %v2386, %v2587
        %s2594 = scalar_lea.vmem %s4, 168
        %v2595 = vld [vmem:[%s2594] sm:$0xf]
        %v2596 = vld [vmem:[%s2594 + $0x4] sm:$0xf]
        %v2597 = vld [vmem:[%s2594 + $0x8] sm:$0xf]
        %v2598 = vld [vmem:[%s2594 + $0xc] sm:$0xf]
        %v2599 = vld [vmem:[%s2594 + $0x10] sm:$0xf]
        %v2600 = vld [vmem:[%s2594 + $0x14] sm:$0xf]
        %v2601 = vld [vmem:[%s2594 + $0x18] sm:$0xf]
        %v2602 = vld [vmem:[%s2594 + $0x1c] sm:$0xf]
        %v2603 = vld [vmem:[%s2594 + $0x20] sm:$0xf]
        %v2604 = vld [vmem:[%s2594 + $0x24] sm:$0xf]
        %v2605 = vld [vmem:[%s2594 + $0x28] sm:$0xf]
        %v2606 = vld [vmem:[%s2594 + $0x2c] sm:$0xf]
        %v2607 = vld [vmem:[%s2594 + $0x30] sm:$0xf]
        %v2608 = vld [vmem:[%s2594 + $0x34] sm:$0xf]
        %v2609 = vrot.slane %v2030, 1
        %v2610 = vrot.slane %v2032, 2
        %v2611 = vor.u32 %v2609, %v2610
        %v2626 = vunpack.c.l.b16 %v2595
        %v2627 = vunpack.c.l.b16 %v2596
        %v2628 = vunpack.c.l.b16 %v2597
        %v2629 = vunpack.c.l.b16 %v2598
        %v2630 = vunpack.c.l.b16 %v2599
        %v2631 = vunpack.c.l.b16 %v2600
        %v2632 = vunpack.c.l.b16 %v2601
        %v2633 = vunpack.c.l.b16 %v2602
        %v2634 = vunpack.c.l.b16 %v2603
        %v2635 = vunpack.c.l.b16 %v2604
        %v2636 = vunpack.c.l.b16 %v2605
        %v2637 = vunpack.c.l.b16 %v2606
        %v2638 = vunpack.c.l.b16 %v2607
        %v2639 = vunpack.c.l.b16 %v2608
        %v2640 = vpack.c.b16 %v2627, %v2626
        %v2641 = vpack.c.b16 %v2629, %v2628
        %v2642 = vpack.c.b16 %v2631, %v2630
        %v2643 = vpack.c.b16 %v2633, %v2632
        %v2644 = vpack.c.b16 %v2635, %v2634
        %v2645 = vpack.c.b16 %v2637, %v2636
        %v2646 = vpack.c.b16 %v2639, %v2638
        %v2655 = vsel %vm2078, %v2611, 0
        %2657 = vmatprep.subr.bf16.mxu0 0
        %2658 = vmatpush1.bf16.msra.mxu0 0
        %2659 = vmatprep.subr.bf16.mxu0 0
        %2660 = vmatpush1.bf16.msra.mxu0 %v2646
        %2661 = vmatprep.subr.bf16.mxu0 0
        %2662 = vmatpush1.bf16.msra.mxu0 %v2645
        %2663 = vmatprep.subr.bf16.mxu0 0
        %2664 = vmatpush1.bf16.msra.mxu0 %v2644
        %2665 = vmatprep.subr.bf16.mxu0 0
        %2666 = vmatpush1.bf16.msra.mxu0 %v2643
        %2667 = vmatprep.subr.bf16.mxu0 0
        %2668 = vmatpush1.bf16.msra.mxu0 %v2642
        %2669 = vmatprep.subr.bf16.mxu0 0
        %2670 = vmatpush1.bf16.msra.mxu0 %v2641
        %2671 = vmatprep.subr.bf16.mxu0 0
        %2672 = vmatpush1.bf16.msra.mxu0 %v2640
        %2673 = vmatprep.subr.bf16.mxu0 0
        %2674 = vmatpush2.bf16.msra.mxu0 0
        %2675 = vmatprep.subr.bf16.mxu0 0
        %2676 = vmatpush2.bf16.msra.mxu0 0
        %2677 = vmatprep.subr.bf16.mxu0 0
        %2678 = vmatpush2.bf16.msra.mxu0 0
        %2679 = vmatprep.subr.bf16.mxu0 0
        %2680 = vmatpush2.bf16.msra.mxu0 0
        %2681 = vmatprep.subr.bf16.mxu0 0
        %2682 = vmatpush2.bf16.msra.mxu0 0
        %2683 = vmatprep.subr.bf16.mxu0 0
        %2684 = vmatpush2.bf16.msra.mxu0 0
        %2685 = vmatprep.subr.bf16.mxu0 0
        %2686 = vmatpush2.bf16.msra.mxu0 0
        %2687 = vmatprep.subr.bf16.mxu0 0
        %2688 = vmatpush2.bf16.msra.mxu0 0
        %2689 = vmatprep.mubr.bf16.mxu0 0
        %2690 = vmatmul.mubr.bf16.gmra.mxu0 %v2655
        %v2691 = vpop.f32.mrf.mxu0
        %v2692 = vadd.f32 0.0, %v2691
        %v2693 = vpop.f32.mrf.mxu0
        %v2694 = vpop.f32.mrf.mxu0
        %v2695 = vadd.f32 0.0, %v2694
        %v2696 = vpop.f32.mrf.mxu0
        %2697 = vdwg.mxu0
        %s2698 = scalar_lea.vmem %s5, 168
        %v2699 = vld [vmem:[%s2698] sm:$0xf]
        %v2700 = vld [vmem:[%s2698 + $0x4] sm:$0xf]
        %v2701 = vld [vmem:[%s2698 + $0x8] sm:$0xf]
        %v2702 = vld [vmem:[%s2698 + $0xc] sm:$0xf]
        %v2703 = vld [vmem:[%s2698 + $0x10] sm:$0xf]
        %v2704 = vld [vmem:[%s2698 + $0x14] sm:$0xf]
        %v2705 = vld [vmem:[%s2698 + $0x18] sm:$0xf]
        %v2706 = vld [vmem:[%s2698 + $0x1c] sm:$0xf]
        %v2707 = vld [vmem:[%s2698 + $0x20] sm:$0xf]
        %v2708 = vld [vmem:[%s2698 + $0x24] sm:$0xf]
        %v2709 = vld [vmem:[%s2698 + $0x28] sm:$0xf]
        %v2710 = vld [vmem:[%s2698 + $0x2c] sm:$0xf]
        %v2711 = vld [vmem:[%s2698 + $0x30] sm:$0xf]
        %v2712 = vld [vmem:[%s2698 + $0x34] sm:$0xf]
        %v2727 = vunpack.c.l.b16 %v2699
        %v2728 = vunpack.c.l.b16 %v2700
        %v2729 = vunpack.c.l.b16 %v2701
        %v2730 = vunpack.c.l.b16 %v2702
        %v2731 = vunpack.c.l.b16 %v2703
        %v2732 = vunpack.c.l.b16 %v2704
        %v2733 = vunpack.c.l.b16 %v2705
        %v2734 = vunpack.c.l.b16 %v2706
        %v2735 = vunpack.c.l.b16 %v2707
        %v2736 = vunpack.c.l.b16 %v2708
        %v2737 = vunpack.c.l.b16 %v2709
        %v2738 = vunpack.c.l.b16 %v2710
        %v2739 = vunpack.c.l.b16 %v2711
        %v2740 = vunpack.c.l.b16 %v2712
        %v2741 = vpack.c.b16 %v2728, %v2727
        %v2742 = vpack.c.b16 %v2730, %v2729
        %v2743 = vpack.c.b16 %v2732, %v2731
        %v2744 = vpack.c.b16 %v2734, %v2733
        %v2745 = vpack.c.b16 %v2736, %v2735
        %v2746 = vpack.c.b16 %v2738, %v2737
        %v2747 = vpack.c.b16 %v2740, %v2739
        %2755 = vmatprep.subr.bf16.mxu0 0
        %2756 = vmatpush1.bf16.msra.mxu0 0
        %2757 = vmatprep.subr.bf16.mxu0 0
        %2758 = vmatpush1.bf16.msra.mxu0 %v2747
        %2759 = vmatprep.subr.bf16.mxu0 0
        %2760 = vmatpush1.bf16.msra.mxu0 %v2746
        %2761 = vmatprep.subr.bf16.mxu0 0
        %2762 = vmatpush1.bf16.msra.mxu0 %v2745
        %2763 = vmatprep.subr.bf16.mxu0 0
        %2764 = vmatpush1.bf16.msra.mxu0 %v2744
        %2765 = vmatprep.subr.bf16.mxu0 0
        %2766 = vmatpush1.bf16.msra.mxu0 %v2743
        %2767 = vmatprep.subr.bf16.mxu0 0
        %2768 = vmatpush1.bf16.msra.mxu0 %v2742
        %2769 = vmatprep.subr.bf16.mxu0 0
        %2770 = vmatpush1.bf16.msra.mxu0 %v2741
        %2771 = vmatprep.subr.bf16.mxu0 0
        %2772 = vmatpush2.bf16.msra.mxu0 0
        %2773 = vmatprep.subr.bf16.mxu0 0
        %2774 = vmatpush2.bf16.msra.mxu0 0
        %2775 = vmatprep.subr.bf16.mxu0 0
        %2776 = vmatpush2.bf16.msra.mxu0 0
        %2777 = vmatprep.subr.bf16.mxu0 0
        %2778 = vmatpush2.bf16.msra.mxu0 0
        %2779 = vmatprep.subr.bf16.mxu0 0
        %2780 = vmatpush2.bf16.msra.mxu0 0
        %2781 = vmatprep.subr.bf16.mxu0 0
        %2782 = vmatpush2.bf16.msra.mxu0 0
        %2783 = vmatprep.subr.bf16.mxu0 0
        %2784 = vmatpush2.bf16.msra.mxu0 0
        %2785 = vmatprep.subr.bf16.mxu0 0
        %2786 = vmatpush2.bf16.msra.mxu0 0
        %2787 = vmatprep.mubr.bf16.mxu0 0
        %2788 = vmatmul.mubr.bf16.gmra.mxu0 %v2655
        %v2789 = vpop.f32.mrf.mxu0
        %v2790 = vadd.f32 0.0, %v2789
        %v2791 = vpop.f32.mrf.mxu0
        %v2792 = vpop.f32.mrf.mxu0
        %v2793 = vadd.f32 0.0, %v2792
        %v2794 = vpop.f32.mrf.mxu0
        %2795 = vdwg.mxu0
        %v2796 = vadd.f32 %v2590, %v2692
        %v2797 = vadd.f32 %v2591, %v2695
        %v2798 = vadd.f32 %v2592, %v2790
        %v2799 = vadd.f32 %v2593, %v2793
        %s2800 = scalar_lea.vmem %s4, 224
        %v2801 = vld [vmem:[%s2800] sm:$0xf]
        %v2802 = vld [vmem:[%s2800 + $0x4] sm:$0xf]
        %v2803 = vld [vmem:[%s2800 + $0x8] sm:$0xf]
        %v2804 = vld [vmem:[%s2800 + $0xc] sm:$0xf]
        %v2805 = vld [vmem:[%s2800 + $0x10] sm:$0xf]
        %v2806 = vld [vmem:[%s2800 + $0x14] sm:$0xf]
        %v2807 = vld [vmem:[%s2800 + $0x18] sm:$0xf]
        %v2808 = vld [vmem:[%s2800 + $0x1c] sm:$0xf]
        %v2809 = vld [vmem:[%s2800 + $0x20] sm:$0xf]
        %v2810 = vld [vmem:[%s2800 + $0x24] sm:$0xf]
        %v2811 = vld [vmem:[%s2800 + $0x28] sm:$0xf]
        %v2812 = vld [vmem:[%s2800 + $0x2c] sm:$0xf]
        %v2813 = vld [vmem:[%s2800 + $0x30] sm:$0xf]
        %v2814 = vld [vmem:[%s2800 + $0x34] sm:$0xf]
        %v2815 = vrot.slane %v1985, 2
        %v2830 = vunpack.c.l.b16 %v2801
        %v2831 = vunpack.c.l.b16 %v2802
        %v2832 = vunpack.c.l.b16 %v2803
        %v2833 = vunpack.c.l.b16 %v2804
        %v2834 = vunpack.c.l.b16 %v2805
        %v2835 = vunpack.c.l.b16 %v2806
        %v2836 = vunpack.c.l.b16 %v2807
        %v2837 = vunpack.c.l.b16 %v2808
        %v2838 = vunpack.c.l.b16 %v2809
        %v2839 = vunpack.c.l.b16 %v2810
        %v2840 = vunpack.c.l.b16 %v2811
        %v2841 = vunpack.c.l.b16 %v2812
        %v2842 = vunpack.c.l.b16 %v2813
        %v2843 = vunpack.c.l.b16 %v2814
        %v2844 = vpack.c.b16 %v2831, %v2830
        %v2845 = vpack.c.b16 %v2833, %v2832
        %v2846 = vpack.c.b16 %v2835, %v2834
        %v2847 = vpack.c.b16 %v2837, %v2836
        %v2848 = vpack.c.b16 %v2839, %v2838
        %v2849 = vpack.c.b16 %v2841, %v2840
        %v2850 = vpack.c.b16 %v2843, %v2842
        %v2859 = vsel %vm2078, %v2815, 0
        %2861 = vmatprep.subr.bf16.mxu0 0
        %2862 = vmatpush1.bf16.msra.mxu0 0
        %2863 = vmatprep.subr.bf16.mxu0 0
        %2864 = vmatpush1.bf16.msra.mxu0 %v2850
        %2865 = vmatprep.subr.bf16.mxu0 0
        %2866 = vmatpush1.bf16.msra.mxu0 %v2849
        %2867 = vmatprep.subr.bf16.mxu0 0
        %2868 = vmatpush1.bf16.msra.mxu0 %v2848
        %2869 = vmatprep.subr.bf16.mxu0 0
        %2870 = vmatpush1.bf16.msra.mxu0 %v2847
        %2871 = vmatprep.subr.bf16.mxu0 0
        %2872 = vmatpush1.bf16.msra.mxu0 %v2846
        %2873 = vmatprep.subr.bf16.mxu0 0
        %2874 = vmatpush1.bf16.msra.mxu0 %v2845
        %2875 = vmatprep.subr.bf16.mxu0 0
        %2876 = vmatpush1.bf16.msra.mxu0 %v2844
        %2877 = vmatprep.subr.bf16.mxu0 0
        %2878 = vmatpush2.bf16.msra.mxu0 0
        %2879 = vmatprep.subr.bf16.mxu0 0
        %2880 = vmatpush2.bf16.msra.mxu0 0
        %2881 = vmatprep.subr.bf16.mxu0 0
        %2882 = vmatpush2.bf16.msra.mxu0 0
        %2883 = vmatprep.subr.bf16.mxu0 0
        %2884 = vmatpush2.bf16.msra.mxu0 0
        %2885 = vmatprep.subr.bf16.mxu0 0
        %2886 = vmatpush2.bf16.msra.mxu0 0
        %2887 = vmatprep.subr.bf16.mxu0 0
        %2888 = vmatpush2.bf16.msra.mxu0 0
        %2889 = vmatprep.subr.bf16.mxu0 0
        %2890 = vmatpush2.bf16.msra.mxu0 0
        %2891 = vmatprep.subr.bf16.mxu0 0
        %2892 = vmatpush2.bf16.msra.mxu0 0
        %2893 = vmatprep.mubr.bf16.mxu0 0
        %2894 = vmatmul.mubr.bf16.gmra.mxu0 %v2859
        %v2895 = vpop.f32.mrf.mxu0
        %v2896 = vadd.f32 0.0, %v2895
        %v2897 = vpop.f32.mrf.mxu0
        %v2898 = vpop.f32.mrf.mxu0
        %v2899 = vadd.f32 0.0, %v2898
        %v2900 = vpop.f32.mrf.mxu0
        %2901 = vdwg.mxu0
        %s2902 = scalar_lea.vmem %s5, 224
        %v2903 = vld [vmem:[%s2902] sm:$0xf]
        %v2904 = vld [vmem:[%s2902 + $0x4] sm:$0xf]
        %v2905 = vld [vmem:[%s2902 + $0x8] sm:$0xf]
        %v2906 = vld [vmem:[%s2902 + $0xc] sm:$0xf]
        %v2907 = vld [vmem:[%s2902 + $0x10] sm:$0xf]
        %v2908 = vld [vmem:[%s2902 + $0x14] sm:$0xf]
        %v2909 = vld [vmem:[%s2902 + $0x18] sm:$0xf]
        %v2910 = vld [vmem:[%s2902 + $0x1c] sm:$0xf]
        %v2911 = vld [vmem:[%s2902 + $0x20] sm:$0xf]
        %v2912 = vld [vmem:[%s2902 + $0x24] sm:$0xf]
        %v2913 = vld [vmem:[%s2902 + $0x28] sm:$0xf]
        %v2914 = vld [vmem:[%s2902 + $0x2c] sm:$0xf]
        %v2915 = vld [vmem:[%s2902 + $0x30] sm:$0xf]
        %v2916 = vld [vmem:[%s2902 + $0x34] sm:$0xf]
        %v2931 = vunpack.c.l.b16 %v2903
        %v2932 = vunpack.c.l.b16 %v2904
        %v2933 = vunpack.c.l.b16 %v2905
        %v2934 = vunpack.c.l.b16 %v2906
        %v2935 = vunpack.c.l.b16 %v2907
        %v2936 = vunpack.c.l.b16 %v2908
        %v2937 = vunpack.c.l.b16 %v2909
        %v2938 = vunpack.c.l.b16 %v2910
        %v2939 = vunpack.c.l.b16 %v2911
        %v2940 = vunpack.c.l.b16 %v2912
        %v2941 = vunpack.c.l.b16 %v2913
        %v2942 = vunpack.c.l.b16 %v2914
        %v2943 = vunpack.c.l.b16 %v2915
        %v2944 = vunpack.c.l.b16 %v2916
        %v2945 = vpack.c.b16 %v2932, %v2931
        %v2946 = vpack.c.b16 %v2934, %v2933
        %v2947 = vpack.c.b16 %v2936, %v2935
        %v2948 = vpack.c.b16 %v2938, %v2937
        %v2949 = vpack.c.b16 %v2940, %v2939
        %v2950 = vpack.c.b16 %v2942, %v2941
        %v2951 = vpack.c.b16 %v2944, %v2943
        %2959 = vmatprep.subr.bf16.mxu0 0
        %2960 = vmatpush1.bf16.msra.mxu0 0
        %2961 = vmatprep.subr.bf16.mxu0 0
        %2962 = vmatpush1.bf16.msra.mxu0 %v2951
        %2963 = vmatprep.subr.bf16.mxu0 0
        %2964 = vmatpush1.bf16.msra.mxu0 %v2950
        %2965 = vmatprep.subr.bf16.mxu0 0
        %2966 = vmatpush1.bf16.msra.mxu0 %v2949
        %2967 = vmatprep.subr.bf16.mxu0 0
        %2968 = vmatpush1.bf16.msra.mxu0 %v2948
        %2969 = vmatprep.subr.bf16.mxu0 0
        %2970 = vmatpush1.bf16.msra.mxu0 %v2947
        %2971 = vmatprep.subr.bf16.mxu0 0
        %2972 = vmatpush1.bf16.msra.mxu0 %v2946
        %2973 = vmatprep.subr.bf16.mxu0 0
        %2974 = vmatpush1.bf16.msra.mxu0 %v2945
        %2975 = vmatprep.subr.bf16.mxu0 0
        %2976 = vmatpush2.bf16.msra.mxu0 0
        %2977 = vmatprep.subr.bf16.mxu0 0
        %2978 = vmatpush2.bf16.msra.mxu0 0
        %2979 = vmatprep.subr.bf16.mxu0 0
        %2980 = vmatpush2.bf16.msra.mxu0 0
        %2981 = vmatprep.subr.bf16.mxu0 0
        %2982 = vmatpush2.bf16.msra.mxu0 0
        %2983 = vmatprep.subr.bf16.mxu0 0
        %2984 = vmatpush2.bf16.msra.mxu0 0
        %2985 = vmatprep.subr.bf16.mxu0 0
        %2986 = vmatpush2.bf16.msra.mxu0 0
        %2987 = vmatprep.subr.bf16.mxu0 0
        %2988 = vmatpush2.bf16.msra.mxu0 0
        %2989 = vmatprep.subr.bf16.mxu0 0
        %2990 = vmatpush2.bf16.msra.mxu0 0
        %2991 = vmatprep.mubr.bf16.mxu0 0
        %2992 = vmatmul.mubr.bf16.gmra.mxu0 %v2859
        %v2993 = vpop.f32.mrf.mxu0
        %v2994 = vadd.f32 0.0, %v2993
        %v2995 = vpop.f32.mrf.mxu0
        %v2996 = vpop.f32.mrf.mxu0
        %v2997 = vadd.f32 0.0, %v2996
        %v2998 = vpop.f32.mrf.mxu0
        %2999 = vdwg.mxu0
        %v3000 = vadd.f32 %v2796, %v2896
        %v3001 = vadd.f32 %v2797, %v2899
        %v3002 = vadd.f32 %v2798, %v2994
        %v3003 = vadd.f32 %v2799, %v2997
        %v3004 = vmax.f32 %v3000, %v3002
        %v3005 = vmax.f32 %v3001, %v3003
        %v3006 = vld [vmem:[%s6] sm:$0x1]
        %v3008 = vlaneseq
        %v3009 = vshrl.u32 %v3008, 7
        %v3010 = vsub.s32 0, %v3009
        %v3011 = vrot.slane %v3006, %v3010
        %v3013 = vadd.f32 %v3004, %v3011
        %v3014 = vadd.f32 %v3005, %v3011
        %v3015 = vmax.f32 %v3013, 0.0
        %v3016 = vmax.f32 %v3014, 0.0
        %v3018 = vrot.slane %v3015, 1
        %v3020 = vmax.f32 %v3015, %v3018
        %v3021 = vpack.c.bf16 %v3020, %v3020
        %v3022 = vld [vmem:[%s7] sm:$0xf]
        %v3023 = vld [vmem:[%s7 + $0x4] sm:$0xf]
        %v3024 = vld [vmem:[%s7 + $0x8] sm:$0xf]
        %v3025 = vld [vmem:[%s7 + $0xc] sm:$0xf]
        %v3026 = vld [vmem:[%s7 + $0x10] sm:$0xf]
        %v3027 = vld [vmem:[%s7 + $0x14] sm:$0xf]
        %v3028 = vld [vmem:[%s7 + $0x18] sm:$0xf]
        %v3029 = vld [vmem:[%s7 + $0x1c] sm:$0xf]
        %v3030 = vld [vmem:[%s7 + $0x20] sm:$0xf]
        %v3031 = vld [vmem:[%s7 + $0x24] sm:$0xf]
        %s3032 = scalar_lea.vmem %s7, 40
        %v3033 = vld [vmem:[%s3032] sm:$0xf]
        %v3034 = vld [vmem:[%s3032 + $0x4] sm:$0xf]
        %v3035 = vld [vmem:[%s3032 + $0x8] sm:$0xf]
        %v3036 = vld [vmem:[%s3032 + $0xc] sm:$0xf]
        %v3037 = vld [vmem:[%s3032 + $0x10] sm:$0xf]
        %v3038 = vld [vmem:[%s3032 + $0x14] sm:$0xf]
        %v3039 = vld [vmem:[%s3032 + $0x18] sm:$0xf]
        %v3040 = vld [vmem:[%s3032 + $0x1c] sm:$0xf]
        %v3041 = vld [vmem:[%s3032 + $0x20] sm:$0xf]
        %v3042 = vld [vmem:[%s3032 + $0x24] sm:$0xf]
        %v3044 = vrot.slane %v3021, 1
        %v3055 = vunpack.c.l.b16 %v3033
        %v3056 = vunpack.c.l.b16 %v3034
        %v3057 = vunpack.c.l.b16 %v3035
        %v3058 = vunpack.c.l.b16 %v3036
        %v3059 = vunpack.c.l.b16 %v3037
        %v3060 = vunpack.c.l.b16 %v3038
        %v3061 = vunpack.c.l.b16 %v3039
        %v3062 = vunpack.c.l.b16 %v3040
        %v3063 = vunpack.c.l.b16 %v3041
        %v3064 = vunpack.c.l.b16 %v3042
        %v3065 = vpack.c.b16 %v3056, %v3055
        %v3066 = vpack.c.b16 %v3058, %v3057
        %v3067 = vpack.c.b16 %v3060, %v3059
        %v3068 = vpack.c.b16 %v3062, %v3061
        %v3069 = vpack.c.b16 %v3064, %v3063
        %vm3075 = vcmask 654336
        %v3077 = vsel %vm3075, %v3044, 0
        %3079 = vmatprep.subr.bf16.mxu0 0
        %3080 = vmatpush1.bf16.msra.mxu0 0
        %3081 = vmatprep.subr.bf16.mxu0 0
        %3082 = vmatpush1.bf16.msra.mxu0 0
        %3083 = vmatprep.subr.bf16.mxu0 0
        %3084 = vmatpush1.bf16.msra.mxu0 0
        %3085 = vmatprep.subr.bf16.mxu0 0
        %3086 = vmatpush1.bf16.msra.mxu0 %v3069
        %3087 = vmatprep.subr.bf16.mxu0 0
        %3088 = vmatpush1.bf16.msra.mxu0 %v3068
        %3089 = vmatprep.subr.bf16.mxu0 0
        %3090 = vmatpush1.bf16.msra.mxu0 %v3067
        %3091 = vmatprep.subr.bf16.mxu0 0
        %3092 = vmatpush1.bf16.msra.mxu0 %v3066
        %3093 = vmatprep.subr.bf16.mxu0 0
        %3094 = vmatpush1.bf16.msra.mxu0 %v3065
        %3095 = vmatprep.subr.bf16.mxu0 0
        %3096 = vmatpush2.bf16.msra.mxu0 0
        %3097 = vmatprep.subr.bf16.mxu0 0
        %3098 = vmatpush2.bf16.msra.mxu0 0
        %3099 = vmatprep.subr.bf16.mxu0 0
        %3100 = vmatpush2.bf16.msra.mxu0 0
        %3101 = vmatprep.subr.bf16.mxu0 0
        %3102 = vmatpush2.bf16.msra.mxu0 0
        %3103 = vmatprep.subr.bf16.mxu0 0
        %3104 = vmatpush2.bf16.msra.mxu0 0
        %3105 = vmatprep.subr.bf16.mxu0 0
        %3106 = vmatpush2.bf16.msra.mxu0 0
        %3107 = vmatprep.subr.bf16.mxu0 0
        %3108 = vmatpush2.bf16.msra.mxu0 0
        %3109 = vmatprep.subr.bf16.mxu0 0
        %3110 = vmatpush2.bf16.msra.mxu0 0
        %3111 = vmatprep.mubr.bf16.mxu0 0
        %3112 = vmatmul.mubr.bf16.gmra.mxu0 %v3077
        %v3113 = vpop.f32.mrf.mxu0
        %v3114 = vadd.f32 0.0, %v3113
        %v3115 = vpop.f32.mrf.mxu0
        %v3116 = vpop.f32.mrf.mxu0
        %v3117 = vpop.f32.mrf.mxu0
        %3118 = vdwg.mxu0
        %v3129 = vunpack.c.l.b16 %v3022
        %v3130 = vunpack.c.l.b16 %v3023
        %v3131 = vunpack.c.l.b16 %v3024
        %v3132 = vunpack.c.l.b16 %v3025
        %v3133 = vunpack.c.l.b16 %v3026
        %v3134 = vunpack.c.l.b16 %v3027
        %v3135 = vunpack.c.l.b16 %v3028
        %v3136 = vunpack.c.l.b16 %v3029
        %v3137 = vunpack.c.l.b16 %v3030
        %v3138 = vunpack.c.l.b16 %v3031
        %v3139 = vpack.c.b16 %v3130, %v3129
        %v3140 = vpack.c.b16 %v3132, %v3131
        %v3141 = vpack.c.b16 %v3134, %v3133
        %v3142 = vpack.c.b16 %v3136, %v3135
        %v3143 = vpack.c.b16 %v3138, %v3137
        %v3150 = vsel %vm3075, %v3021, 0
        %3152 = vmatprep.subr.bf16.mxu0 0
        %3153 = vmatpush1.bf16.msra.mxu0 0
        %3154 = vmatprep.subr.bf16.mxu0 0
        %3155 = vmatpush1.bf16.msra.mxu0 0
        %3156 = vmatprep.subr.bf16.mxu0 0
        %3157 = vmatpush1.bf16.msra.mxu0 0
        %3158 = vmatprep.subr.bf16.mxu0 0
        %3159 = vmatpush1.bf16.msra.mxu0 %v3143
        %3160 = vmatprep.subr.bf16.mxu0 0
        %3161 = vmatpush1.bf16.msra.mxu0 %v3142
        %3162 = vmatprep.subr.bf16.mxu0 0
        %3163 = vmatpush1.bf16.msra.mxu0 %v3141
        %3164 = vmatprep.subr.bf16.mxu0 0
        %3165 = vmatpush1.bf16.msra.mxu0 %v3140
        %3166 = vmatprep.subr.bf16.mxu0 0
        %3167 = vmatpush1.bf16.msra.mxu0 %v3139
        %3168 = vmatprep.subr.bf16.mxu0 0
        %3169 = vmatpush2.bf16.msra.mxu0 0
        %3170 = vmatprep.subr.bf16.mxu0 0
        %3171 = vmatpush2.bf16.msra.mxu0 0
        %3172 = vmatprep.subr.bf16.mxu0 0
        %3173 = vmatpush2.bf16.msra.mxu0 0
        %3174 = vmatprep.subr.bf16.mxu0 0
        %3175 = vmatpush2.bf16.msra.mxu0 0
        %3176 = vmatprep.subr.bf16.mxu0 0
        %3177 = vmatpush2.bf16.msra.mxu0 0
        %3178 = vmatprep.subr.bf16.mxu0 0
        %3179 = vmatpush2.bf16.msra.mxu0 0
        %3180 = vmatprep.subr.bf16.mxu0 0
        %3181 = vmatpush2.bf16.msra.mxu0 0
        %3182 = vmatprep.subr.bf16.mxu0 0
        %3183 = vmatpush2.bf16.msra.mxu0 0
        %3184 = vmatprep.mubr.bf16.mxu0 0
        %3185 = vmatmul.mubr.bf16.gmra.mxu0 %v3150
        %v3186 = vpop.f32.mrf.mxu0
        %v3187 = vadd.f32 %v3114, %v3186
        %v3188 = vpop.f32.mrf.mxu0
        %v3189 = vpop.f32.mrf.mxu0
        %v3190 = vpop.f32.mrf.mxu0
        %3191 = vdwg.mxu0
        %s3192 = scalar_lea.vmem %s7, 80
        %v3193 = vld [vmem:[%s3192] sm:$0xf]
        %v3194 = vld [vmem:[%s3192 + $0x4] sm:$0xf]
        %v3195 = vld [vmem:[%s3192 + $0x8] sm:$0xf]
        %v3196 = vld [vmem:[%s3192 + $0xc] sm:$0xf]
        %v3197 = vld [vmem:[%s3192 + $0x10] sm:$0xf]
        %v3198 = vld [vmem:[%s3192 + $0x14] sm:$0xf]
        %v3199 = vld [vmem:[%s3192 + $0x18] sm:$0xf]
        %v3200 = vld [vmem:[%s3192 + $0x1c] sm:$0xf]
        %v3201 = vld [vmem:[%s3192 + $0x20] sm:$0xf]
        %v3202 = vld [vmem:[%s3192 + $0x24] sm:$0xf]
        %v3203 = vrot.slane %v3021, 2
        %v3214 = vunpack.c.l.b16 %v3193
        %v3215 = vunpack.c.l.b16 %v3194
        %v3216 = vunpack.c.l.b16 %v3195
        %v3217 = vunpack.c.l.b16 %v3196
        %v3218 = vunpack.c.l.b16 %v3197
        %v3219 = vunpack.c.l.b16 %v3198
        %v3220 = vunpack.c.l.b16 %v3199
        %v3221 = vunpack.c.l.b16 %v3200
        %v3222 = vunpack.c.l.b16 %v3201
        %v3223 = vunpack.c.l.b16 %v3202
        %v3224 = vpack.c.b16 %v3215, %v3214
        %v3225 = vpack.c.b16 %v3217, %v3216
        %v3226 = vpack.c.b16 %v3219, %v3218
        %v3227 = vpack.c.b16 %v3221, %v3220
        %v3228 = vpack.c.b16 %v3223, %v3222
        %v3235 = vsel %vm3075, %v3203, 0
        %3237 = vmatprep.subr.bf16.mxu0 0
        %3238 = vmatpush1.bf16.msra.mxu0 0
        %3239 = vmatprep.subr.bf16.mxu0 0
        %3240 = vmatpush1.bf16.msra.mxu0 0
        %3241 = vmatprep.subr.bf16.mxu0 0
        %3242 = vmatpush1.bf16.msra.mxu0 0
        %3243 = vmatprep.subr.bf16.mxu0 0
        %3244 = vmatpush1.bf16.msra.mxu0 %v3228
        %3245 = vmatprep.subr.bf16.mxu0 0
        %3246 = vmatpush1.bf16.msra.mxu0 %v3227
        %3247 = vmatprep.subr.bf16.mxu0 0
        %3248 = vmatpush1.bf16.msra.mxu0 %v3226
        %3249 = vmatprep.subr.bf16.mxu0 0
        %3250 = vmatpush1.bf16.msra.mxu0 %v3225
        %3251 = vmatprep.subr.bf16.mxu0 0
        %3252 = vmatpush1.bf16.msra.mxu0 %v3224
        %3253 = vmatprep.subr.bf16.mxu0 0
        %3254 = vmatpush2.bf16.msra.mxu0 0
        %3255 = vmatprep.subr.bf16.mxu0 0
        %3256 = vmatpush2.bf16.msra.mxu0 0
        %3257 = vmatprep.subr.bf16.mxu0 0
        %3258 = vmatpush2.bf16.msra.mxu0 0
        %3259 = vmatprep.subr.bf16.mxu0 0
        %3260 = vmatpush2.bf16.msra.mxu0 0
        %3261 = vmatprep.subr.bf16.mxu0 0
        %3262 = vmatpush2.bf16.msra.mxu0 0
        %3263 = vmatprep.subr.bf16.mxu0 0
        %3264 = vmatpush2.bf16.msra.mxu0 0
        %3265 = vmatprep.subr.bf16.mxu0 0
        %3266 = vmatpush2.bf16.msra.mxu0 0
        %3267 = vmatprep.subr.bf16.mxu0 0
        %3268 = vmatpush2.bf16.msra.mxu0 0
        %3269 = vmatprep.mubr.bf16.mxu0 0
        %3270 = vmatmul.mubr.bf16.gmra.mxu0 %v3235
        %v3271 = vpop.f32.mrf.mxu0
        %v3272 = vadd.f32 0.0, %v3271
        %v3273 = vpop.f32.mrf.mxu0
        %v3274 = vpop.f32.mrf.mxu0
        %v3275 = vpop.f32.mrf.mxu0
        %3276 = vdwg.mxu0
        %v3277 = vadd.f32 %v3187, %v3272
        %s3278 = scalar_lea.vmem %s7, 120
        %v3279 = vld [vmem:[%s3278] sm:$0xf]
        %v3280 = vld [vmem:[%s3278 + $0x4] sm:$0xf]
        %v3281 = vld [vmem:[%s3278 + $0x8] sm:$0xf]
        %v3282 = vld [vmem:[%s3278 + $0xc] sm:$0xf]
        %v3283 = vld [vmem:[%s3278 + $0x10] sm:$0xf]
        %v3284 = vld [vmem:[%s3278 + $0x14] sm:$0xf]
        %v3285 = vld [vmem:[%s3278 + $0x18] sm:$0xf]
        %v3286 = vld [vmem:[%s3278 + $0x1c] sm:$0xf]
        %v3287 = vld [vmem:[%s3278 + $0x20] sm:$0xf]
        %v3288 = vld [vmem:[%s3278 + $0x24] sm:$0xf]
        %v3289 = vrot.slane %v3021, 3
        %v3300 = vunpack.c.l.b16 %v3279
        %v3301 = vunpack.c.l.b16 %v3280
        %v3302 = vunpack.c.l.b16 %v3281
        %v3303 = vunpack.c.l.b16 %v3282
        %v3304 = vunpack.c.l.b16 %v3283
        %v3305 = vunpack.c.l.b16 %v3284
        %v3306 = vunpack.c.l.b16 %v3285
        %v3307 = vunpack.c.l.b16 %v3286
        %v3308 = vunpack.c.l.b16 %v3287
        %v3309 = vunpack.c.l.b16 %v3288
        %v3310 = vpack.c.b16 %v3301, %v3300
        %v3311 = vpack.c.b16 %v3303, %v3302
        %v3312 = vpack.c.b16 %v3305, %v3304
        %v3313 = vpack.c.b16 %v3307, %v3306
        %v3314 = vpack.c.b16 %v3309, %v3308
        %v3321 = vsel %vm3075, %v3289, 0
        %3323 = vmatprep.subr.bf16.mxu0 0
        %3324 = vmatpush1.bf16.msra.mxu0 0
        %3325 = vmatprep.subr.bf16.mxu0 0
        %3326 = vmatpush1.bf16.msra.mxu0 0
        %3327 = vmatprep.subr.bf16.mxu0 0
        %3328 = vmatpush1.bf16.msra.mxu0 0
        %3329 = vmatprep.subr.bf16.mxu0 0
        %3330 = vmatpush1.bf16.msra.mxu0 %v3314
        %3331 = vmatprep.subr.bf16.mxu0 0
        %3332 = vmatpush1.bf16.msra.mxu0 %v3313
        %3333 = vmatprep.subr.bf16.mxu0 0
        %3334 = vmatpush1.bf16.msra.mxu0 %v3312
        %3335 = vmatprep.subr.bf16.mxu0 0
        %3336 = vmatpush1.bf16.msra.mxu0 %v3311
        %3337 = vmatprep.subr.bf16.mxu0 0
        %3338 = vmatpush1.bf16.msra.mxu0 %v3310
        %3339 = vmatprep.subr.bf16.mxu0 0
        %3340 = vmatpush2.bf16.msra.mxu0 0
        %3341 = vmatprep.subr.bf16.mxu0 0
        %3342 = vmatpush2.bf16.msra.mxu0 0
        %3343 = vmatprep.subr.bf16.mxu0 0
        %3344 = vmatpush2.bf16.msra.mxu0 0
        %3345 = vmatprep.subr.bf16.mxu0 0
        %3346 = vmatpush2.bf16.msra.mxu0 0
        %3347 = vmatprep.subr.bf16.mxu0 0
        %3348 = vmatpush2.bf16.msra.mxu0 0
        %3349 = vmatprep.subr.bf16.mxu0 0
        %3350 = vmatpush2.bf16.msra.mxu0 0
        %3351 = vmatprep.subr.bf16.mxu0 0
        %3352 = vmatpush2.bf16.msra.mxu0 0
        %3353 = vmatprep.subr.bf16.mxu0 0
        %3354 = vmatpush2.bf16.msra.mxu0 0
        %3355 = vmatprep.mubr.bf16.mxu0 0
        %3356 = vmatmul.mubr.bf16.gmra.mxu0 %v3321
        %v3357 = vpop.f32.mrf.mxu0
        %v3358 = vadd.f32 0.0, %v3357
        %v3359 = vpop.f32.mrf.mxu0
        %v3360 = vpop.f32.mrf.mxu0
        %v3361 = vpop.f32.mrf.mxu0
        %3362 = vdwg.mxu0
        %v3363 = vadd.f32 %v3277, %v3358
        %v3365 = vrot.slane %v3016, 1
        %v3367 = vmax.f32 %v3016, %v3365
        %v3368 = vpack.c.bf16 %v3367, %v3367
        %s3369 = scalar_lea.vmem %s7, 160
        %v3370 = vld [vmem:[%s3369] sm:$0xf]
        %v3371 = vld [vmem:[%s3369 + $0x4] sm:$0xf]
        %v3372 = vld [vmem:[%s3369 + $0x8] sm:$0xf]
        %v3373 = vld [vmem:[%s3369 + $0xc] sm:$0xf]
        %v3374 = vld [vmem:[%s3369 + $0x10] sm:$0xf]
        %v3375 = vld [vmem:[%s3369 + $0x14] sm:$0xf]
        %v3376 = vld [vmem:[%s3369 + $0x18] sm:$0xf]
        %v3377 = vld [vmem:[%s3369 + $0x1c] sm:$0xf]
        %v3378 = vld [vmem:[%s3369 + $0x20] sm:$0xf]
        %v3379 = vld [vmem:[%s3369 + $0x24] sm:$0xf]
        %v3390 = vunpack.c.l.b16 %v3370
        %v3391 = vunpack.c.l.b16 %v3371
        %v3392 = vunpack.c.l.b16 %v3372
        %v3393 = vunpack.c.l.b16 %v3373
        %v3394 = vunpack.c.l.b16 %v3374
        %v3395 = vunpack.c.l.b16 %v3375
        %v3396 = vunpack.c.l.b16 %v3376
        %v3397 = vunpack.c.l.b16 %v3377
        %v3398 = vunpack.c.l.b16 %v3378
        %v3399 = vunpack.c.l.b16 %v3379
        %v3400 = vpack.c.b16 %v3391, %v3390
        %v3401 = vpack.c.b16 %v3393, %v3392
        %v3402 = vpack.c.b16 %v3395, %v3394
        %v3403 = vpack.c.b16 %v3397, %v3396
        %v3404 = vpack.c.b16 %v3399, %v3398
        %v3411 = vsel %vm3075, %v3368, 0
        %3413 = vmatprep.subr.bf16.mxu0 0
        %3414 = vmatpush1.bf16.msra.mxu0 0
        %3415 = vmatprep.subr.bf16.mxu0 0
        %3416 = vmatpush1.bf16.msra.mxu0 0
        %3417 = vmatprep.subr.bf16.mxu0 0
        %3418 = vmatpush1.bf16.msra.mxu0 0
        %3419 = vmatprep.subr.bf16.mxu0 0
        %3420 = vmatpush1.bf16.msra.mxu0 %v3404
        %3421 = vmatprep.subr.bf16.mxu0 0
        %3422 = vmatpush1.bf16.msra.mxu0 %v3403
        %3423 = vmatprep.subr.bf16.mxu0 0
        %3424 = vmatpush1.bf16.msra.mxu0 %v3402
        %3425 = vmatprep.subr.bf16.mxu0 0
        %3426 = vmatpush1.bf16.msra.mxu0 %v3401
        %3427 = vmatprep.subr.bf16.mxu0 0
        %3428 = vmatpush1.bf16.msra.mxu0 %v3400
        %3429 = vmatprep.subr.bf16.mxu0 0
        %3430 = vmatpush2.bf16.msra.mxu0 0
        %3431 = vmatprep.subr.bf16.mxu0 0
        %3432 = vmatpush2.bf16.msra.mxu0 0
        %3433 = vmatprep.subr.bf16.mxu0 0
        %3434 = vmatpush2.bf16.msra.mxu0 0
        %3435 = vmatprep.subr.bf16.mxu0 0
        %3436 = vmatpush2.bf16.msra.mxu0 0
        %3437 = vmatprep.subr.bf16.mxu0 0
        %3438 = vmatpush2.bf16.msra.mxu0 0
        %3439 = vmatprep.subr.bf16.mxu0 0
        %3440 = vmatpush2.bf16.msra.mxu0 0
        %3441 = vmatprep.subr.bf16.mxu0 0
        %3442 = vmatpush2.bf16.msra.mxu0 0
        %3443 = vmatprep.subr.bf16.mxu0 0
        %3444 = vmatpush2.bf16.msra.mxu0 0
        %3445 = vmatprep.mubr.bf16.mxu0 0
        %3446 = vmatmul.mubr.bf16.gmra.mxu0 %v3411
        %v3447 = vpop.f32.mrf.mxu0
        %v3448 = vadd.f32 0.0, %v3447
        %v3449 = vpop.f32.mrf.mxu0
        %v3450 = vpop.f32.mrf.mxu0
        %v3451 = vpop.f32.mrf.mxu0
        %3452 = vdwg.mxu0
        %v3453 = vadd.f32 %v3363, %v3448
        %v3454 = vld [vmem:[%s8] sm:$0x1]
        %v3455 = vadd.f32 %v3453, %v3454
        %v3456 = vmax.f32 %v3455, 0.0
        %v3457 = vpack.c.bf16 %v3456, %v3456
        %v3458 = vld [vmem:[%s9] sm:$0xf]
        %v3459 = vld [vmem:[%s9 + $0x4] sm:$0xf]
        %v3460 = vld [vmem:[%s9 + $0x8] sm:$0xf]
        %v3461 = vld [vmem:[%s9 + $0xc] sm:$0xf]
        %v3462 = vld [vmem:[%s9 + $0x10] sm:$0xf]
        %v3463 = vld [vmem:[%s9 + $0x14] sm:$0xf]
        %v3464 = vld [vmem:[%s9 + $0x18] sm:$0xf]
        %v3465 = vld [vmem:[%s9 + $0x1c] sm:$0xf]
        %v3466 = vld [vmem:[%s9 + $0x20] sm:$0xf]
        %v3467 = vld [vmem:[%s9 + $0x24] sm:$0xf]
        %v3468 = vld [vmem:[%s9 + $0x28] sm:$0xf]
        %v3469 = vld [vmem:[%s9 + $0x2c] sm:$0xf]
        %v3470 = vld [vmem:[%s9 + $0x30] sm:$0xf]
        %v3471 = vld [vmem:[%s9 + $0x34] sm:$0xf]
        %v3472 = vld [vmem:[%s9 + $0x38] sm:$0xf]
        %v3473 = vld [vmem:[%s9 + $0x3c] sm:$0xf]
        %v3474 = vld [vmem:[%s10] sm:$0x1]
        %v3491 = vunpack.c.l.b16 %v3458
        %v3492 = vunpack.c.l.b16 %v3459
        %v3493 = vunpack.c.l.b16 %v3460
        %v3494 = vunpack.c.l.b16 %v3461
        %v3495 = vunpack.c.l.b16 %v3462
        %v3496 = vunpack.c.l.b16 %v3463
        %v3497 = vunpack.c.l.b16 %v3464
        %v3498 = vunpack.c.l.b16 %v3465
        %v3499 = vunpack.c.l.b16 %v3466
        %v3500 = vunpack.c.l.b16 %v3467
        %v3501 = vunpack.c.l.b16 %v3468
        %v3502 = vunpack.c.l.b16 %v3469
        %v3503 = vunpack.c.l.b16 %v3470
        %v3504 = vunpack.c.l.b16 %v3471
        %v3505 = vunpack.c.l.b16 %v3472
        %v3506 = vunpack.c.l.b16 %v3473
        %v3507 = vpack.c.b16 %v3492, %v3491
        %v3508 = vpack.c.b16 %v3494, %v3493
        %v3509 = vpack.c.b16 %v3496, %v3495
        %v3510 = vpack.c.b16 %v3498, %v3497
        %v3511 = vpack.c.b16 %v3500, %v3499
        %v3512 = vpack.c.b16 %v3502, %v3501
        %v3513 = vpack.c.b16 %v3504, %v3503
        %v3514 = vpack.c.b16 %v3506, %v3505
        %3523 = vmatprep.subr.bf16.mxu0 0
        %3524 = vmatpush1.bf16.msra.mxu0 %v3514
        %3525 = vmatprep.subr.bf16.mxu0 0
        %3526 = vmatpush1.bf16.msra.mxu0 %v3513
        %3527 = vmatprep.subr.bf16.mxu0 0
        %3528 = vmatpush1.bf16.msra.mxu0 %v3512
        %3529 = vmatprep.subr.bf16.mxu0 0
        %3530 = vmatpush1.bf16.msra.mxu0 %v3511
        %3531 = vmatprep.subr.bf16.mxu0 0
        %3532 = vmatpush1.bf16.msra.mxu0 %v3510
        %3533 = vmatprep.subr.bf16.mxu0 0
        %3534 = vmatpush1.bf16.msra.mxu0 %v3509
        %3535 = vmatprep.subr.bf16.mxu0 0
        %3536 = vmatpush1.bf16.msra.mxu0 %v3508
        %3537 = vmatprep.subr.bf16.mxu0 0
        %3538 = vmatpush1.bf16.msra.mxu0 %v3507
        %3539 = vmatprep.subr.bf16.mxu0 0
        %3540 = vmatpush2.bf16.msra.mxu0 0
        %3541 = vmatprep.subr.bf16.mxu0 0
        %3542 = vmatpush2.bf16.msra.mxu0 0
        %3543 = vmatprep.subr.bf16.mxu0 0
        %3544 = vmatpush2.bf16.msra.mxu0 0
        %3545 = vmatprep.subr.bf16.mxu0 0
        %3546 = vmatpush2.bf16.msra.mxu0 0
        %3547 = vmatprep.subr.bf16.mxu0 0
        %3548 = vmatpush2.bf16.msra.mxu0 0
        %3549 = vmatprep.subr.bf16.mxu0 0
        %3550 = vmatpush2.bf16.msra.mxu0 0
        %3551 = vmatprep.subr.bf16.mxu0 0
        %3552 = vmatpush2.bf16.msra.mxu0 0
        %3553 = vmatprep.subr.bf16.mxu0 0
        %3554 = vmatpush2.bf16.msra.mxu0 0
        %3555 = vmatprep.mubr.bf16.mxu0 0
        %3556 = vmatmul.mubr.bf16.gmra.mxu0 %v3457
        %v3557 = vpop.f32.mrf.mxu0
        %v3558 = vadd.f32 %v3474, %v3557
        %v3559 = vpop.f32.mrf.mxu0
        %v3560 = vpop.f32.mrf.mxu0
        %v3561 = vpop.f32.mrf.mxu0
        %3562 = vdwg.mxu0
        %v3563 = vmax.f32 %v3558, 0.0
        %v3564 = vpack.c.bf16 %v3563, %v3563
        %v3565 = vld [vmem:[%s11] sm:$0xf]
        %v3566 = vld [vmem:[%s11 + $0x4] sm:$0xf]
        %v3567 = vld [vmem:[%s11 + $0x8] sm:$0xf]
        %v3568 = vld [vmem:[%s11 + $0xc] sm:$0xf]
        %v3569 = vld [vmem:[%s11 + $0x10] sm:$0xf]
        %v3570 = vld [vmem:[%s11 + $0x14] sm:$0xf]
        %v3571 = vld [vmem:[%s11 + $0x18] sm:$0xf]
        %v3572 = vld [vmem:[%s11 + $0x1c] sm:$0xf]
        %v3573 = vld [vmem:[%s11 + $0x20] sm:$0xf]
        %v3574 = vld [vmem:[%s11 + $0x24] sm:$0xf]
        %v3575 = vld [vmem:[%s11 + $0x28] sm:$0xf]
        %v3576 = vld [vmem:[%s11 + $0x2c] sm:$0xf]
        %v3577 = vld [vmem:[%s11 + $0x30] sm:$0xf]
        %v3578 = vld [vmem:[%s11 + $0x34] sm:$0xf]
        %v3579 = vld [vmem:[%s11 + $0x38] sm:$0xf]
        %v3580 = vld [vmem:[%s11 + $0x3c] sm:$0xf]
        %v3581 = vld [vmem:[%s12] sm:$0x1]
        %v3598 = vunpack.c.l.b16 %v3565
        %v3599 = vunpack.c.l.b16 %v3566
        %v3600 = vunpack.c.l.b16 %v3567
        %v3601 = vunpack.c.l.b16 %v3568
        %v3602 = vunpack.c.l.b16 %v3569
        %v3603 = vunpack.c.l.b16 %v3570
        %v3604 = vunpack.c.l.b16 %v3571
        %v3605 = vunpack.c.l.b16 %v3572
        %v3606 = vunpack.c.l.b16 %v3573
        %v3607 = vunpack.c.l.b16 %v3574
        %v3608 = vunpack.c.l.b16 %v3575
        %v3609 = vunpack.c.l.b16 %v3576
        %v3610 = vunpack.c.l.b16 %v3577
        %v3611 = vunpack.c.l.b16 %v3578
        %v3612 = vunpack.c.l.b16 %v3579
        %v3613 = vunpack.c.l.b16 %v3580
        %v3614 = vpack.c.b16 %v3599, %v3598
        %v3615 = vpack.c.b16 %v3601, %v3600
        %v3616 = vpack.c.b16 %v3603, %v3602
        %v3617 = vpack.c.b16 %v3605, %v3604
        %v3618 = vpack.c.b16 %v3607, %v3606
        %v3619 = vpack.c.b16 %v3609, %v3608
        %v3620 = vpack.c.b16 %v3611, %v3610
        %v3621 = vpack.c.b16 %v3613, %v3612
        %3630 = vmatprep.subr.bf16.mxu0 0
        %3631 = vmatpush1.bf16.msra.mxu0 %v3621
        %3632 = vmatprep.subr.bf16.mxu0 0
        %3633 = vmatpush1.bf16.msra.mxu0 %v3620
        %3634 = vmatprep.subr.bf16.mxu0 0
        %3635 = vmatpush1.bf16.msra.mxu0 %v3619
        %3636 = vmatprep.subr.bf16.mxu0 0
        %3637 = vmatpush1.bf16.msra.mxu0 %v3618
        %3638 = vmatprep.subr.bf16.mxu0 0
        %3639 = vmatpush1.bf16.msra.mxu0 %v3617
        %3640 = vmatprep.subr.bf16.mxu0 0
        %3641 = vmatpush1.bf16.msra.mxu0 %v3616
        %3642 = vmatprep.subr.bf16.mxu0 0
        %3643 = vmatpush1.bf16.msra.mxu0 %v3615
        %3644 = vmatprep.subr.bf16.mxu0 0
        %3645 = vmatpush1.bf16.msra.mxu0 %v3614
        %3646 = vmatprep.subr.bf16.mxu0 0
        %3647 = vmatpush2.bf16.msra.mxu0 0
        %3648 = vmatprep.subr.bf16.mxu0 0
        %3649 = vmatpush2.bf16.msra.mxu0 0
        %3650 = vmatprep.subr.bf16.mxu0 0
        %3651 = vmatpush2.bf16.msra.mxu0 0
        %3652 = vmatprep.subr.bf16.mxu0 0
        %3653 = vmatpush2.bf16.msra.mxu0 0
        %3654 = vmatprep.subr.bf16.mxu0 0
        %3655 = vmatpush2.bf16.msra.mxu0 0
        %3656 = vmatprep.subr.bf16.mxu0 0
        %3657 = vmatpush2.bf16.msra.mxu0 0
        %3658 = vmatprep.subr.bf16.mxu0 0
        %3659 = vmatpush2.bf16.msra.mxu0 0
        %3660 = vmatprep.subr.bf16.mxu0 0
        %3661 = vmatpush2.bf16.msra.mxu0 0
        %3662 = vmatprep.mubr.bf16.mxu0 0
        %3663 = vmatmul.mubr.bf16.gmra.mxu0 %v3564
        %v3664 = vpop.f32.mrf.mxu0
        %v3665 = vadd.f32 %v3581, %v3664
        %v3666 = vpop.f32.mrf.mxu0
        %v3667 = vpop.f32.mrf.mxu0
        %v3668 = vpop.f32.mrf.mxu0
        %3669 = vdwg.mxu0
        %3670 = vst [vmem:[%s432] sm:$0x1] %v3665
        %s3671 = sand.u32 %s313, 1
        %s3672 = scalar_lea.sflag [#allocation3], %s3671
        %s3673 = sand.u32 %s313, 1
        %s3674 = scalar_lea.vmem [#allocation2], %s3673
        // Predicated region
        $region73: #{net_forward.1} parent=71 // pred_check
          %p3675 = pneg %p323
        $region74: #{net_forward.1} parent=71 // pred_check_branch
          %3677 = sbr.rel (%p3675) target = $region76
        $region75: #{net_forward.1} parent=71 // pred_region
          %s3679 = ssub.s32 16, 16
          %3680 = vsyncadd %s3672, %s3679
          %s3681 = smul.addr %s27, 16
          %s3682 = scalar_lea.hbm %s13, %s3681
          %s3684 = sshll.u32 %s3674, 4
          %s3685 = int_to_ptr.vmem [resolvable:$true] %s3684
          %3687 = dma.vmem_to_hbm [thread:$0]  %s3685, 16, %s3682, %s3672
        $region76: #{net_forward.1} parent=71 // pred_fallthru
          _
      $region72: #{net_forward.1} parent=5 // pred_fallthru
        _
      %p3688 = scmp.le.s32.totalorder 2, %s22
      // Predicated region
      $region77: #{net_forward.1} parent=5 // pred_check
        %p3689 = pneg %p3688
      $region78: #{net_forward.1} parent=5 // pred_check_branch
        %3691 = sbr.rel (%p3689) target = $region80
      $region79: #{net_forward.1} parent=5 // pred_region
        %s3692 = ssub.s32 %s22, 2
        // Predicated region
        $region81: #{net_forward.1} parent=79 // pred_check
          %p3693 = pneg %p329
        $region82: #{net_forward.1} parent=79 // pred_check_branch
          %3695 = sbr.rel (%p3693) target = $region84
        $region83: #{net_forward.1} parent=79 // pred_region
          %s3696 = sand.u32 %s314, 1
          %s3697 = scalar_lea.sflag [#allocation3], %s3696
          %s3698 = sand.u32 %s314, 1
          %s3699 = scalar_lea.vmem [#allocation2], %s3698
          %3700 = dma.done %s3697, 16
        $region84: #{net_forward.1} parent=79 // pred_fallthru
          _
      $region80: #{net_forward.1} parent=5 // pred_fallthru
        _
    $region6: #{net_forward.1} parent=1 // loop_footer
      %s26 = sadd.s32 1, %s22
    $region7: #{net_forward.1} parent=1 // loop_footer_branch
      %21 = sbr.rel target = $region3
    $region8: #{net_forward.1} parent=1 // loop_exit
      _
    %3701 = vsyncpa [#allocation3], 1
    %s3702 = scalar_lea.sflag [#allocation3], 1
    %3703 = vsyncpa %s3702, 1

</llo_original>
